<compile_context>
chip_gen: v5e
topology: v5e:2x2
jax: 0.10.0
libtpu: 0.0.40
codegen_flags: <defaults>
</compile_context>

<pallas_src>
import jax
import jax.numpy as jnp
from jax.experimental import pallas as pl
from jax.experimental.pallas import tpu as pltpu

# ------------- problem sizes (small, synthetic; N deliberately NOT a tile multiple) -------------
N = 200            # number of points
M = 8              # neighbors per point
CIN = 16           # in_channels
COUT = 32          # out_channels
D2 = COUT // 4     # bottleneck width d_2 = 8
KP = 15            # KPConv kernel points

PREV_GRID_SIZE = 1.0
SIGMA = 1.0
POINT_INFLUENCE = PREV_GRID_SIZE * SIGMA          # KP_extent
KERNEL_RADIUS = 1.5 * POINT_INFLUENCE
NEG_SLOPE = 0.2
BN_EPS = 1e-5
SHADOW = 1e6                                      # coordinate of the shadow / missing neighbor

# kernel-point slabs for the big contraction (lane-aligned slab starts: 0 and 8*M*D2=512)
_K_CHUNKS = (8, 7)


def _choose_tile(n_rows):
    """Rows per grid step: >=2 steps (v7x has 2 TensorCores) but tiles as large as possible
    (amortize the ~0.35us/step pipeline overhead), capped at 512 so kernel B's intermediates and
    double-buffered constants stay well inside even v5e's 16 MiB default scoped VMEM."""
    tb = ((n_rows + 2 * 128 - 1) // (2 * 128)) * 128
    return max(128, min(512, tb))


# -------- kernel A: fused unary_1 + shortcut linear (single matmul) + merged BN partials --------
def unary_shortcut_kernel(feats_ref, w_ref, x_ref, stats_ref):
    x = jnp.dot(feats_ref[...], w_ref[...], preferred_element_type=jnp.float32)  # [TB, D2+COUT]
    x_ref[...] = x
    s = jnp.sum(x, axis=0, keepdims=True)          # [1, D2+COUT]
    q = jnp.sum(x * x, axis=0, keepdims=True)      # [1, D2+COUT]
    stats_ref[0] = jnp.concatenate([s, q], axis=1)  # single (1, 2*(D2+COUT)) output slab


# ---------- kernel B: KPConv (+fused BN1/LeakyReLU) + unary_2 linear + BN2 partial sums --------
def kpconv_unary2_kernel(cent2_ref, nfeat_ref, dmat_ref, sc1_ref, sh1_ref,
                         e1_ref, wexp_ref, y2_ref, stats_ref):
    # fused squared distances to all kernel points for all neighbors at once:
    #   ||c - kp||^2 = ||c||^2 - 2 c.kp + ||kp||^2  ->  ONE [TB,49] x [49, M*KP] matmul
    # (distance path kept in f32: SHADOW sentinel squares to 1e12 and real coords need digits)
    sq = jnp.dot(cent2_ref[...], dmat_ref[...], preferred_element_type=jnp.float32)  # [TB, M*KP]
    dist = jnp.sqrt(jnp.maximum(sq, 0.0))
    wgt = jnp.maximum(1.0 - dist * (1.0 / POINT_INFLUENCE), 0.0)      # linear influence, [TB,M*KP]
    # TODO(synk): sqrt at exactly 0 is fine for the forward pass but needs care for a custom VJP.

    # BN1 + LeakyReLU fused onto the gathered pre-BN unary_1 features; shadow rows become a
    # nonzero constant but their influence weight is exactly 0, so they contribute nothing.
    a1 = nfeat_ref[...] * sc1_ref[...] + sh1_ref[...]                  # [TB, M*D2]
    a1 = jnp.where(a1 >= 0.0, a1, NEG_SLOPE * a1)

    wgt_b = wgt.astype(jnp.bfloat16)                                   # bf16 MXU operand

    # expand wgt to the (k, m, c) lane space with a 0/1 selection matmul (bf16, exact), replicate
    # a1 with jnp.tile (no MXU), multiply, and contract against the pre-folded (KPConv @ W2)
    # weights.  Chunked along k into lane-aligned slabs so the [TB, 960] intermediates never
    # fully materialize.
    y2 = None
    k0 = 0
    for kc in _K_CHUNKS:
        lo = k0 * M * D2
        width = kc * M * D2
        wgt_e = jnp.dot(wgt_b, e1_ref[:, lo:lo + width],
                        preferred_element_type=jnp.float32)            # [TB, kc*M*D2] exact 0/1 sel
        prod = (wgt_e * jnp.tile(a1, (1, kc))).astype(jnp.bfloat16)    # [TB, kc*M*D2]
        part = jnp.dot(prod, wexp_ref[lo:lo + width, :],
                       preferred_element_type=jnp.float32)             # [TB, COUT], f32 accumulate
        y2 = part if y2 is None else y2 + part
        k0 += kc

    y2_ref[...] = y2
    stats_ref[0] = jnp.concatenate(
        [jnp.sum(y2, axis=0, keepdims=True),
         jnp.sum(y2 * y2, axis=0, keepdims=True)], axis=1)             # single (1, 2*COUT) slab


# -------- kernel C: lane-dense BN2 + LeakyReLU + shortcut BN + residual add (128-wide) ---------
def bn_act_residual_kernel(y_ref, s_ref, sc2_ref, sh2_ref, scs_ref, shs_ref, o_ref):
    y = y_ref[...] * sc2_ref[...] + sh2_ref[...]
    y = jnp.where(y >= 0.0, y, NEG_SLOPE * y)
    o_ref[...] = y + s_ref[...] * scs_ref[...] + shs_ref[...]


# ------------------------------------- JAX glue helpers ---------------------------------------
def _bn_scale_shift(s, ssq, count, gamma, beta):
    """Fold training-mode BN (batch stats, biased var) into a per-channel scale/shift."""
    mean = s / count
    # TODO(synk): E[x^2]-E[x]^2 in f32; switch to a two-pass/Welford reduction if activations
    # can be large in magnitude (cancellation risk).
    var = ssq / count - mean * mean
    inv = gamma / jnp.sqrt(var + BN_EPS)
    return inv, beta - mean * inv


def _build_constants(k_points, w_kp, w2):
    """Constant matrices that turn the KPConv inner loops into lane-dense matmuls."""
    # fused distance RHS, columns ordered (m, k):
    #   rows 0..M*3-1  -> selector for ||c||^2 (per neighbor m)
    #   rows M*3..2M*3 -> -2 * kp coords (cross term)
    #   last row       -> ||kp||^2 bias (multiplied by the ones column of the LHS)
    p = jnp.arange(M * KP)
    m_o, k_o = p // KP, p % KP
    r = jnp.arange(M * 3)
    m_i, d_i = r // 3, r % 3
    same = m_i[:, None] == m_o[None, :]
    msel = same.astype(jnp.float32)                                          # [M*3, M*KP]
    kpb = jnp.where(same, -2.0 * k_points[k_o[None, :], d_i[:, None]], 0.0)  # [M*3, M*KP]
    kpsq = jnp.sum(k_points * k_points, axis=1)[k_o][None, :]                # [1,   M*KP]
    dmat = jnp.concatenate([msel, kpb, kpsq], axis=0)                        # [2*M*3+1, M*KP]

    # common lane space ordered (k, m, c): a1 expansion becomes jnp.tile, only wgt needs a
    # selection matmul.  0/1 selectors are exact in bf16.
    j = jnp.arange(KP * M * D2)
    k_j = j // (M * D2)
    m_j = (j // D2) % M
    c_j = j % D2
    e1 = ((m_j * KP + k_j)[None, :]
          == jnp.arange(M * KP)[:, None]).astype(jnp.bfloat16)               # [M*KP, KP*M*D2]

    # fold KPConv weights with the unary_2 linear (exact associativity), expand over m
    w_comb = jnp.dot(w_kp.reshape(KP * D2, D2), w2)                          # [KP*D2, COUT]
    w_exp = w_comb[k_j * D2 + c_j].astype(jnp.bfloat16)                      # [KP*M*D2, COUT]
    return dmat, e1, w_exp


# ---------------------------------------- wrapper ---------------------------------------------
def kpconv_res_block(feats, xyz, neighbor_idx, params):
    (w1, w2, ws, w_kp, k_points, g1, b1, g2, b2, gs, bs) = params
    n = feats.shape[0]
    tb = _choose_tile(n)
    n_pad = ((n + tb - 1) // tb) * tb
    ntiles = n_pad // tb
    count = float(n)
    dmix = D2 + COUT

    feats_p = jnp.pad(feats, ((0, n_pad - n), (0, 0)))   # zero rows -> 0 linear output, 0 stats
    w1s = jnp.concatenate([w1, ws], axis=1)              # one RHS for unary_1 + shortcut

    # ---- kernel A: fused unary_1 / shortcut linear + merged BN partials ----
    x, stats_a = pl.pallas_call(
        unary_shortcut_kernel,
        out_shape=(
            jax.ShapeDtypeStruct((n_pad, dmix), jnp.float32),
            jax.ShapeDtypeStruct((ntiles, 1, 2 * dmix), jnp.float32),
        ),
        grid_spec=pltpu.PrefetchScalarGridSpec(
            num_scalar_prefetch=0,
            grid=(ntiles,),
            in_specs=[
                pl.BlockSpec((tb, CIN), lambda i: (i, 0)),
                pl.BlockSpec((CIN, dmix), lambda i: (0, 0)),
            ],
            out_specs=[
                pl.BlockSpec((tb, dmix), lambda i: (i, 0)),
                pl.BlockSpec((1, 1, 2 * dmix), lambda i: (i, 0, 0)),
            ],
        ),
        compiler_params=pltpu.CompilerParams(dimension_semantics=("parallel",)),
    )(feats_p, w1s)

    tot_a = jnp.sum(stats_a[:, 0, :], axis=0, keepdims=True)      # [1, 2*(D2+COUT)]
    s_a, q_a = tot_a[:, :dmix], tot_a[:, dmix:]
    sc1, sh1 = _bn_scale_shift(s_a[:, :D2], q_a[:, :D2], count, g1, b1)
    scs, shs = _bn_scale_shift(s_a[:, D2:], q_a[:, D2:], count, gs, bs)
    x1 = x[:, :D2]
    xs = x[:, D2:]

    # ---- glue: data-dependent neighbor gather + lane-dense flattening ----
    # TODO(synk): gather stays in JAX glue; an in-Pallas version needs manual DMA-gather.
    support = jnp.concatenate([xyz, jnp.full((1, 3), SHADOW, xyz.dtype)], axis=0)
    nxyz = support[neighbor_idx]                                      # [N, M, 3]
    cent = (nxyz - xyz[:, None, :]).reshape(n, M * 3)
    cent = jnp.pad(cent, ((0, n_pad - n), (0, 0)), constant_values=SHADOW)  # padded rows -> wgt 0
    cent2 = jnp.concatenate([cent * cent, cent,
                             jnp.ones((n_pad, 1), jnp.float32)], axis=1)    # [n_pad, 2*M*3+1]

    x1_sup = jnp.concatenate([x1[:n], jnp.zeros((1, D2), jnp.float32)], axis=0)
    nfeat = x1_sup[neighbor_idx].reshape(n, M * D2)                   # pre-BN1 gathered features
    nfeat = jnp.pad(nfeat, ((0, n_pad - n), (0, 0)))

    sc1_t = jnp.tile(sc1, (1, M))                                     # [1, M*D2]
    sh1_t = jnp.tile(sh1, (1, M))
    dmat, e1, w_exp = _build_constants(k_points, w_kp, w2)

    # ---- kernel B: KPConv + unary_2 linear + BN2 partials ----
    y2, stats_b = pl.pallas_call(
        kpconv_unary2_kernel,
        out_shape=(
            jax.ShapeDtypeStruct((n_pad, COUT), jnp.float32),
            jax.ShapeDtypeStruct((ntiles, 1, 2 * COUT), jnp.float32),
        ),
        grid_spec=pltpu.PrefetchScalarGridSpec(
            num_scalar_prefetch=0,
            grid=(ntiles,),
            in_specs=[
                pl.BlockSpec((tb, 2 * M * 3 + 1), lambda i: (i, 0)),
                pl.BlockSpec((tb, M * D2), lambda i: (i, 0)),
                pl.BlockSpec((2 * M * 3 + 1, M * KP), lambda i: (0, 0)),
                pl.BlockSpec((1, M * D2), lambda i: (0, 0)),
                pl.BlockSpec((1, M * D2), lambda i: (0, 0)),
                pl.BlockSpec((M * KP, KP * M * D2), lambda i: (0, 0)),
                pl.BlockSpec((KP * M * D2, COUT), lambda i: (0, 0)),
            ],
            out_specs=[
                pl.BlockSpec((tb, COUT), lambda i: (i, 0)),
                pl.BlockSpec((1, 1, 2 * COUT), lambda i: (i, 0, 0)),
            ],
        ),
        compiler_params=pltpu.CompilerParams(dimension_semantics=("parallel",)),
    )(cent2, nfeat, dmat, sc1_t, sh1_t, e1, w_exp)

    tot_b = jnp.sum(stats_b[:, 0, :], axis=0, keepdims=True)
    sc2, sh2 = _bn_scale_shift(tot_b[:, :COUT], tot_b[:, COUT:], count, g2, b2)

    # ---- kernel C: lane-dense BN2 + LeakyReLU + shortcut BN + residual add ----
    rows = n_pad // 4
    y2_r = y2.reshape(rows, 4 * COUT)                                 # 128-lane output slabs
    xs_r = xs.reshape(rows, 4 * COUT)
    sc2_t, sh2_t = jnp.tile(sc2, (1, 4)), jnp.tile(sh2, (1, 4))
    scs_t, shs_t = jnp.tile(scs, (1, 4)), jnp.tile(shs, (1, 4))

    out_r = pl.pallas_call(
        bn_act_residual_kernel,
        out_shape=jax.ShapeDtypeStruct((rows, 4 * COUT), jnp.float32),
        grid_spec=pltpu.PrefetchScalarGridSpec(
            num_scalar_prefetch=0,
            grid=(ntiles,),
            in_specs=[
                pl.BlockSpec((tb // 4, 4 * COUT), lambda i: (i, 0)),
                pl.BlockSpec((tb // 4, 4 * COUT), lambda i: (i, 0)),
                pl.BlockSpec((1, 4 * COUT), lambda i: (0, 0)),
                pl.BlockSpec((1, 4 * COUT), lambda i: (0, 0)),
                pl.BlockSpec((1, 4 * COUT), lambda i: (0, 0)),
                pl.BlockSpec((1, 4 * COUT), lambda i: (0, 0)),
            ],
            out_specs=pl.BlockSpec((tb // 4, 4 * COUT), lambda i: (i, 0)),
        ),
        compiler_params=pltpu.CompilerParams(dimension_semantics=("parallel",)),
    )(y2_r, xs_r, sc2_t, sh2_t, scs_t, shs_t)

    return out_r.reshape(n_pad, COUT)[:n]


# ------------------------------------ pure-JAX reference --------------------------------------
def reference(feats, xyz, neighbor_idx, params):
    (w1, w2, ws, w_kp, k_points, g1, b1, g2, b2, gs, bs) = params

    def bn(x, g, b):
        mean = x.mean(axis=0, keepdims=True)
        var = ((x - mean) ** 2).mean(axis=0, keepdims=True)
        return (x - mean) / jnp.sqrt(var + BN_EPS) * g + b

    def leaky(x):
        return jnp.where(x >= 0.0, x, NEG_SLOPE * x)

    a1 = leaky(bn(feats @ w1, g1, b1))                                 # unary_1
    support = jnp.concatenate([xyz, jnp.full((1, 3), SHADOW, xyz.dtype)], axis=0)
    fsup = jnp.concatenate([a1, jnp.zeros((1, D2), a1.dtype)], axis=0)
    nxyz = support[neighbor_idx]
    nf = fsup[neighbor_idx]
    cent = nxyz - xyz[:, None, :]
    diff = cent[:, :, None, :] - k_points[None, None, :, :]
    dist = jnp.sqrt(jnp.sum(diff * diff, axis=-1))
    wgt = jnp.maximum(1.0 - dist / POINT_INFLUENCE, 0.0)
    fk = jnp.einsum("nmk,nmc->nkc", wgt, nf).reshape(feats.shape[0], KP * D2)
    kout = fk @ w_kp.reshape(KP * D2, D2)                              # KPConv
    y2 = leaky(bn(kout @ w2, g2, b2))                                  # unary_2
    shortcut = bn(feats @ ws, gs, bs)                                  # shortcut_op (no act)
    return y2 + shortcut


if __name__ == "__main__":
    key = jax.random.PRNGKey(0)
    keys = jax.random.split(key, 8)

    xyz = jax.random.uniform(keys[0], (N, 3), dtype=jnp.float32)
    feats = jax.random.normal(keys[1], (N, CIN), dtype=jnp.float32)
    neighbor_idx = jax.random.randint(keys[2], (N, M), 0, N + 1, dtype=jnp.int32)  # N == shadow

    # kernel points: center point + 14 points on a sphere inside the kernel radius
    dirs = jax.random.normal(keys[3], (KP - 1, 3), dtype=jnp.float32)
    dirs = dirs / jnp.linalg.norm(dirs, axis=1, keepdims=True)
    k_points = jnp.concatenate(
        [jnp.zeros((1, 3), jnp.float32), dirs * (0.66 * KERNEL_RADIUS)], axis=0)

    def xavier(k, shape):
        std = (2.0 / (shape[-2] + shape[-1])) ** 0.5
        return std * jax.random.normal(k, shape, dtype=jnp.float32)

    w1 = xavier(keys[4], (CIN, D2))
    w2 = xavier(keys[5], (D2, COUT))
    ws = xavier(keys[6], (CIN, COUT))
    w_kp = xavier(keys[7], (KP, D2, D2))
    g1, b1 = jnp.ones((1, D2), jnp.float32), jnp.zeros((1, D2), jnp.float32)
    g2, b2 = jnp.ones((1, COUT), jnp.float32), jnp.zeros((1, COUT), jnp.float32)
    gs, bs = jnp.ones((1, COUT), jnp.float32), jnp.zeros((1, COUT), jnp.float32)
    params = (w1, w2, ws, w_kp, k_points, g1, b1, g2, b2, gs, bs)

    out = jax.block_until_ready(jax.jit(kpconv_res_block)(feats, xyz, neighbor_idx, params))
    ref = jax.block_until_ready(jax.jit(reference)(feats, xyz, neighbor_idx, params))

    max_err = float(jnp.max(jnp.abs(out - ref)))
    if not bool(jnp.allclose(out, ref, rtol=1e-2, atol=1e-2)):
        raise AssertionError(f"mismatch vs reference, max abs err = {max_err}")

    print("KERNEL_OK")
</pallas_src>

<mosaic_0001>
module attributes {stable_mosaic.version = 11 : i64} {
  func.func @unary_shortcut_kernel(%arg0: i32, %arg1: memref<128x16xf32, #tpu.memory_space<vmem>>, %arg2: memref<16x40xf32, #tpu.memory_space<vmem>>, %arg3: memref<128x40xf32, #tpu.memory_space<vmem>>, %arg4: memref<1x1x80xf32, #tpu.memory_space<vmem>>) attributes {dimension_semantics = [#tpu.dimension_semantics<parallel>], iteration_bounds = array<i64: 2>, scalar_prefetch = 0 : i64, scratch_operands = 0 : i64, tpu.core_type = #tpu.core_type<tc>, window_params = [{transform_indices = @transform_0, window_bounds = array<i64: 128, 16>}, {pipeline_mode = #tpu.pipeline_mode<synchronous>, transform_indices = @transform_1, window_bounds = array<i64: 16, 40>}, {transform_indices = @transform_2, window_bounds = array<i64: 128, 40>}, {transform_indices = @transform_3, window_bounds = array<i64: 1, 1, 80>}]} {
    %c0 = arith.constant 0 : index
    %c0_0 = arith.constant 0 : index
    %0 = vector.load %arg1[%c0, %c0_0] : memref<128x16xf32, #tpu.memory_space<vmem>>, vector<128x16xf32>
    %c0_1 = arith.constant 0 : index
    %c0_2 = arith.constant 0 : index
    %1 = vector.load %arg2[%c0_1, %c0_2] : memref<16x40xf32, #tpu.memory_space<vmem>>, vector<16x40xf32>
    %cst = arith.constant dense<0.000000e+00> : vector<128x40xf32>
    %2 = tpu.matmul %0, %1, %cst {dimension_numbers = #tpu.dot_dimension_numbers<[1], [0], [0], [1], [0, 0, 1, 1], [], []>} : vector<128x16xf32>, vector<16x40xf32>, vector<128x40xf32> -> vector<128x40xf32>
    %c0_3 = arith.constant 0 : index
    %c0_4 = arith.constant 0 : index
    %3 = vector.load %arg3[%c0_3, %c0_4] : memref<128x40xf32, #tpu.memory_space<vmem>>, vector<128x40xf32>
    tpu.vector_store %arg3[%c0_3, %c0_4], %2 {strides = array<i32>} : memref<128x40xf32, #tpu.memory_space<vmem>>, vector<128x40xf32>,
    %cst_5 = arith.constant dense<0.000000e+00> : vector<40xf32>
    %4 = vector.multi_reduction <add>, %2, %cst_5 [0] : vector<128x40xf32> to vector<40xf32>
    %5 = vector.shape_cast %4 : vector<40xf32> to vector<1x40xf32>
    %6 = arith.mulf %2, %2 : vector<128x40xf32>
    %cst_6 = arith.constant dense<0.000000e+00> : vector<40xf32>
    %7 = vector.multi_reduction <add>, %6, %cst_6 [0] : vector<128x40xf32> to vector<40xf32>
    %8 = vector.shape_cast %7 : vector<40xf32> to vector<1x40xf32>
    %9 = tpu.concatenate %5, %8 in 1 : vector<1x40xf32>, vector<1x40xf32> -> vector<1x80xf32>
    %c0_7 = arith.constant 0 : index
    %c0_8 = arith.constant 0 : index
    %c0_9 = arith.constant 0 : index
    %10 = vector.load %arg4[%c0_7, %c0_8, %c0_9] : memref<1x1x80xf32, #tpu.memory_space<vmem>>, vector<1x1x80xf32>
    %11 = vector.shape_cast %10 : vector<1x1x80xf32> to vector<1x80xf32>
    %12 = vector.shape_cast %9 : vector<1x80xf32> to vector<1x1x80xf32>
    tpu.vector_store %arg4[%c0_7, %c0_8, %c0_9], %12 {strides = array<i32>} : memref<1x1x80xf32, #tpu.memory_space<vmem>>, vector<1x1x80xf32>,
    return
  }
  func.func @transform_0(%arg0: i32) -> (i32, i32) {
    %c0_i32 = arith.constant 0 : i32
    %c0_i32_0 = arith.constant 0 : i32
    return %arg0, %c0_i32 : i32, i32
  }
  func.func @transform_1(%arg0: i32) -> (i32, i32) {
    %c0_i32 = arith.constant 0 : i32
    %c0_i32_0 = arith.constant 0 : i32
    %c0_i32_1 = arith.constant 0 : i32
    return %c0_i32, %c0_i32_0 : i32, i32
  }
  func.func @transform_2(%arg0: i32) -> (i32, i32) {
    %c0_i32 = arith.constant 0 : i32
    %c0_i32_0 = arith.constant 0 : i32
    return %arg0, %c0_i32 : i32, i32
  }
  func.func @transform_3(%arg0: i32) -> (i32, i32, i32) {
    %c0_i32 = arith.constant 0 : i32
    %c0_i32_0 = arith.constant 0 : i32
    %c0_i32_1 = arith.constant 0 : i32
    return %arg0, %c0_i32, %c0_i32_0 : i32, i32, i32
  }
}

module attributes {stable_mosaic.version = 11 : i64} {
  func.func @kpconv_unary2_kernel(%arg0: i32, %arg1: memref<128x49xf32, #tpu.memory_space<vmem>>, %arg2: memref<128x64xf32, #tpu.memory_space<vmem>>, %arg3: memref<49x120xf32, #tpu.memory_space<vmem>>, %arg4: memref<1x64xf32, #tpu.memory_space<vmem>>, %arg5: memref<1x64xf32, #tpu.memory_space<vmem>>, %arg6: memref<120x960xbf16, #tpu.memory_space<vmem>>, %arg7: memref<960x32xbf16, #tpu.memory_space<vmem>>, %arg8: memref<128x32xf32, #tpu.memory_space<vmem>>, %arg9: memref<1x1x64xf32, #tpu.memory_space<vmem>>) attributes {dimension_semantics = [#tpu.dimension_semantics<parallel>], iteration_bounds = array<i64: 2>, scalar_prefetch = 0 : i64, scratch_operands = 0 : i64, tpu.core_type = #tpu.core_type<tc>, window_params = [{transform_indices = @transform_0, window_bounds = array<i64: 128, 49>}, {transform_indices = @transform_1, window_bounds = array<i64: 128, 64>}, {pipeline_mode = #tpu.pipeline_mode<synchronous>, transform_indices = @transform_2, window_bounds = array<i64: 49, 120>}, {pipeline_mode = #tpu.pipeline_mode<synchronous>, transform_indices = @transform_3, window_bounds = array<i64: 1, 64>}, {pipeline_mode = #tpu.pipeline_mode<synchronous>, transform_indices = @transform_4, window_bounds = array<i64: 1, 64>}, {pipeline_mode = #tpu.pipeline_mode<synchronous>, transform_indices = @transform_5, window_bounds = array<i64: 120, 960>}, {pipeline_mode = #tpu.pipeline_mode<synchronous>, transform_indices = @transform_6, window_bounds = array<i64: 960, 32>}, {transform_indices = @transform_7, window_bounds = array<i64: 128, 32>}, {transform_indices = @transform_8, window_bounds = array<i64: 1, 1, 64>}]} {
    %c0 = arith.constant 0 : index
    %c0_0 = arith.constant 0 : index
    %0 = vector.load %arg1[%c0, %c0_0] : memref<128x49xf32, #tpu.memory_space<vmem>>, vector<128x49xf32>
    %c0_1 = arith.constant 0 : index
    %c0_2 = arith.constant 0 : index
    %1 = vector.load %arg3[%c0_1, %c0_2] : memref<49x120xf32, #tpu.memory_space<vmem>>, vector<49x120xf32>
    %cst = arith.constant dense<0.000000e+00> : vector<128x120xf32>
    %2 = tpu.matmul %0, %1, %cst {dimension_numbers = #tpu.dot_dimension_numbers<[1], [0], [0], [1], [0, 0, 1, 1], [], []>} : vector<128x49xf32>, vector<49x120xf32>, vector<128x120xf32> -> vector<128x120xf32>
    %cst_3 = arith.constant 0.000000e+00 : f32
    %3 = vector.broadcast %cst_3 : f32 to vector<128x120xf32>
    %4 = arith.maximumf %2, %3 : vector<128x120xf32>
    %5 = math.sqrt %4 : vector<128x120xf32>
    %cst_4 = arith.constant 1.000000e+00 : f32
    %6 = vector.broadcast %cst_4 : f32 to vector<128x120xf32>
    %7 = arith.mulf %5, %6 : vector<128x120xf32>
    %cst_5 = arith.constant 1.000000e+00 : f32
    %8 = vector.broadcast %cst_5 : f32 to vector<128x120xf32>
    %9 = arith.subf %8, %7 : vector<128x120xf32>
    %cst_6 = arith.constant 0.000000e+00 : f32
    %10 = vector.broadcast %cst_6 : f32 to vector<128x120xf32>
    %11 = arith.maximumf %9, %10 : vector<128x120xf32>
    %c0_7 = arith.constant 0 : index
    %c0_8 = arith.constant 0 : index
    %12 = vector.load %arg2[%c0_7, %c0_8] : memref<128x64xf32, #tpu.memory_space<vmem>>, vector<128x64xf32>
    %c0_9 = arith.constant 0 : index
    %c0_10 = arith.constant 0 : index
    %13 = vector.load %arg4[%c0_9, %c0_10] : memref<1x64xf32, #tpu.memory_space<vmem>>, vector<1x64xf32>
    %14 = vector.broadcast %13 : vector<1x64xf32> to vector<128x64xf32>
    %15 = arith.mulf %12, %14 : vector<128x64xf32>
    %c0_11 = arith.constant 0 : index
    %c0_12 = arith.constant 0 : index
    %16 = vector.load %arg5[%c0_11, %c0_12] : memref<1x64xf32, #tpu.memory_space<vmem>>, vector<1x64xf32>
    %17 = vector.broadcast %16 : vector<1x64xf32> to vector<128x64xf32>
    %18 = arith.addf %15, %17 : vector<128x64xf32>
    %cst_13 = arith.constant 0.000000e+00 : f32
    %19 = vector.broadcast %cst_13 : f32 to vector<128x64xf32>
    %20 = arith.cmpf oge, %18, %19 : vector<128x64xf32>
    %cst_14 = arith.constant 2.000000e-01 : f32
    %21 = vector.broadcast %cst_14 : f32 to vector<128x64xf32>
    %22 = arith.mulf %21, %18 : vector<128x64xf32>
    %23 = arith.select %20, %18, %22 : vector<128x64xi1>, vector<128x64xf32>
    %24 = arith.truncf %11 : vector<128x120xf32> to vector<128x120xbf16>
    %c0_15 = arith.constant 0 : index
    %c0_16 = arith.constant 0 : index
    %25 = vector.load %arg6[%c0_15, %c0_16] : memref<120x960xbf16, #tpu.memory_space<vmem>>, vector<120x512xbf16>
    %cst_17 = arith.constant dense<0.000000e+00> : vector<128x512xf32>
    %26 = tpu.matmul %24, %25, %cst_17 {dimension_numbers = #tpu.dot_dimension_numbers<[1], [0], [0], [1], [0, 0, 1, 1], [], []>} : vector<128x120xbf16>, vector<120x512xbf16>, vector<128x512xf32> -> vector<128x512xf32>
    %27 = tpu.concatenate %23, %23, %23, %23, %23, %23, %23, %23 in 1 : vector<128x64xf32>, vector<128x64xf32>, vector<128x64xf32>, vector<128x64xf32>, vector<128x64xf32>, vector<128x64xf32>, vector<128x64xf32>, vector<128x64xf32> -> vector<128x512xf32>
    %28 = arith.mulf %26, %27 : vector<128x512xf32>
    %29 = arith.truncf %28 : vector<128x512xf32> to vector<128x512xbf16>
    %c0_18 = arith.constant 0 : index
    %c0_19 = arith.constant 0 : index
    %30 = vector.load %arg7[%c0_18, %c0_19] : memref<960x32xbf16, #tpu.memory_space<vmem>>, vector<512x32xbf16>
    %cst_20 = arith.constant dense<0.000000e+00> : vector<128x32xf32>
    %31 = tpu.matmul %29, %30, %cst_20 {dimension_numbers = #tpu.dot_dimension_numbers<[1], [0], [0], [1], [0, 0, 1, 1], [], []>} : vector<128x512xbf16>, vector<512x32xbf16>, vector<128x32xf32> -> vector<128x32xf32>
    %c0_21 = arith.constant 0 : index
    %c512 = arith.constant 512 : index
    %32 = vector.load %arg6[%c0_21, %c512] : memref<120x960xbf16, #tpu.memory_space<vmem>>, vector<120x448xbf16>
    %cst_22 = arith.constant dense<0.000000e+00> : vector<128x448xf32>
    %33 = tpu.matmul %24, %32, %cst_22 {dimension_numbers = #tpu.dot_dimension_numbers<[1], [0], [0], [1], [0, 0, 1, 1], [], []>} : vector<128x120xbf16>, vector<120x448xbf16>, vector<128x448xf32> -> vector<128x448xf32>
    %34 = tpu.concatenate %23, %23, %23, %23, %23, %23, %23 in 1 : vector<128x64xf32>, vector<128x64xf32>, vector<128x64xf32>, vector<128x64xf32>, vector<128x64xf32>, vector<128x64xf32>, vector<128x64xf32> -> vector<128x448xf32>
    %35 = arith.mulf %33, %34 : vector<128x448xf32>
    %36 = arith.truncf %35 : vector<128x448xf32> to vector<128x448xbf16>
    %c512_23 = arith.constant 512 : index
    %c0_24 = arith.constant 0 : index
    %37 = vector.load %arg7[%c512_23, %c0_24] : memref<960x32xbf16, #tpu.memory_space<vmem>>, vector<448x32xbf16>
    %cst_25 = arith.constant dense<0.000000e+00> : vector<128x32xf32>
    %38 = tpu.matmul %36, %37, %cst_25 {dimension_numbers = #tpu.dot_dimension_numbers<[1], [0], [0], [1], [0, 0, 1, 1], [], []>} : vector<128x448xbf16>, vector<448x32xbf16>, vector<128x32xf32> -> vector<128x32xf32>
    %39 = arith.addf %31, %38 : vector<128x32xf32>
    %c0_26 = arith.constant 0 : index
    %c0_27 = arith.constant 0 : index
    %40 = vector.load %arg8[%c0_26, %c0_27] : memref<128x32xf32, #tpu.memory_space<vmem>>, vector<128x32xf32>
    tpu.vector_store %arg8[%c0_26, %c0_27], %39 {strides = array<i32>} : memref<128x32xf32, #tpu.memory_space<vmem>>, vector<128x32xf32>,
    %cst_28 = arith.constant dense<0.000000e+00> : vector<32xf32>
    %41 = vector.multi_reduction <add>, %39, %cst_28 [0] : vector<128x32xf32> to vector<32xf32>
    %42 = vector.shape_cast %41 : vector<32xf32> to vector<1x32xf32>
    %43 = arith.mulf %39, %39 : vector<128x32xf32>
    %cst_29 = arith.constant dense<0.000000e+00> : vector<32xf32>
    %44 = vector.multi_reduction <add>, %43, %cst_29 [0] : vector<128x32xf32> to vector<32xf32>
    %45 = vector.shape_cast %44 : vector<32xf32> to vector<1x32xf32>
    %46 = tpu.concatenate %42, %45 in 1 : vector<1x32xf32>, vector<1x32xf32> -> vector<1x64xf32>
    %c0_30 = arith.constant 0 : index
    %c0_31 = arith.constant 0 : index
    %c0_32 = arith.constant 0 : index
    %47 = vector.load %arg9[%c0_30, %c0_31, %c0_32] : memref<1x1x64xf32, #tpu.memory_space<vmem>>, vector<1x1x64xf32>
    %48 = vector.shape_cast %47 : vector<1x1x64xf32> to vector<1x64xf32>
    %49 = vector.shape_cast %46 : vector<1x64xf32> to vector<1x1x64xf32>
    tpu.vector_store %arg9[%c0_30, %c0_31, %c0_32], %49 {strides = array<i32>} : memref<1x1x64xf32, #tpu.memory_space<vmem>>, vector<1x1x64xf32>,
    return
  }
  func.func @transform_0(%arg0: i32) -> (i32, i32) {
    %c0_i32 = arith.constant 0 : i32
    %c0_i32_0 = arith.constant 0 : i32
    return %arg0, %c0_i32 : i32, i32
  }
  func.func @transform_1(%arg0: i32) -> (i32, i32) {
    %c0_i32 = arith.constant 0 : i32
    %c0_i32_0 = arith.constant 0 : i32
    return %arg0, %c0_i32 : i32, i32
  }
  func.func @transform_2(%arg0: i32) -> (i32, i32) {
    %c0_i32 = arith.constant 0 : i32
    %c0_i32_0 = arith.constant 0 : i32
    %c0_i32_1 = arith.constant 0 : i32
    return %c0_i32, %c0_i32_0 : i32, i32
  }
  func.func @transform_3(%arg0: i32) -> (i32, i32) {
    %c0_i32 = arith.constant 0 : i32
    %c0_i32_0 = arith.constant 0 : i32
    %c0_i32_1 = arith.constant 0 : i32
    return %c0_i32, %c0_i32_0 : i32, i32
  }
  func.func @transform_4(%arg0: i32) -> (i32, i32) {
    %c0_i32 = arith.constant 0 : i32
    %c0_i32_0 = arith.constant 0 : i32
    %c0_i32_1 = arith.constant 0 : i32
    return %c0_i32, %c0_i32_0 : i32, i32
  }
  func.func @transform_5(%arg0: i32) -> (i32, i32) {
    %c0_i32 = arith.constant 0 : i32
    %c0_i32_0 = arith.constant 0 : i32
    %c0_i32_1 = arith.constant 0 : i32
    return %c0_i32, %c0_i32_0 : i32, i32
  }
  func.func @transform_6(%arg0: i32) -> (i32, i32) {
    %c0_i32 = arith.constant 0 : i32
    %c0_i32_0 = arith.constant 0 : i32
    %c0_i32_1 = arith.constant 0 : i32
    return %c0_i32, %c0_i32_0 : i32, i32
  }
  func.func @transform_7(%arg0: i32) -> (i32, i32) {
    %c0_i32 = arith.constant 0 : i32
    %c0_i32_0 = arith.constant 0 : i32
    return %arg0, %c0_i32 : i32, i32
  }
  func.func @transform_8(%arg0: i32) -> (i32, i32, i32) {
    %c0_i32 = arith.constant 0 : i32
    %c0_i32_0 = arith.constant 0 : i32
    %c0_i32_1 = arith.constant 0 : i32
    return %arg0, %c0_i32, %c0_i32_0 : i32, i32, i32
  }
}

module attributes {stable_mosaic.version = 11 : i64} {
  func.func @bn_act_residual_kernel(%arg0: i32, %arg1: memref<32x128xf32, #tpu.memory_space<vmem>>, %arg2: memref<32x128xf32, #tpu.memory_space<vmem>>, %arg3: memref<1x128xf32, #tpu.memory_space<vmem>>, %arg4: memref<1x128xf32, #tpu.memory_space<vmem>>, %arg5: memref<1x128xf32, #tpu.memory_space<vmem>>, %arg6: memref<1x128xf32, #tpu.memory_space<vmem>>, %arg7: memref<32x128xf32, #tpu.memory_space<vmem>>) attributes {dimension_semantics = [#tpu.dimension_semantics<parallel>], iteration_bounds = array<i64: 2>, scalar_prefetch = 0 : i64, scratch_operands = 0 : i64, tpu.core_type = #tpu.core_type<tc>, window_params = [{transform_indices = @transform_0, window_bounds = array<i64: 32, 128>}, {transform_indices = @transform_1, window_bounds = array<i64: 32, 128>}, {pipeline_mode = #tpu.pipeline_mode<synchronous>, transform_indices = @transform_2, window_bounds = array<i64: 1, 128>}, {pipeline_mode = #tpu.pipeline_mode<synchronous>, transform_indices = @transform_3, window_bounds = array<i64: 1, 128>}, {pipeline_mode = #tpu.pipeline_mode<synchronous>, transform_indices = @transform_4, window_bounds = array<i64: 1, 128>}, {pipeline_mode = #tpu.pipeline_mode<synchronous>, transform_indices = @transform_5, window_bounds = array<i64: 1, 128>}, {transform_indices = @transform_6, window_bounds = array<i64: 32, 128>}]} {
    %c0 = arith.constant 0 : index
    %c0_0 = arith.constant 0 : index
    %0 = vector.load %arg1[%c0, %c0_0] : memref<32x128xf32, #tpu.memory_space<vmem>>, vector<32x128xf32>
    %c0_1 = arith.constant 0 : index
    %c0_2 = arith.constant 0 : index
    %1 = vector.load %arg3[%c0_1, %c0_2] : memref<1x128xf32, #tpu.memory_space<vmem>>, vector<1x128xf32>
    %2 = vector.broadcast %1 : vector<1x128xf32> to vector<32x128xf32>
    %3 = arith.mulf %0, %2 : vector<32x128xf32>
    %c0_3 = arith.constant 0 : index
    %c0_4 = arith.constant 0 : index
    %4 = vector.load %arg4[%c0_3, %c0_4] : memref<1x128xf32, #tpu.memory_space<vmem>>, vector<1x128xf32>
    %5 = vector.broadcast %4 : vector<1x128xf32> to vector<32x128xf32>
    %6 = arith.addf %3, %5 : vector<32x128xf32>
    %cst = arith.constant 0.000000e+00 : f32
    %7 = vector.broadcast %cst : f32 to vector<32x128xf32>
    %8 = arith.cmpf oge, %6, %7 : vector<32x128xf32>
    %cst_5 = arith.constant 2.000000e-01 : f32
    %9 = vector.broadcast %cst_5 : f32 to vector<32x128xf32>
    %10 = arith.mulf %9, %6 : vector<32x128xf32>
    %11 = arith.select %8, %6, %10 : vector<32x128xi1>, vector<32x128xf32>
    %c0_6 = arith.constant 0 : index
    %c0_7 = arith.constant 0 : index
    %12 = vector.load %arg2[%c0_6, %c0_7] : memref<32x128xf32, #tpu.memory_space<vmem>>, vector<32x128xf32>
    %c0_8 = arith.constant 0 : index
    %c0_9 = arith.constant 0 : index
    %13 = vector.load %arg5[%c0_8, %c0_9] : memref<1x128xf32, #tpu.memory_space<vmem>>, vector<1x128xf32>
    %14 = vector.broadcast %13 : vector<1x128xf32> to vector<32x128xf32>
    %15 = arith.mulf %12, %14 : vector<32x128xf32>
    %16 = arith.addf %11, %15 : vector<32x128xf32>
    %c0_10 = arith.constant 0 : index
    %c0_11 = arith.constant 0 : index
    %17 = vector.load %arg6[%c0_10, %c0_11] : memref<1x128xf32, #tpu.memory_space<vmem>>, vector<1x128xf32>
    %18 = vector.broadcast %17 : vector<1x128xf32> to vector<32x128xf32>
    %19 = arith.addf %16, %18 : vector<32x128xf32>
    %c0_12 = arith.constant 0 : index
    %c0_13 = arith.constant 0 : index
    %20 = vector.load %arg7[%c0_12, %c0_13] : memref<32x128xf32, #tpu.memory_space<vmem>>, vector<32x128xf32>
    tpu.vector_store %arg7[%c0_12, %c0_13], %19 {strides = array<i32>} : memref<32x128xf32, #tpu.memory_space<vmem>>, vector<32x128xf32>,
    return
  }
  func.func @transform_0(%arg0: i32) -> (i32, i32) {
    %c0_i32 = arith.constant 0 : i32
    %c0_i32_0 = arith.constant 0 : i32
    return %arg0, %c0_i32 : i32, i32
  }
  func.func @transform_1(%arg0: i32) -> (i32, i32) {
    %c0_i32 = arith.constant 0 : i32
    %c0_i32_0 = arith.constant 0 : i32
    return %arg0, %c0_i32 : i32, i32
  }
  func.func @transform_2(%arg0: i32) -> (i32, i32) {
    %c0_i32 = arith.constant 0 : i32
    %c0_i32_0 = arith.constant 0 : i32
    %c0_i32_1 = arith.constant 0 : i32
    return %c0_i32, %c0_i32_0 : i32, i32
  }
  func.func @transform_3(%arg0: i32) -> (i32, i32) {
    %c0_i32 = arith.constant 0 : i32
    %c0_i32_0 = arith.constant 0 : i32
    %c0_i32_1 = arith.constant 0 : i32
    return %c0_i32, %c0_i32_0 : i32, i32
  }
  func.func @transform_4(%arg0: i32) -> (i32, i32) {
    %c0_i32 = arith.constant 0 : i32
    %c0_i32_0 = arith.constant 0 : i32
    %c0_i32_1 = arith.constant 0 : i32
    return %c0_i32, %c0_i32_0 : i32, i32
  }
  func.func @transform_5(%arg0: i32) -> (i32, i32) {
    %c0_i32 = arith.constant 0 : i32
    %c0_i32_0 = arith.constant 0 : i32
    %c0_i32_1 = arith.constant 0 : i32
    return %c0_i32, %c0_i32_0 : i32, i32
  }
  func.func @transform_6(%arg0: i32) -> (i32, i32) {
    %c0_i32 = arith.constant 0 : i32
    %c0_i32_0 = arith.constant 0 : i32
    return %arg0, %c0_i32 : i32, i32
  }
}

</mosaic_0001>

<llo_original>
// kernel: kpconv_res_block.3
$region0: #{kpconv_res_block.3}
  #allocation0 [shape = 'u32[]', space=smem, size = 0x4, offset = 0x4, fixed_abs, tag = 'smem constant byte address 0x4 - core index']
  #allocation1 [shape = 'u32[72,128]{1,0:T(1,128)}', space=vmem, size = 0x9000, scoped, tag = 'internal scratch']
  %s0 = inlined_call_operand.vmem [shape: f32[256,16], index: 0, kind: input, shape index: {}]
  %s1 = inlined_call_operand.vmem [shape: f32[16,40], index: 1, kind: input, shape index: {}]
  %s2 = inlined_call_operand.vmem [shape: f32[256,40], index: 2, kind: output, shape index: {0}]
  %s3 = inlined_call_operand.vmem [shape: f32[2,1,80], index: 3, kind: output, shape index: {1}]
  %4 = xla_tuple %s2, %s3
  %s5 = sld [smem:[#allocation0]]
  $region49: #{kpconv_res_block.3} parent=0
    _
  %s7 = ssub.s32 1, %s5
  %s8 = scalar_select 0, %s7, %s5
  loop: start=0, step=1, limit=4
  $region2: #{kpconv_res_block.3} parent=0 // loop_pre_header
    _
  $region3: #{kpconv_res_block.3} parent=0 // loop_header
    %s10 = sphi 0, %s14
    %p11 = scmp.ge.s32.totalorder %s10, 4
    %s20 = sphi 0, %s22
    %s23 = sphi 0, %s20
    %s24 = sphi 0, %s23
    %s40 = sphi 0, %s24
    %s44 = sphi 0, %s44
    %s46 = sphi 0, %s44
    %s47 = sphi 0, %s46
    %s61 = sphi 0, %s47
    %s67 = sphi 0, %s69
    %s70 = sphi 0, %s67
    %s71 = sphi 0, %s70
    %s87 = sphi 0, %s71
    %s93 = sphi 0, %s95
    %s96 = sphi 0, %s93
    %s97 = sphi 0, %s96
    %s113 = sphi 0, %s97
  $region4: #{kpconv_res_block.3} parent=0 // loop_header_branch
    %13 = sbr.rel (%p11) target = $region8
  $region5: #{kpconv_res_block.3} parent=0 // loop_body
    %s15 = ssub.s32 %s10, 1
    %s16 = ssub.s32 %s10, 2
    %s17 = sadd.s32 %s10, 1
    %s18 = ssub.s32 %s10, %s17
    %p19 = scmp.eq.s32.totalorder %s18, 0
    %s21 = sadd.s32 %s20, 1
    %s22 = scalar_select %p19, %s20, %s21
    %p25 = pneg %p19
    %p26 = scmp.eq.s32.totalorder %s10, 1
    %p27 = por %p25, %p26
    %p28 = scmp.ne.s32.totalorder %s20, %s23
    %p29 = scmp.eq.s32.totalorder %s10, 0
    %p30 = por %p28, %p29
    %p31 = scmp.ne.s32.totalorder %s20, %s23
    %p32 = scmp.eq.s32.totalorder %s15, 1
    %p33 = por %p31, %p32
    %p34 = scmp.ne.s32.totalorder %s23, %s24
    %p35 = scmp.eq.s32.totalorder %s15, 0
    %p36 = por %p34, %p35
    %p37 = scmp.ne.s32.totalorder %s23, %s24
    %p38 = scmp.eq.s32.totalorder %s16, 1
    %p39 = por %p37, %p38
    %p41 = scmp.ne.s32.totalorder %s24, %s40
    %p42 = scmp.eq.s32.totalorder %s16, 0
    %p43 = por %p41, %p42
    %s45 = sadd.s32 %s44, 1
    %p48 = scmp.eq.s32.totalorder %s10, 1
    %p49 = scmp.ne.s32.totalorder %s44, %s46
    %p50 = scmp.eq.s32.totalorder %s10, 0
    %p51 = por %p49, %p50
    %p52 = scmp.ne.s32.totalorder %s44, %s46
    %p53 = scmp.eq.s32.totalorder %s15, 1
    %p54 = por %p52, %p53
    %p55 = scmp.ne.s32.totalorder %s46, %s47
    %p56 = scmp.eq.s32.totalorder %s15, 0
    %p57 = por %p55, %p56
    %p58 = scmp.ne.s32.totalorder %s46, %s47
    %p59 = scmp.eq.s32.totalorder %s16, 1
    %p60 = por %p58, %p59
    %p62 = scmp.ne.s32.totalorder %s47, %s61
    %p63 = scmp.eq.s32.totalorder %s16, 0
    %p64 = por %p62, %p63
    %s65 = ssub.s32 %s10, %s17
    %p66 = scmp.eq.s32.totalorder %s65, 0
    %s68 = sadd.s32 %s67, 1
    %s69 = scalar_select %p66, %s67, %s68
    %p72 = pneg %p66
    %p73 = scmp.eq.s32.totalorder %s10, 1
    %p74 = por %p72, %p73
    %p75 = scmp.ne.s32.totalorder %s67, %s70
    %p76 = scmp.eq.s32.totalorder %s10, 0
    %p77 = por %p75, %p76
    %p78 = scmp.ne.s32.totalorder %s67, %s70
    %p79 = scmp.eq.s32.totalorder %s15, 1
    %p80 = por %p78, %p79
    %p81 = scmp.ne.s32.totalorder %s70, %s71
    %p82 = scmp.eq.s32.totalorder %s15, 0
    %p83 = por %p81, %p82
    %p84 = scmp.ne.s32.totalorder %s70, %s71
    %p85 = scmp.eq.s32.totalorder %s16, 1
    %p86 = por %p84, %p85
    %p88 = scmp.ne.s32.totalorder %s71, %s87
    %p89 = scmp.eq.s32.totalorder %s16, 0
    %p90 = por %p88, %p89
    %s91 = ssub.s32 %s10, %s17
    %p92 = scmp.eq.s32.totalorder %s91, 0
    %s94 = sadd.s32 %s93, 1
    %s95 = scalar_select %p92, %s93, %s94
    %p98 = pneg %p92
    %p99 = scmp.eq.s32.totalorder %s10, 1
    %p100 = por %p98, %p99
    %p101 = scmp.ne.s32.totalorder %s93, %s96
    %p102 = scmp.eq.s32.totalorder %s10, 0
    %p103 = por %p101, %p102
    %p104 = scmp.ne.s32.totalorder %s93, %s96
    %p105 = scmp.eq.s32.totalorder %s15, 1
    %p106 = por %p104, %p105
    %p107 = scmp.ne.s32.totalorder %s96, %s97
    %p108 = scmp.eq.s32.totalorder %s15, 0
    %p109 = por %p107, %p108
    %p110 = scmp.ne.s32.totalorder %s96, %s97
    %p111 = scmp.eq.s32.totalorder %s16, 1
    %p112 = por %p110, %p111
    %p114 = scmp.ne.s32.totalorder %s97, %s113
    %p115 = scmp.eq.s32.totalorder %s16, 0
    %p116 = por %p114, %p115
    %p117 = scmp.le.s32.totalorder 1, %s10
    %p118 = scmp.lt.s32.totalorder %s10, 3
    %p119 = pnand %p117, %p118
    %p120 = pneg %p119
    // Predicated region
    $region9: #{kpconv_res_block.3} parent=5 // pred_check
      _
    $region10: #{kpconv_res_block.3} parent=5 // pred_check_branch
      %122 = sbr.rel (%p119) target = $region12
    $region11: #{kpconv_res_block.3} parent=5 // pred_region
      %s123 = ssub.s32 %s10, 1
      // Predicated region
      $region13: #{kpconv_res_block.3} parent=11 // pred_check
        %p124 = pneg %p57
      $region14: #{kpconv_res_block.3} parent=11 // pred_check_branch
        %126 = sbr.rel (%p124) target = $region16
      $region15: #{kpconv_res_block.3} parent=11 // pred_region
        _
      $region16: #{kpconv_res_block.3} parent=11 // pred_fallthru
        _
    $region12: #{kpconv_res_block.3} parent=5 // pred_fallthru
      _
    %p127 = scmp.lt.s32.totalorder %s10, 2
    // Predicated region
    $region17: #{kpconv_res_block.3} parent=5 // pred_check
      %p128 = pneg %p127
    $region18: #{kpconv_res_block.3} parent=5 // pred_check_branch
      %130 = sbr.rel (%p128) target = $region20
    $region19: #{kpconv_res_block.3} parent=5 // pred_region
      // Predicated region
      $region21: #{kpconv_res_block.3} parent=19 // pred_check
        %p131 = pneg %p30
      $region22: #{kpconv_res_block.3} parent=19 // pred_check_branch
        %133 = sbr.rel (%p131) target = $region24
      $region23: #{kpconv_res_block.3} parent=19 // pred_region
        %s134 = smul.u32 16, %s10
        %p135 = scmp.lt.s32.totalorder %s134, 31
        %s136 = scalar_select %p135, %s134, 31
        %s137 = smul.addr %s136, 8
        %s138 = scalar_lea.vmem %s0, %s137
        %s139 = smul.u32 16, %s10
      $region24: #{kpconv_res_block.3} parent=19 // pred_fallthru
        _
    $region20: #{kpconv_res_block.3} parent=5 // pred_fallthru
      _
    %p140 = scmp.le.s32.totalorder 1, %s10
    %p141 = scmp.lt.s32.totalorder %s10, 3
    %p142 = pnand %p140, %p141
    %p143 = pneg %p142
    // Predicated region
    $region25: #{kpconv_res_block.3} parent=5 // pred_check
      _
    $region26: #{kpconv_res_block.3} parent=5 // pred_check_branch
      %145 = sbr.rel (%p142) target = $region28
    $region27: #{kpconv_res_block.3} parent=5 // pred_region
      %s146 = ssub.s32 %s10, 1
      %s147 = smul.u32 16, %s15
      %p148 = scmp.lt.s32.totalorder %s147, 31
      %s149 = scalar_select %p148, %s147, 31
      %s150 = smul.addr %s149, 8
      %s151 = scalar_lea.vmem %s0, %s150
      %p152 = pneg %p36
      %p153 = pneg %p33
      %p154 = pneg %p57
      %p155 = pneg %p54
      %p156 = pneg %p83
      %p157 = pneg %p80
      %s158 = smul.u32 16, %s15
      %p159 = scmp.lt.s32.totalorder %s158, 31
      %s160 = scalar_select %p159, %s158, 31
      %s161 = smul.addr %s160, 8
      %s162 = scalar_lea.vmem %s2, %s161
      %p163 = pneg %p109
      %p164 = pneg %p106
      %p165 = scmp.lt.s32.totalorder %s15, 1
      %s166 = scalar_select %p165, %s15, 1
      %s167 = scalar_lea.vmem %s3, %s166
      %s168 = smul.u32 16, %s15
      %p169 = scmp.lt.s32.totalorder %s168, 31
      %s170 = scalar_select %p169, %s168, 31
      %s171 = smul.addr %s170, 8
      %s172 = scalar_lea.vmem %s0, %s171
      %s173 = smul.u32 16, %s15
      %s174 = smul.u32 16, %s15
      %p175 = scmp.lt.s32.totalorder %s174, 31
      %s176 = scalar_select %p175, %s174, 31
      %s177 = smul.addr %s176, 8
      %s178 = scalar_lea.vmem %s2, %s177
      %s179 = smul.u32 16, %s15
      %p180 = scmp.lt.s32.totalorder %s15, 1
      %s181 = scalar_select %p180, %s15, 1
      %s182 = scalar_lea.vmem %s3, %s181
      %v183 = vld [vmem:[%s172] sm:$0xff]
      %v184 = vld [vmem:[%s172 + $0x8] sm:$0xff]
      %v185 = vld [vmem:[%s172 + $0x10] sm:$0xff]
      %v186 = vld [vmem:[%s172 + $0x18] sm:$0xff]
      %v187 = vld [vmem:[%s172 + $0x20] sm:$0xff]
      %v188 = vld [vmem:[%s172 + $0x28] sm:$0xff]
      %v189 = vld [vmem:[%s172 + $0x30] sm:$0xff]
      %v190 = vld [vmem:[%s172 + $0x38] sm:$0xff]
      %v191 = vld [vmem:[%s172 + $0x40] sm:$0xff]
      %v192 = vld [vmem:[%s172 + $0x48] sm:$0xff]
      %v193 = vld [vmem:[%s172 + $0x50] sm:$0xff]
      %v194 = vld [vmem:[%s172 + $0x58] sm:$0xff]
      %v195 = vld [vmem:[%s172 + $0x60] sm:$0xff]
      %v196 = vld [vmem:[%s172 + $0x68] sm:$0xff]
      %v197 = vld [vmem:[%s172 + $0x70] sm:$0xff]
      %v198 = vld [vmem:[%s172 + $0x78] sm:$0xff]
      %v199 = vld [vmem:[%s1] sm:$0xff]
      %v200 = vld [vmem:[%s1 + $0x8] sm:$0xff]
      %vm201 = vcmask 130048
      %v203 = vsel %vm201, %v183, 0
      %v206 = vsel %vm201, %v184, 0
      %v209 = vsel %vm201, %v185, 0
      %v212 = vsel %vm201, %v186, 0
      %v215 = vsel %vm201, %v187, 0
      %v218 = vsel %vm201, %v188, 0
      %v221 = vsel %vm201, %v189, 0
      %v224 = vsel %vm201, %v190, 0
      %v227 = vsel %vm201, %v191, 0
      %v230 = vsel %vm201, %v192, 0
      %v233 = vsel %vm201, %v193, 0
      %v236 = vsel %vm201, %v194, 0
      %v239 = vsel %vm201, %v195, 0
      %v242 = vsel %vm201, %v196, 0
      %v245 = vsel %vm201, %v197, 0
      %v248 = vsel %vm201, %v198, 0
      %250 = vmatpush.msra.mxu0 0.0
      %251 = vmatpush.msra.mxu0 0.0
      %252 = vmatpush.msra.mxu0 0.0
      %253 = vmatpush.msra.mxu0 0.0
      %254 = vmatpush.msra.mxu0 0.0
      %255 = vmatpush.msra.mxu0 0.0
      %256 = vmatpush.msra.mxu0 0.0
      %257 = vmatpush.msra.mxu0 0.0
      %258 = vmatpush.msra.mxu0 0.0
      %259 = vmatpush.msra.mxu0 0.0
      %260 = vmatpush.msra.mxu0 0.0
      %261 = vmatpush.msra.mxu0 0.0
      %262 = vmatpush.msra.mxu0 0.0
      %263 = vmatpush.msra.mxu0 0.0
      %264 = vmatpush.msra.mxu0 %v200
      %265 = vmatpush.msra.mxu0 %v199
      %266 = vmatmul.f32.gmra.mxu0 %v203
      %v267 = vpop.f32.mrf.mxu0
      %v268 = vadd.f32 0.0, %v267
      %269 = vmatmul.f32.gmra.mxu0 %v206
      %v270 = vpop.f32.mrf.mxu0
      %v271 = vadd.f32 0.0, %v270
      %272 = vmatmul.f32.gmra.mxu0 %v209
      %v273 = vpop.f32.mrf.mxu0
      %v274 = vadd.f32 0.0, %v273
      %275 = vmatmul.f32.gmra.mxu0 %v212
      %v276 = vpop.f32.mrf.mxu0
      %v277 = vadd.f32 0.0, %v276
      %278 = vmatmul.f32.gmra.mxu0 %v215
      %v279 = vpop.f32.mrf.mxu0
      %v280 = vadd.f32 0.0, %v279
      %281 = vmatmul.f32.gmra.mxu0 %v218
      %v282 = vpop.f32.mrf.mxu0
      %v283 = vadd.f32 0.0, %v282
      %284 = vmatmul.f32.gmra.mxu0 %v221
      %v285 = vpop.f32.mrf.mxu0
      %v286 = vadd.f32 0.0, %v285
      %287 = vmatmul.f32.gmra.mxu0 %v224
      %v288 = vpop.f32.mrf.mxu0
      %v289 = vadd.f32 0.0, %v288
      %290 = vmatmul.f32.gmra.mxu0 %v227
      %v291 = vpop.f32.mrf.mxu0
      %v292 = vadd.f32 0.0, %v291
      %293 = vmatmul.f32.gmra.mxu0 %v230
      %v294 = vpop.f32.mrf.mxu0
      %v295 = vadd.f32 0.0, %v294
      %296 = vmatmul.f32.gmra.mxu0 %v233
      %v297 = vpop.f32.mrf.mxu0
      %v298 = vadd.f32 0.0, %v297
      %299 = vmatmul.f32.gmra.mxu0 %v236
      %v300 = vpop.f32.mrf.mxu0
      %v301 = vadd.f32 0.0, %v300
      %302 = vmatmul.f32.gmra.mxu0 %v239
      %v303 = vpop.f32.mrf.mxu0
      %v304 = vadd.f32 0.0, %v303
      %305 = vmatmul.f32.gmra.mxu0 %v242
      %v306 = vpop.f32.mrf.mxu0
      %v307 = vadd.f32 0.0, %v306
      %308 = vmatmul.f32.gmra.mxu0 %v245
      %v309 = vpop.f32.mrf.mxu0
      %v310 = vadd.f32 0.0, %v309
      %311 = vmatmul.f32.gmra.mxu0 %v248
      %v312 = vpop.f32.mrf.mxu0
      %v313 = vadd.f32 0.0, %v312
      %314 = vdwg.mxu0
      %vm315 = vcmask 326656
      %316 = vst.msk [vmem:[%s178] sm:$0xff] %vm315, %v268
      %317 = vst.msk [vmem:[%s178 + $0x8] sm:$0xff] %vm315, %v271
      %318 = vst.msk [vmem:[%s178 + $0x10] sm:$0xff] %vm315, %v274
      %319 = vst.msk [vmem:[%s178 + $0x18] sm:$0xff] %vm315, %v277
      %320 = vst.msk [vmem:[%s178 + $0x20] sm:$0xff] %vm315, %v280
      %321 = vst.msk [vmem:[%s178 + $0x28] sm:$0xff] %vm315, %v283
      %322 = vst.msk [vmem:[%s178 + $0x30] sm:$0xff] %vm315, %v286
      %323 = vst.msk [vmem:[%s178 + $0x38] sm:$0xff] %vm315, %v289
      %324 = vst.msk [vmem:[%s178 + $0x40] sm:$0xff] %vm315, %v292
      %325 = vst.msk [vmem:[%s178 + $0x48] sm:$0xff] %vm315, %v295
      %326 = vst.msk [vmem:[%s178 + $0x50] sm:$0xff] %vm315, %v298
      %327 = vst.msk [vmem:[%s178 + $0x58] sm:$0xff] %vm315, %v301
      %328 = vst.msk [vmem:[%s178 + $0x60] sm:$0xff] %vm315, %v304
      %329 = vst.msk [vmem:[%s178 + $0x68] sm:$0xff] %vm315, %v307
      %330 = vst.msk [vmem:[%s178 + $0x70] sm:$0xff] %vm315, %v310
      %331 = vst.msk [vmem:[%s178 + $0x78] sm:$0xff] %vm315, %v313
      %v332 = vsel %vm315, %v268, 0.0
      %v333 = vsel %vm315, %v271, 0.0
      %v334 = vadd.f32 %v332, %v333
      %v335 = vsel %vm315, %v274, 0.0
      %v336 = vadd.f32 %v334, %v335
      %v337 = vsel %vm315, %v277, 0.0
      %v338 = vadd.f32 %v336, %v337
      %v339 = vsel %vm315, %v280, 0.0
      %v340 = vadd.f32 %v338, %v339
      %v341 = vsel %vm315, %v283, 0.0
      %v342 = vadd.f32 %v340, %v341
      %v343 = vsel %vm315, %v286, 0.0
      %v344 = vadd.f32 %v342, %v343
      %v345 = vsel %vm315, %v289, 0.0
      %v346 = vadd.f32 %v344, %v345
      %v347 = vsel %vm315, %v292, 0.0
      %v348 = vadd.f32 %v346, %v347
      %v349 = vsel %vm315, %v295, 0.0
      %v350 = vadd.f32 %v348, %v349
      %v351 = vsel %vm315, %v298, 0.0
      %v352 = vadd.f32 %v350, %v351
      %v353 = vsel %vm315, %v301, 0.0
      %v354 = vadd.f32 %v352, %v353
      %v355 = vsel %vm315, %v304, 0.0
      %v356 = vadd.f32 %v354, %v355
      %v357 = vsel %vm315, %v307, 0.0
      %v358 = vadd.f32 %v356, %v357
      %v359 = vsel %vm315, %v310, 0.0
      %v360 = vadd.f32 %v358, %v359
      %v361 = vsel %vm315, %v313, 0.0
      %v362 = vadd.f32 %v360, %v361
      %v363 = vrot.slane %v362, 4
      %v364 = vadd.f32 %v362, %v363
      %v365 = vrot.slane %v364, 2
      %v366 = vadd.f32 %v364, %v365
      %v367 = vrot.slane %v366, 1
      %v368 = vadd.f32 %v366, %v367
      %v369 = vmul.f32 %v268, %v268
      %v370 = vmul.f32 %v271, %v271
      %v371 = vmul.f32 %v274, %v274
      %v372 = vmul.f32 %v277, %v277
      %v373 = vmul.f32 %v280, %v280
      %v374 = vmul.f32 %v283, %v283
      %v375 = vmul.f32 %v286, %v286
      %v376 = vmul.f32 %v289, %v289
      %v377 = vmul.f32 %v292, %v292
      %v378 = vmul.f32 %v295, %v295
      %v379 = vmul.f32 %v298, %v298
      %v380 = vmul.f32 %v301, %v301
      %v381 = vmul.f32 %v304, %v304
      %v382 = vmul.f32 %v307, %v307
      %v383 = vmul.f32 %v310, %v310
      %v384 = vmul.f32 %v313, %v313
      %v385 = vsel %vm315, %v369, 0.0
      %v386 = vsel %vm315, %v370, 0.0
      %v387 = vadd.f32 %v385, %v386
      %v388 = vsel %vm315, %v371, 0.0
      %v389 = vadd.f32 %v387, %v388
      %v390 = vsel %vm315, %v372, 0.0
      %v391 = vadd.f32 %v389, %v390
      %v392 = vsel %vm315, %v373, 0.0
      %v393 = vadd.f32 %v391, %v392
      %v394 = vsel %vm315, %v374, 0.0
      %v395 = vadd.f32 %v393, %v394
      %v396 = vsel %vm315, %v375, 0.0
      %v397 = vadd.f32 %v395, %v396
      %v398 = vsel %vm315, %v376, 0.0
      %v399 = vadd.f32 %v397, %v398
      %v400 = vsel %vm315, %v377, 0.0
      %v401 = vadd.f32 %v399, %v400
      %v402 = vsel %vm315, %v378, 0.0
      %v403 = vadd.f32 %v401, %v402
      %v404 = vsel %vm315, %v379, 0.0
      %v405 = vadd.f32 %v403, %v404
      %v406 = vsel %vm315, %v380, 0.0
      %v407 = vadd.f32 %v405, %v406
      %v408 = vsel %vm315, %v381, 0.0
      %v409 = vadd.f32 %v407, %v408
      %v410 = vsel %vm315, %v382, 0.0
      %v411 = vadd.f32 %v409, %v410
      %v412 = vsel %vm315, %v383, 0.0
      %v413 = vadd.f32 %v411, %v412
      %v414 = vsel %vm315, %v384, 0.0
      %v415 = vadd.f32 %v413, %v414
      %v416 = vrot.slane %v415, 4
      %v417 = vadd.f32 %v415, %v416
      %v418 = vrot.slane %v417, 2
      %v419 = vadd.f32 %v417, %v418
      %v420 = vrot.slane %v419, 1
      %v421 = vadd.f32 %v419, %v420
      %423 = vrot.lane.b32.xlu0 %v421, 40
      %v424 = vpop.permute.xlu0 %423
      %v426 = vsel %vm315, %v368, %v424
      %vm427 = vcmask 647168
      %428 = vst.msk [vmem:[%s182] sm:$0x1] %vm427, %v426
      %s429 = smul.u32 16, %s15
      %p430 = scmp.lt.s32.totalorder %s429, 31
      %s431 = scalar_select %p430, %s429, 31
      %s432 = smul.addr %s431, 8
      %s433 = scalar_lea.vmem %s2, %s432
      %p434 = scmp.lt.s32.totalorder %s15, 1
      %s435 = scalar_select %p434, %s15, 1
      %s436 = scalar_lea.vmem %s3, %s435
      // Predicated region
      $region29: #{kpconv_res_block.3} parent=27 // pred_check
        %p437 = pneg %p80
      $region30: #{kpconv_res_block.3} parent=27 // pred_check_branch
        %439 = sbr.rel (%p437) target = $region32
      $region31: #{kpconv_res_block.3} parent=27 // pred_region
        %s440 = smul.u32 16, %s15
      $region32: #{kpconv_res_block.3} parent=27 // pred_fallthru
        _
      // Predicated region
      $region33: #{kpconv_res_block.3} parent=27 // pred_check
        %p441 = pneg %p106
      $region34: #{kpconv_res_block.3} parent=27 // pred_check_branch
        %443 = sbr.rel (%p441) target = $region36
      $region35: #{kpconv_res_block.3} parent=27 // pred_region
        _
      $region36: #{kpconv_res_block.3} parent=27 // pred_fallthru
        _
    $region28: #{kpconv_res_block.3} parent=5 // pred_fallthru
      _
    %p444 = scmp.le.s32.totalorder 2, %s10
    // Predicated region
    $region37: #{kpconv_res_block.3} parent=5 // pred_check
      %p445 = pneg %p444
    $region38: #{kpconv_res_block.3} parent=5 // pred_check_branch
      %447 = sbr.rel (%p445) target = $region40
    $region39: #{kpconv_res_block.3} parent=5 // pred_region
      %s448 = ssub.s32 %s10, 2
      // Predicated region
      $region41: #{kpconv_res_block.3} parent=39 // pred_check
        %p449 = pneg %p86
      $region42: #{kpconv_res_block.3} parent=39 // pred_check_branch
        %451 = sbr.rel (%p449) target = $region44
      $region43: #{kpconv_res_block.3} parent=39 // pred_region
        %s452 = smul.u32 16, %s16
        %p453 = scmp.lt.s32.totalorder %s452, 31
        %s454 = scalar_select %p453, %s452, 31
        %s455 = smul.addr %s454, 8
        %s456 = scalar_lea.vmem %s2, %s455
      $region44: #{kpconv_res_block.3} parent=39 // pred_fallthru
        _
      // Predicated region
      $region45: #{kpconv_res_block.3} parent=39 // pred_check
        %p457 = pneg %p112
      $region46: #{kpconv_res_block.3} parent=39 // pred_check_branch
        %459 = sbr.rel (%p457) target = $region48
      $region47: #{kpconv_res_block.3} parent=39 // pred_region
        %p460 = scmp.lt.s32.totalorder %s16, 1
        %s461 = scalar_select %p460, %s16, 1
        %s462 = scalar_lea.vmem %s3, %s461
      $region48: #{kpconv_res_block.3} parent=39 // pred_fallthru
        _
    $region40: #{kpconv_res_block.3} parent=5 // pred_fallthru
      _
  $region6: #{kpconv_res_block.3} parent=0 // loop_footer
    %s14 = sadd.s32 1, %s10
  $region7: #{kpconv_res_block.3} parent=0 // loop_footer_branch
    %9 = sbr.rel target = $region3
  $region8: #{kpconv_res_block.3} parent=0 // loop_exit
    _

// kernel: kpconv_res_block.5
$region0: #{kpconv_res_block.5}
  #allocation0 [shape = 'u32[]', space=smem, size = 0x4, offset = 0x4, fixed_abs, tag = 'smem constant byte address 0x4 - core index']
  #allocation1 [shape = 'u32[72,128]{1,0:T(1,128)}', space=vmem, size = 0x9000, scoped, tag = 'internal scratch']
  %s0 = inlined_call_operand.vmem [shape: f32[64,128], index: 0, kind: input, shape index: {}]
  %s1 = inlined_call_operand.vmem [shape: f32[64,128], index: 1, kind: input, shape index: {}]
  %s2 = inlined_call_operand.vmem [shape: f32[1,128], index: 2, kind: input, shape index: {}]
  %s3 = inlined_call_operand.vmem [shape: f32[1,128], index: 3, kind: input, shape index: {}]
  %s4 = inlined_call_operand.vmem [shape: f32[1,128], index: 4, kind: input, shape index: {}]
  %s5 = inlined_call_operand.vmem [shape: f32[1,128], index: 5, kind: input, shape index: {}]
  %s6 = inlined_call_operand.vmem [shape: f32[64,128], index: 6, kind: output, shape index: {}]
  %s7 = sld [smem:[#allocation0]]
  $region57: #{kpconv_res_block.5} parent=0
    _
  %s9 = ssub.s32 1, %s7
  %s10 = scalar_select 0, %s9, %s7
  loop: start=0, step=1, limit=4
  $region2: #{kpconv_res_block.5} parent=0 // loop_pre_header
    _
  $region3: #{kpconv_res_block.5} parent=0 // loop_header
    %s12 = sphi 0, %s16
    %p13 = scmp.ge.s32.totalorder %s12, 4
    %s22 = sphi 0, %s24
    %s25 = sphi 0, %s22
    %s26 = sphi 0, %s25
    %s42 = sphi 0, %s26
    %s48 = sphi 0, %s50
    %s51 = sphi 0, %s48
    %s52 = sphi 0, %s51
    %s68 = sphi 0, %s52
    %s72 = sphi 0, %s72
    %s74 = sphi 0, %s72
    %s75 = sphi 0, %s74
    %s89 = sphi 0, %s75
    %s93 = sphi 0, %s93
    %s95 = sphi 0, %s93
    %s96 = sphi 0, %s95
    %s110 = sphi 0, %s96
    %s114 = sphi 0, %s114
    %s116 = sphi 0, %s114
    %s117 = sphi 0, %s116
    %s131 = sphi 0, %s117
    %s135 = sphi 0, %s135
    %s137 = sphi 0, %s135
    %s138 = sphi 0, %s137
    %s152 = sphi 0, %s138
    %s158 = sphi 0, %s160
    %s161 = sphi 0, %s158
    %s162 = sphi 0, %s161
    %s178 = sphi 0, %s162
  $region4: #{kpconv_res_block.5} parent=0 // loop_header_branch
    %15 = sbr.rel (%p13) target = $region8
  $region5: #{kpconv_res_block.5} parent=0 // loop_body
    %s17 = ssub.s32 %s12, 1
    %s18 = ssub.s32 %s12, 2
    %s19 = sadd.s32 %s12, 1
    %s20 = ssub.s32 %s12, %s19
    %p21 = scmp.eq.s32.totalorder %s20, 0
    %s23 = sadd.s32 %s22, 1
    %s24 = scalar_select %p21, %s22, %s23
    %p27 = pneg %p21
    %p28 = scmp.eq.s32.totalorder %s12, 1
    %p29 = por %p27, %p28
    %p30 = scmp.ne.s32.totalorder %s22, %s25
    %p31 = scmp.eq.s32.totalorder %s12, 0
    %p32 = por %p30, %p31
    %p33 = scmp.ne.s32.totalorder %s22, %s25
    %p34 = scmp.eq.s32.totalorder %s17, 1
    %p35 = por %p33, %p34
    %p36 = scmp.ne.s32.totalorder %s25, %s26
    %p37 = scmp.eq.s32.totalorder %s17, 0
    %p38 = por %p36, %p37
    %p39 = scmp.ne.s32.totalorder %s25, %s26
    %p40 = scmp.eq.s32.totalorder %s18, 1
    %p41 = por %p39, %p40
    %p43 = scmp.ne.s32.totalorder %s26, %s42
    %p44 = scmp.eq.s32.totalorder %s18, 0
    %p45 = por %p43, %p44
    %s46 = ssub.s32 %s12, %s19
    %p47 = scmp.eq.s32.totalorder %s46, 0
    %s49 = sadd.s32 %s48, 1
    %s50 = scalar_select %p47, %s48, %s49
    %p53 = pneg %p47
    %p54 = scmp.eq.s32.totalorder %s12, 1
    %p55 = por %p53, %p54
    %p56 = scmp.ne.s32.totalorder %s48, %s51
    %p57 = scmp.eq.s32.totalorder %s12, 0
    %p58 = por %p56, %p57
    %p59 = scmp.ne.s32.totalorder %s48, %s51
    %p60 = scmp.eq.s32.totalorder %s17, 1
    %p61 = por %p59, %p60
    %p62 = scmp.ne.s32.totalorder %s51, %s52
    %p63 = scmp.eq.s32.totalorder %s17, 0
    %p64 = por %p62, %p63
    %p65 = scmp.ne.s32.totalorder %s51, %s52
    %p66 = scmp.eq.s32.totalorder %s18, 1
    %p67 = por %p65, %p66
    %p69 = scmp.ne.s32.totalorder %s52, %s68
    %p70 = scmp.eq.s32.totalorder %s18, 0
    %p71 = por %p69, %p70
    %s73 = sadd.s32 %s72, 1
    %p76 = scmp.eq.s32.totalorder %s12, 1
    %p77 = scmp.ne.s32.totalorder %s72, %s74
    %p78 = scmp.eq.s32.totalorder %s12, 0
    %p79 = por %p77, %p78
    %p80 = scmp.ne.s32.totalorder %s72, %s74
    %p81 = scmp.eq.s32.totalorder %s17, 1
    %p82 = por %p80, %p81
    %p83 = scmp.ne.s32.totalorder %s74, %s75
    %p84 = scmp.eq.s32.totalorder %s17, 0
    %p85 = por %p83, %p84
    %p86 = scmp.ne.s32.totalorder %s74, %s75
    %p87 = scmp.eq.s32.totalorder %s18, 1
    %p88 = por %p86, %p87
    %p90 = scmp.ne.s32.totalorder %s75, %s89
    %p91 = scmp.eq.s32.totalorder %s18, 0
    %p92 = por %p90, %p91
    %s94 = sadd.s32 %s93, 1
    %p97 = scmp.eq.s32.totalorder %s12, 1
    %p98 = scmp.ne.s32.totalorder %s93, %s95
    %p99 = scmp.eq.s32.totalorder %s12, 0
    %p100 = por %p98, %p99
    %p101 = scmp.ne.s32.totalorder %s93, %s95
    %p102 = scmp.eq.s32.totalorder %s17, 1
    %p103 = por %p101, %p102
    %p104 = scmp.ne.s32.totalorder %s95, %s96
    %p105 = scmp.eq.s32.totalorder %s17, 0
    %p106 = por %p104, %p105
    %p107 = scmp.ne.s32.totalorder %s95, %s96
    %p108 = scmp.eq.s32.totalorder %s18, 1
    %p109 = por %p107, %p108
    %p111 = scmp.ne.s32.totalorder %s96, %s110
    %p112 = scmp.eq.s32.totalorder %s18, 0
    %p113 = por %p111, %p112
    %s115 = sadd.s32 %s114, 1
    %p118 = scmp.eq.s32.totalorder %s12, 1
    %p119 = scmp.ne.s32.totalorder %s114, %s116
    %p120 = scmp.eq.s32.totalorder %s12, 0
    %p121 = por %p119, %p120
    %p122 = scmp.ne.s32.totalorder %s114, %s116
    %p123 = scmp.eq.s32.totalorder %s17, 1
    %p124 = por %p122, %p123
    %p125 = scmp.ne.s32.totalorder %s116, %s117
    %p126 = scmp.eq.s32.totalorder %s17, 0
    %p127 = por %p125, %p126
    %p128 = scmp.ne.s32.totalorder %s116, %s117
    %p129 = scmp.eq.s32.totalorder %s18, 1
    %p130 = por %p128, %p129
    %p132 = scmp.ne.s32.totalorder %s117, %s131
    %p133 = scmp.eq.s32.totalorder %s18, 0
    %p134 = por %p132, %p133
    %s136 = sadd.s32 %s135, 1
    %p139 = scmp.eq.s32.totalorder %s12, 1
    %p140 = scmp.ne.s32.totalorder %s135, %s137
    %p141 = scmp.eq.s32.totalorder %s12, 0
    %p142 = por %p140, %p141
    %p143 = scmp.ne.s32.totalorder %s135, %s137
    %p144 = scmp.eq.s32.totalorder %s17, 1
    %p145 = por %p143, %p144
    %p146 = scmp.ne.s32.totalorder %s137, %s138
    %p147 = scmp.eq.s32.totalorder %s17, 0
    %p148 = por %p146, %p147
    %p149 = scmp.ne.s32.totalorder %s137, %s138
    %p150 = scmp.eq.s32.totalorder %s18, 1
    %p151 = por %p149, %p150
    %p153 = scmp.ne.s32.totalorder %s138, %s152
    %p154 = scmp.eq.s32.totalorder %s18, 0
    %p155 = por %p153, %p154
    %s156 = ssub.s32 %s12, %s19
    %p157 = scmp.eq.s32.totalorder %s156, 0
    %s159 = sadd.s32 %s158, 1
    %s160 = scalar_select %p157, %s158, %s159
    %p163 = pneg %p157
    %p164 = scmp.eq.s32.totalorder %s12, 1
    %p165 = por %p163, %p164
    %p166 = scmp.ne.s32.totalorder %s158, %s161
    %p167 = scmp.eq.s32.totalorder %s12, 0
    %p168 = por %p166, %p167
    %p169 = scmp.ne.s32.totalorder %s158, %s161
    %p170 = scmp.eq.s32.totalorder %s17, 1
    %p171 = por %p169, %p170
    %p172 = scmp.ne.s32.totalorder %s161, %s162
    %p173 = scmp.eq.s32.totalorder %s17, 0
    %p174 = por %p172, %p173
    %p175 = scmp.ne.s32.totalorder %s161, %s162
    %p176 = scmp.eq.s32.totalorder %s18, 1
    %p177 = por %p175, %p176
    %p179 = scmp.ne.s32.totalorder %s162, %s178
    %p180 = scmp.eq.s32.totalorder %s18, 0
    %p181 = por %p179, %p180
    %p182 = scmp.le.s32.totalorder 1, %s12
    %p183 = scmp.lt.s32.totalorder %s12, 3
    %p184 = pnand %p182, %p183
    %p185 = pneg %p184
    // Predicated region
    $region9: #{kpconv_res_block.5} parent=5 // pred_check
      _
    $region10: #{kpconv_res_block.5} parent=5 // pred_check_branch
      %187 = sbr.rel (%p184) target = $region12
    $region11: #{kpconv_res_block.5} parent=5 // pred_region
      %s188 = ssub.s32 %s12, 1
      // Predicated region
      $region13: #{kpconv_res_block.5} parent=11 // pred_check
        %p189 = pneg %p85
      $region14: #{kpconv_res_block.5} parent=11 // pred_check_branch
        %191 = sbr.rel (%p189) target = $region16
      $region15: #{kpconv_res_block.5} parent=11 // pred_region
        _
      $region16: #{kpconv_res_block.5} parent=11 // pred_fallthru
        _
      // Predicated region
      $region17: #{kpconv_res_block.5} parent=11 // pred_check
        %p192 = pneg %p106
      $region18: #{kpconv_res_block.5} parent=11 // pred_check_branch
        %194 = sbr.rel (%p192) target = $region20
      $region19: #{kpconv_res_block.5} parent=11 // pred_region
        _
      $region20: #{kpconv_res_block.5} parent=11 // pred_fallthru
        _
      // Predicated region
      $region21: #{kpconv_res_block.5} parent=11 // pred_check
        %p195 = pneg %p127
      $region22: #{kpconv_res_block.5} parent=11 // pred_check_branch
        %197 = sbr.rel (%p195) target = $region24
      $region23: #{kpconv_res_block.5} parent=11 // pred_region
        _
      $region24: #{kpconv_res_block.5} parent=11 // pred_fallthru
        _
      // Predicated region
      $region25: #{kpconv_res_block.5} parent=11 // pred_check
        %p198 = pneg %p148
      $region26: #{kpconv_res_block.5} parent=11 // pred_check_branch
        %200 = sbr.rel (%p198) target = $region28
      $region27: #{kpconv_res_block.5} parent=11 // pred_region
        _
      $region28: #{kpconv_res_block.5} parent=11 // pred_fallthru
        _
    $region12: #{kpconv_res_block.5} parent=5 // pred_fallthru
      _
    %p201 = scmp.lt.s32.totalorder %s12, 2
    // Predicated region
    $region29: #{kpconv_res_block.5} parent=5 // pred_check
      %p202 = pneg %p201
    $region30: #{kpconv_res_block.5} parent=5 // pred_check_branch
      %204 = sbr.rel (%p202) target = $region32
    $region31: #{kpconv_res_block.5} parent=5 // pred_region
      // Predicated region
      $region33: #{kpconv_res_block.5} parent=31 // pred_check
        %p205 = pneg %p32
      $region34: #{kpconv_res_block.5} parent=31 // pred_check_branch
        %207 = sbr.rel (%p205) target = $region36
      $region35: #{kpconv_res_block.5} parent=31 // pred_region
        %s208 = smul.u32 4, %s12
        %p209 = scmp.lt.s32.totalorder %s208, 7
        %s210 = scalar_select %p209, %s208, 7
        %s211 = smul.addr %s210, 8
        %s212 = scalar_lea.vmem %s0, %s211
        %s213 = smul.u32 4, %s12
      $region36: #{kpconv_res_block.5} parent=31 // pred_fallthru
        _
      // Predicated region
      $region37: #{kpconv_res_block.5} parent=31 // pred_check
        %p214 = pneg %p58
      $region38: #{kpconv_res_block.5} parent=31 // pred_check_branch
        %216 = sbr.rel (%p214) target = $region40
      $region39: #{kpconv_res_block.5} parent=31 // pred_region
        %s217 = smul.u32 4, %s12
        %p218 = scmp.lt.s32.totalorder %s217, 7
        %s219 = scalar_select %p218, %s217, 7
        %s220 = smul.addr %s219, 8
        %s221 = scalar_lea.vmem %s1, %s220
        %s222 = smul.u32 4, %s12
      $region40: #{kpconv_res_block.5} parent=31 // pred_fallthru
        _
    $region32: #{kpconv_res_block.5} parent=5 // pred_fallthru
      _
    %p223 = scmp.le.s32.totalorder 1, %s12
    %p224 = scmp.lt.s32.totalorder %s12, 3
    %p225 = pnand %p223, %p224
    %p226 = pneg %p225
    // Predicated region
    $region41: #{kpconv_res_block.5} parent=5 // pred_check
      _
    $region42: #{kpconv_res_block.5} parent=5 // pred_check_branch
      %228 = sbr.rel (%p225) target = $region44
    $region43: #{kpconv_res_block.5} parent=5 // pred_region
      %s229 = ssub.s32 %s12, 1
      %s230 = smul.u32 4, %s17
      %p231 = scmp.lt.s32.totalorder %s230, 7
      %s232 = scalar_select %p231, %s230, 7
      %s233 = smul.addr %s232, 8
      %s234 = scalar_lea.vmem %s0, %s233
      %p235 = pneg %p38
      %p236 = pneg %p35
      %s237 = smul.u32 4, %s17
      %p238 = scmp.lt.s32.totalorder %s237, 7
      %s239 = scalar_select %p238, %s237, 7
      %s240 = smul.addr %s239, 8
      %s241 = scalar_lea.vmem %s1, %s240
      %p242 = pneg %p64
      %p243 = pneg %p61
      %p244 = pneg %p85
      %p245 = pneg %p82
      %p246 = pneg %p106
      %p247 = pneg %p103
      %p248 = pneg %p127
      %p249 = pneg %p124
      %p250 = pneg %p148
      %p251 = pneg %p145
      %p252 = pneg %p174
      %p253 = pneg %p171
      %s254 = smul.u32 4, %s17
      %p255 = scmp.lt.s32.totalorder %s254, 7
      %s256 = scalar_select %p255, %s254, 7
      %s257 = smul.addr %s256, 8
      %s258 = scalar_lea.vmem %s6, %s257
      %s259 = smul.u32 4, %s17
      %p260 = scmp.lt.s32.totalorder %s259, 7
      %s261 = scalar_select %p260, %s259, 7
      %s262 = smul.addr %s261, 8
      %s263 = scalar_lea.vmem %s0, %s262
      %s264 = smul.u32 4, %s17
      %s265 = smul.u32 4, %s17
      %p266 = scmp.lt.s32.totalorder %s265, 7
      %s267 = scalar_select %p266, %s265, 7
      %s268 = smul.addr %s267, 8
      %s269 = scalar_lea.vmem %s1, %s268
      %s270 = smul.u32 4, %s17
      %s271 = smul.u32 4, %s17
      %p272 = scmp.lt.s32.totalorder %s271, 7
      %s273 = scalar_select %p272, %s271, 7
      %s274 = smul.addr %s273, 8
      %s275 = scalar_lea.vmem %s6, %s274
      %s276 = smul.u32 4, %s17
      %v277 = vld [vmem:[%s263] sm:$0xff]
      %v278 = vld [vmem:[%s263 + $0x8] sm:$0xff]
      %v279 = vld [vmem:[%s263 + $0x10] sm:$0xff]
      %v280 = vld [vmem:[%s263 + $0x18] sm:$0xff]
      %v281 = vld [vmem:[%s2] sm:$0x1]
      %v283 = vperm.slane %v281, 0
      %v285 = vmul.f32 %v277, %v283
      %v286 = vmul.f32 %v278, %v283
      %v287 = vmul.f32 %v279, %v283
      %v288 = vmul.f32 %v280, %v283
      %v289 = vld [vmem:[%s3] sm:$0x1]
      %v291 = vperm.slane %v289, 0
      %v293 = vadd.f32 %v285, %v291
      %v294 = vadd.f32 %v286, %v291
      %v295 = vadd.f32 %v287, %v291
      %v296 = vadd.f32 %v288, %v291
      %vm297 = vcmp.ge.f32.partialorder %v293, 0.0
      %vm298 = vcmp.ge.f32.partialorder %v294, 0.0
      %vm299 = vcmp.ge.f32.partialorder %v295, 0.0
      %vm300 = vcmp.ge.f32.partialorder %v296, 0.0
      %v301 = vmul.f32 %v293, 0.2
      %v302 = vmul.f32 %v294, 0.2
      %v303 = vmul.f32 %v295, 0.2
      %v304 = vmul.f32 %v296, 0.2
      %v305 = vsel %vm297, %v293, %v301
      %v306 = vsel %vm298, %v294, %v302
      %v307 = vsel %vm299, %v295, %v303
      %v308 = vsel %vm300, %v296, %v304
      %v309 = vld [vmem:[%s269] sm:$0xff]
      %v310 = vld [vmem:[%s269 + $0x8] sm:$0xff]
      %v311 = vld [vmem:[%s269 + $0x10] sm:$0xff]
      %v312 = vld [vmem:[%s269 + $0x18] sm:$0xff]
      %v313 = vld [vmem:[%s4] sm:$0x1]
      %v315 = vperm.slane %v313, 0
      %v317 = vmul.f32 %v309, %v315
      %v318 = vmul.f32 %v310, %v315
      %v319 = vmul.f32 %v311, %v315
      %v320 = vmul.f32 %v312, %v315
      %v321 = vadd.f32 %v305, %v317
      %v322 = vadd.f32 %v306, %v318
      %v323 = vadd.f32 %v307, %v319
      %v324 = vadd.f32 %v308, %v320
      %v325 = vld [vmem:[%s5] sm:$0x1]
      %v327 = vperm.slane %v325, 0
      %v329 = vadd.f32 %v321, %v327
      %v330 = vadd.f32 %v322, %v327
      %v331 = vadd.f32 %v323, %v327
      %v332 = vadd.f32 %v324, %v327
      %333 = vst [vmem:[%s275] sm:$0xff] %v329
      %334 = vst [vmem:[%s275 + $0x8] sm:$0xff] %v330
      %335 = vst [vmem:[%s275 + $0x10] sm:$0xff] %v331
      %336 = vst [vmem:[%s275 + $0x18] sm:$0xff] %v332
      %s337 = smul.u32 4, %s17
      %p338 = scmp.lt.s32.totalorder %s337, 7
      %s339 = scalar_select %p338, %s337, 7
      %s340 = smul.addr %s339, 8
      %s341 = scalar_lea.vmem %s6, %s340
      // Predicated region
      $region45: #{kpconv_res_block.5} parent=43 // pred_check
        %p342 = pneg %p171
      $region46: #{kpconv_res_block.5} parent=43 // pred_check_branch
        %344 = sbr.rel (%p342) target = $region48
      $region47: #{kpconv_res_block.5} parent=43 // pred_region
        %s345 = smul.u32 4, %s17
      $region48: #{kpconv_res_block.5} parent=43 // pred_fallthru
        _
    $region44: #{kpconv_res_block.5} parent=5 // pred_fallthru
      _
    %p346 = scmp.le.s32.totalorder 2, %s12
    // Predicated region
    $region49: #{kpconv_res_block.5} parent=5 // pred_check
      %p347 = pneg %p346
    $region50: #{kpconv_res_block.5} parent=5 // pred_check_branch
      %349 = sbr.rel (%p347) target = $region52
    $region51: #{kpconv_res_block.5} parent=5 // pred_region
      %s350 = ssub.s32 %s12, 2
      // Predicated region
      $region53: #{kpconv_res_block.5} parent=51 // pred_check
        %p351 = pneg %p177
      $region54: #{kpconv_res_block.5} parent=51 // pred_check_branch
        %353 = sbr.rel (%p351) target = $region56
      $region55: #{kpconv_res_block.5} parent=51 // pred_region
        %s354 = smul.u32 4, %s18
        %p355 = scmp.lt.s32.totalorder %s354, 7
        %s356 = scalar_select %p355, %s354, 7
        %s357 = smul.addr %s356, 8
        %s358 = scalar_lea.vmem %s6, %s357
      $region56: #{kpconv_res_block.5} parent=51 // pred_fallthru
        _
    $region52: #{kpconv_res_block.5} parent=5 // pred_fallthru
      _
  $region6: #{kpconv_res_block.5} parent=0 // loop_footer
    %s16 = sadd.s32 1, %s12
  $region7: #{kpconv_res_block.5} parent=0 // loop_footer_branch
    %11 = sbr.rel target = $region3
  $region8: #{kpconv_res_block.5} parent=0 // loop_exit
    _

// kernel: kpconv_res_block.4
$region0: #{kpconv_res_block.4}
  #allocation0 [shape = 'u32[]', space=smem, size = 0x4, offset = 0x4, fixed_abs, tag = 'smem constant byte address 0x4 - core index']
  #allocation1 [shape = 'u32[72,128]{1,0:T(1,128)}', space=vmem, size = 0x9000, scoped, tag = 'internal scratch']
  %s0 = inlined_call_operand.vmem [shape: f32[256,49], index: 0, kind: input, shape index: {}]
  %s1 = inlined_call_operand.vmem [shape: f32[256,64], index: 1, kind: input, shape index: {}]
  %s2 = inlined_call_operand.vmem [shape: f32[49,120], index: 2, kind: input, shape index: {}]
  %s3 = inlined_call_operand.vmem [shape: f32[1,64], index: 3, kind: input, shape index: {}]
  %s4 = inlined_call_operand.vmem [shape: f32[1,64], index: 4, kind: input, shape index: {}]
  %s5 = inlined_call_operand.vmem [shape: bf16[120,960], index: 5, kind: input, shape index: {}]
  %s6 = inlined_call_operand.vmem [shape: bf16[960,32], index: 6, kind: input, shape index: {}]
  %s7 = inlined_call_operand.vmem [shape: f32[256,32], index: 7, kind: output, shape index: {0}]
  %s8 = inlined_call_operand.vmem [shape: f32[2,1,64], index: 8, kind: output, shape index: {1}]
  %9 = xla_tuple %s7, %s8
  %s10 = sld [smem:[#allocation0]]
  $region69: #{kpconv_res_block.4} parent=0
    _
  %s12 = ssub.s32 1, %s10
  %s13 = scalar_select 0, %s12, %s10
  loop: start=0, step=1, limit=4
  $region2: #{kpconv_res_block.4} parent=0 // loop_pre_header
    _
  $region3: #{kpconv_res_block.4} parent=0 // loop_header
    %s15 = sphi 0, %s19
    %p16 = scmp.ge.s32.totalorder %s15, 4
    %s25 = sphi 0, %s27
    %s28 = sphi 0, %s25
    %s29 = sphi 0, %s28
    %s45 = sphi 0, %s29
    %s51 = sphi 0, %s53
    %s54 = sphi 0, %s51
    %s55 = sphi 0, %s54
    %s71 = sphi 0, %s55
    %s75 = sphi 0, %s75
    %s77 = sphi 0, %s75
    %s78 = sphi 0, %s77
    %s92 = sphi 0, %s78
    %s96 = sphi 0, %s96
    %s98 = sphi 0, %s96
    %s99 = sphi 0, %s98
    %s113 = sphi 0, %s99
    %s117 = sphi 0, %s117
    %s119 = sphi 0, %s117
    %s120 = sphi 0, %s119
    %s134 = sphi 0, %s120
    %s138 = sphi 0, %s138
    %s140 = sphi 0, %s138
    %s141 = sphi 0, %s140
    %s155 = sphi 0, %s141
    %s159 = sphi 0, %s159
    %s161 = sphi 0, %s159
    %s162 = sphi 0, %s161
    %s176 = sphi 0, %s162
    %s182 = sphi 0, %s184
    %s185 = sphi 0, %s182
    %s186 = sphi 0, %s185
    %s202 = sphi 0, %s186
    %s208 = sphi 0, %s210
    %s211 = sphi 0, %s208
    %s212 = sphi 0, %s211
    %s228 = sphi 0, %s212
  $region4: #{kpconv_res_block.4} parent=0 // loop_header_branch
    %18 = sbr.rel (%p16) target = $region8
  $region5: #{kpconv_res_block.4} parent=0 // loop_body
    %s20 = ssub.s32 %s15, 1
    %s21 = ssub.s32 %s15, 2
    %s22 = sadd.s32 %s15, 1
    %s23 = ssub.s32 %s15, %s22
    %p24 = scmp.eq.s32.totalorder %s23, 0
    %s26 = sadd.s32 %s25, 1
    %s27 = scalar_select %p24, %s25, %s26
    %p30 = pneg %p24
    %p31 = scmp.eq.s32.totalorder %s15, 1
    %p32 = por %p30, %p31
    %p33 = scmp.ne.s32.totalorder %s25, %s28
    %p34 = scmp.eq.s32.totalorder %s15, 0
    %p35 = por %p33, %p34
    %p36 = scmp.ne.s32.totalorder %s25, %s28
    %p37 = scmp.eq.s32.totalorder %s20, 1
    %p38 = por %p36, %p37
    %p39 = scmp.ne.s32.totalorder %s28, %s29
    %p40 = scmp.eq.s32.totalorder %s20, 0
    %p41 = por %p39, %p40
    %p42 = scmp.ne.s32.totalorder %s28, %s29
    %p43 = scmp.eq.s32.totalorder %s21, 1
    %p44 = por %p42, %p43
    %p46 = scmp.ne.s32.totalorder %s29, %s45
    %p47 = scmp.eq.s32.totalorder %s21, 0
    %p48 = por %p46, %p47
    %s49 = ssub.s32 %s15, %s22
    %p50 = scmp.eq.s32.totalorder %s49, 0
    %s52 = sadd.s32 %s51, 1
    %s53 = scalar_select %p50, %s51, %s52
    %p56 = pneg %p50
    %p57 = scmp.eq.s32.totalorder %s15, 1
    %p58 = por %p56, %p57
    %p59 = scmp.ne.s32.totalorder %s51, %s54
    %p60 = scmp.eq.s32.totalorder %s15, 0
    %p61 = por %p59, %p60
    %p62 = scmp.ne.s32.totalorder %s51, %s54
    %p63 = scmp.eq.s32.totalorder %s20, 1
    %p64 = por %p62, %p63
    %p65 = scmp.ne.s32.totalorder %s54, %s55
    %p66 = scmp.eq.s32.totalorder %s20, 0
    %p67 = por %p65, %p66
    %p68 = scmp.ne.s32.totalorder %s54, %s55
    %p69 = scmp.eq.s32.totalorder %s21, 1
    %p70 = por %p68, %p69
    %p72 = scmp.ne.s32.totalorder %s55, %s71
    %p73 = scmp.eq.s32.totalorder %s21, 0
    %p74 = por %p72, %p73
    %s76 = sadd.s32 %s75, 1
    %p79 = scmp.eq.s32.totalorder %s15, 1
    %p80 = scmp.ne.s32.totalorder %s75, %s77
    %p81 = scmp.eq.s32.totalorder %s15, 0
    %p82 = por %p80, %p81
    %p83 = scmp.ne.s32.totalorder %s75, %s77
    %p84 = scmp.eq.s32.totalorder %s20, 1
    %p85 = por %p83, %p84
    %p86 = scmp.ne.s32.totalorder %s77, %s78
    %p87 = scmp.eq.s32.totalorder %s20, 0
    %p88 = por %p86, %p87
    %p89 = scmp.ne.s32.totalorder %s77, %s78
    %p90 = scmp.eq.s32.totalorder %s21, 1
    %p91 = por %p89, %p90
    %p93 = scmp.ne.s32.totalorder %s78, %s92
    %p94 = scmp.eq.s32.totalorder %s21, 0
    %p95 = por %p93, %p94
    %s97 = sadd.s32 %s96, 1
    %p100 = scmp.eq.s32.totalorder %s15, 1
    %p101 = scmp.ne.s32.totalorder %s96, %s98
    %p102 = scmp.eq.s32.totalorder %s15, 0
    %p103 = por %p101, %p102
    %p104 = scmp.ne.s32.totalorder %s96, %s98
    %p105 = scmp.eq.s32.totalorder %s20, 1
    %p106 = por %p104, %p105
    %p107 = scmp.ne.s32.totalorder %s98, %s99
    %p108 = scmp.eq.s32.totalorder %s20, 0
    %p109 = por %p107, %p108
    %p110 = scmp.ne.s32.totalorder %s98, %s99
    %p111 = scmp.eq.s32.totalorder %s21, 1
    %p112 = por %p110, %p111
    %p114 = scmp.ne.s32.totalorder %s99, %s113
    %p115 = scmp.eq.s32.totalorder %s21, 0
    %p116 = por %p114, %p115
    %s118 = sadd.s32 %s117, 1
    %p121 = scmp.eq.s32.totalorder %s15, 1
    %p122 = scmp.ne.s32.totalorder %s117, %s119
    %p123 = scmp.eq.s32.totalorder %s15, 0
    %p124 = por %p122, %p123
    %p125 = scmp.ne.s32.totalorder %s117, %s119
    %p126 = scmp.eq.s32.totalorder %s20, 1
    %p127 = por %p125, %p126
    %p128 = scmp.ne.s32.totalorder %s119, %s120
    %p129 = scmp.eq.s32.totalorder %s20, 0
    %p130 = por %p128, %p129
    %p131 = scmp.ne.s32.totalorder %s119, %s120
    %p132 = scmp.eq.s32.totalorder %s21, 1
    %p133 = por %p131, %p132
    %p135 = scmp.ne.s32.totalorder %s120, %s134
    %p136 = scmp.eq.s32.totalorder %s21, 0
    %p137 = por %p135, %p136
    %s139 = sadd.s32 %s138, 1
    %p142 = scmp.eq.s32.totalorder %s15, 1
    %p143 = scmp.ne.s32.totalorder %s138, %s140
    %p144 = scmp.eq.s32.totalorder %s15, 0
    %p145 = por %p143, %p144
    %p146 = scmp.ne.s32.totalorder %s138, %s140
    %p147 = scmp.eq.s32.totalorder %s20, 1
    %p148 = por %p146, %p147
    %p149 = scmp.ne.s32.totalorder %s140, %s141
    %p150 = scmp.eq.s32.totalorder %s20, 0
    %p151 = por %p149, %p150
    %p152 = scmp.ne.s32.totalorder %s140, %s141
    %p153 = scmp.eq.s32.totalorder %s21, 1
    %p154 = por %p152, %p153
    %p156 = scmp.ne.s32.totalorder %s141, %s155
    %p157 = scmp.eq.s32.totalorder %s21, 0
    %p158 = por %p156, %p157
    %s160 = sadd.s32 %s159, 1
    %p163 = scmp.eq.s32.totalorder %s15, 1
    %p164 = scmp.ne.s32.totalorder %s159, %s161
    %p165 = scmp.eq.s32.totalorder %s15, 0
    %p166 = por %p164, %p165
    %p167 = scmp.ne.s32.totalorder %s159, %s161
    %p168 = scmp.eq.s32.totalorder %s20, 1
    %p169 = por %p167, %p168
    %p170 = scmp.ne.s32.totalorder %s161, %s162
    %p171 = scmp.eq.s32.totalorder %s20, 0
    %p172 = por %p170, %p171
    %p173 = scmp.ne.s32.totalorder %s161, %s162
    %p174 = scmp.eq.s32.totalorder %s21, 1
    %p175 = por %p173, %p174
    %p177 = scmp.ne.s32.totalorder %s162, %s176
    %p178 = scmp.eq.s32.totalorder %s21, 0
    %p179 = por %p177, %p178
    %s180 = ssub.s32 %s15, %s22
    %p181 = scmp.eq.s32.totalorder %s180, 0
    %s183 = sadd.s32 %s182, 1
    %s184 = scalar_select %p181, %s182, %s183
    %p187 = pneg %p181
    %p188 = scmp.eq.s32.totalorder %s15, 1
    %p189 = por %p187, %p188
    %p190 = scmp.ne.s32.totalorder %s182, %s185
    %p191 = scmp.eq.s32.totalorder %s15, 0
    %p192 = por %p190, %p191
    %p193 = scmp.ne.s32.totalorder %s182, %s185
    %p194 = scmp.eq.s32.totalorder %s20, 1
    %p195 = por %p193, %p194
    %p196 = scmp.ne.s32.totalorder %s185, %s186
    %p197 = scmp.eq.s32.totalorder %s20, 0
    %p198 = por %p196, %p197
    %p199 = scmp.ne.s32.totalorder %s185, %s186
    %p200 = scmp.eq.s32.totalorder %s21, 1
    %p201 = por %p199, %p200
    %p203 = scmp.ne.s32.totalorder %s186, %s202
    %p204 = scmp.eq.s32.totalorder %s21, 0
    %p205 = por %p203, %p204
    %s206 = ssub.s32 %s15, %s22
    %p207 = scmp.eq.s32.totalorder %s206, 0
    %s209 = sadd.s32 %s208, 1
    %s210 = scalar_select %p207, %s208, %s209
    %p213 = pneg %p207
    %p214 = scmp.eq.s32.totalorder %s15, 1
    %p215 = por %p213, %p214
    %p216 = scmp.ne.s32.totalorder %s208, %s211
    %p217 = scmp.eq.s32.totalorder %s15, 0
    %p218 = por %p216, %p217
    %p219 = scmp.ne.s32.totalorder %s208, %s211
    %p220 = scmp.eq.s32.totalorder %s20, 1
    %p221 = por %p219, %p220
    %p222 = scmp.ne.s32.totalorder %s211, %s212
    %p223 = scmp.eq.s32.totalorder %s20, 0
    %p224 = por %p222, %p223
    %p225 = scmp.ne.s32.totalorder %s211, %s212
    %p226 = scmp.eq.s32.totalorder %s21, 1
    %p227 = por %p225, %p226
    %p229 = scmp.ne.s32.totalorder %s212, %s228
    %p230 = scmp.eq.s32.totalorder %s21, 0
    %p231 = por %p229, %p230
    %p232 = scmp.le.s32.totalorder 1, %s15
    %p233 = scmp.lt.s32.totalorder %s15, 3
    %p234 = pnand %p232, %p233
    %p235 = pneg %p234
    // Predicated region
    $region9: #{kpconv_res_block.4} parent=5 // pred_check
      _
    $region10: #{kpconv_res_block.4} parent=5 // pred_check_branch
      %237 = sbr.rel (%p234) target = $region12
    $region11: #{kpconv_res_block.4} parent=5 // pred_region
      %s238 = ssub.s32 %s15, 1
      // Predicated region
      $region13: #{kpconv_res_block.4} parent=11 // pred_check
        %p239 = pneg %p88
      $region14: #{kpconv_res_block.4} parent=11 // pred_check_branch
        %241 = sbr.rel (%p239) target = $region16
      $region15: #{kpconv_res_block.4} parent=11 // pred_region
        _
      $region16: #{kpconv_res_block.4} parent=11 // pred_fallthru
        _
      // Predicated region
      $region17: #{kpconv_res_block.4} parent=11 // pred_check
        %p242 = pneg %p109
      $region18: #{kpconv_res_block.4} parent=11 // pred_check_branch
        %244 = sbr.rel (%p242) target = $region20
      $region19: #{kpconv_res_block.4} parent=11 // pred_region
        _
      $region20: #{kpconv_res_block.4} parent=11 // pred_fallthru
        _
      // Predicated region
      $region21: #{kpconv_res_block.4} parent=11 // pred_check
        %p245 = pneg %p130
      $region22: #{kpconv_res_block.4} parent=11 // pred_check_branch
        %247 = sbr.rel (%p245) target = $region24
      $region23: #{kpconv_res_block.4} parent=11 // pred_region
        _
      $region24: #{kpconv_res_block.4} parent=11 // pred_fallthru
        _
      // Predicated region
      $region25: #{kpconv_res_block.4} parent=11 // pred_check
        %p248 = pneg %p151
      $region26: #{kpconv_res_block.4} parent=11 // pred_check_branch
        %250 = sbr.rel (%p248) target = $region28
      $region27: #{kpconv_res_block.4} parent=11 // pred_region
        _
      $region28: #{kpconv_res_block.4} parent=11 // pred_fallthru
        _
      // Predicated region
      $region29: #{kpconv_res_block.4} parent=11 // pred_check
        %p251 = pneg %p172
      $region30: #{kpconv_res_block.4} parent=11 // pred_check_branch
        %253 = sbr.rel (%p251) target = $region32
      $region31: #{kpconv_res_block.4} parent=11 // pred_region
        _
      $region32: #{kpconv_res_block.4} parent=11 // pred_fallthru
        _
    $region12: #{kpconv_res_block.4} parent=5 // pred_fallthru
      _
    %p254 = scmp.lt.s32.totalorder %s15, 2
    // Predicated region
    $region33: #{kpconv_res_block.4} parent=5 // pred_check
      %p255 = pneg %p254
    $region34: #{kpconv_res_block.4} parent=5 // pred_check_branch
      %257 = sbr.rel (%p255) target = $region36
    $region35: #{kpconv_res_block.4} parent=5 // pred_region
      // Predicated region
      $region37: #{kpconv_res_block.4} parent=35 // pred_check
        %p258 = pneg %p35
      $region38: #{kpconv_res_block.4} parent=35 // pred_check_branch
        %260 = sbr.rel (%p258) target = $region40
      $region39: #{kpconv_res_block.4} parent=35 // pred_region
        %s261 = smul.u32 16, %s15
        %p262 = scmp.lt.s32.totalorder %s261, 31
        %s263 = scalar_select %p262, %s261, 31
        %s264 = smul.addr %s263, 8
        %s265 = scalar_lea.vmem %s0, %s264
        %s266 = smul.u32 16, %s15
      $region40: #{kpconv_res_block.4} parent=35 // pred_fallthru
        _
      // Predicated region
      $region41: #{kpconv_res_block.4} parent=35 // pred_check
        %p267 = pneg %p61
      $region42: #{kpconv_res_block.4} parent=35 // pred_check_branch
        %269 = sbr.rel (%p267) target = $region44
      $region43: #{kpconv_res_block.4} parent=35 // pred_region
        %s270 = smul.u32 16, %s15
        %p271 = scmp.lt.s32.totalorder %s270, 31
        %s272 = scalar_select %p271, %s270, 31
        %s273 = smul.addr %s272, 8
        %s274 = scalar_lea.vmem %s1, %s273
        %s275 = smul.u32 16, %s15
      $region44: #{kpconv_res_block.4} parent=35 // pred_fallthru
        _
    $region36: #{kpconv_res_block.4} parent=5 // pred_fallthru
      _
    %p276 = scmp.le.s32.totalorder 1, %s15
    %p277 = scmp.lt.s32.totalorder %s15, 3
    %p278 = pnand %p276, %p277
    %p279 = pneg %p278
    // Predicated region
    $region45: #{kpconv_res_block.4} parent=5 // pred_check
      _
    $region46: #{kpconv_res_block.4} parent=5 // pred_check_branch
      %281 = sbr.rel (%p278) target = $region48
    $region47: #{kpconv_res_block.4} parent=5 // pred_region
      %s282 = ssub.s32 %s15, 1
      %s283 = smul.u32 16, %s20
      %p284 = scmp.lt.s32.totalorder %s283, 31
      %s285 = scalar_select %p284, %s283, 31
      %s286 = smul.addr %s285, 8
      %s287 = scalar_lea.vmem %s0, %s286
      %p288 = pneg %p41
      %p289 = pneg %p38
      %s290 = smul.u32 16, %s20
      %p291 = scmp.lt.s32.totalorder %s290, 31
      %s292 = scalar_select %p291, %s290, 31
      %s293 = smul.addr %s292, 8
      %s294 = scalar_lea.vmem %s1, %s293
      %p295 = pneg %p67
      %p296 = pneg %p64
      %p297 = pneg %p88
      %p298 = pneg %p85
      %p299 = pneg %p109
      %p300 = pneg %p106
      %p301 = pneg %p130
      %p302 = pneg %p127
      %p303 = pneg %p151
      %p304 = pneg %p148
      %p305 = pneg %p172
      %p306 = pneg %p169
      %p307 = pneg %p198
      %p308 = pneg %p195
      %s309 = smul.u32 16, %s20
      %p310 = scmp.lt.s32.totalorder %s309, 31
      %s311 = scalar_select %p310, %s309, 31
      %s312 = smul.addr %s311, 8
      %s313 = scalar_lea.vmem %s7, %s312
      %p314 = pneg %p224
      %p315 = pneg %p221
      %p316 = scmp.lt.s32.totalorder %s20, 1
      %s317 = scalar_select %p316, %s20, 1
      %s318 = scalar_lea.vmem %s8, %s317
      %s319 = smul.u32 16, %s20
      %p320 = scmp.lt.s32.totalorder %s319, 31
      %s321 = scalar_select %p320, %s319, 31
      %s322 = smul.addr %s321, 8
      %s323 = scalar_lea.vmem %s0, %s322
      %s324 = smul.u32 16, %s20
      %s325 = smul.u32 16, %s20
      %p326 = scmp.lt.s32.totalorder %s325, 31
      %s327 = scalar_select %p326, %s325, 31
      %s328 = smul.addr %s327, 8
      %s329 = scalar_lea.vmem %s1, %s328
      %s330 = smul.u32 16, %s20
      %s331 = smul.u32 16, %s20
      %p332 = scmp.lt.s32.totalorder %s331, 31
      %s333 = scalar_select %p332, %s331, 31
      %s334 = smul.addr %s333, 8
      %s335 = scalar_lea.vmem %s7, %s334
      %s336 = smul.u32 16, %s20
      %p337 = scmp.lt.s32.totalorder %s20, 1
      %s338 = scalar_select %p337, %s20, 1
      %s339 = scalar_lea.vmem %s8, %s338
      %v341 = vld [vmem:[%s323] sm:$0xff]
      %v342 = vld [vmem:[%s323 + $0x8] sm:$0xff]
      %v343 = vld [vmem:[%s323 + $0x10] sm:$0xff]
      %v344 = vld [vmem:[%s323 + $0x18] sm:$0xff]
      %v345 = vld [vmem:[%s323 + $0x20] sm:$0xff]
      %v346 = vld [vmem:[%s323 + $0x28] sm:$0xff]
      %v347 = vld [vmem:[%s323 + $0x30] sm:$0xff]
      %v348 = vld [vmem:[%s323 + $0x38] sm:$0xff]
      %v349 = vld [vmem:[%s323 + $0x40] sm:$0xff]
      %v350 = vld [vmem:[%s323 + $0x48] sm:$0xff]
      %v351 = vld [vmem:[%s323 + $0x50] sm:$0xff]
      %v352 = vld [vmem:[%s323 + $0x58] sm:$0xff]
      %v353 = vld [vmem:[%s323 + $0x60] sm:$0xff]
      %v354 = vld [vmem:[%s323 + $0x68] sm:$0xff]
      %v355 = vld [vmem:[%s323 + $0x70] sm:$0xff]
      %v356 = vld [vmem:[%s323 + $0x78] sm:$0xff]
      %v357 = vld [vmem:[%s2] sm:$0xff]
      %v358 = vld [vmem:[%s2 + $0x8] sm:$0xff]
      %v359 = vld [vmem:[%s2 + $0x10] sm:$0xff]
      %v360 = vld [vmem:[%s2 + $0x18] sm:$0xff]
      %v361 = vld [vmem:[%s2 + $0x20] sm:$0xff]
      %v362 = vld [vmem:[%s2 + $0x28] sm:$0xff]
      %v363 = vld [vmem:[%s2 + $0x30] sm:$0x1]
      %vm364 = vcmask 400384
      %v366 = vsel %vm364, %v341, 0
      %v369 = vsel %vm364, %v342, 0
      %v372 = vsel %vm364, %v343, 0
      %v375 = vsel %vm364, %v344, 0
      %v378 = vsel %vm364, %v345, 0
      %v381 = vsel %vm364, %v346, 0
      %v384 = vsel %vm364, %v347, 0
      %v387 = vsel %vm364, %v348, 0
      %v390 = vsel %vm364, %v349, 0
      %v393 = vsel %vm364, %v350, 0
      %v396 = vsel %vm364, %v351, 0
      %v399 = vsel %vm364, %v352, 0
      %v402 = vsel %vm364, %v353, 0
      %v405 = vsel %vm364, %v354, 0
      %v408 = vsel %vm364, %v355, 0
      %v411 = vsel %vm364, %v356, 0
      %vm413 = vcmask 1040384
      %v415 = vsel %vm413, %v363, 0
      %417 = vmatpush.msra.mxu0 0.0
      %418 = vmatpush.msra.mxu0 0.0
      %419 = vmatpush.msra.mxu0 0.0
      %420 = vmatpush.msra.mxu0 0.0
      %421 = vmatpush.msra.mxu0 0.0
      %422 = vmatpush.msra.mxu0 0.0
      %423 = vmatpush.msra.mxu0 0.0
      %424 = vmatpush.msra.mxu0 0.0
      %425 = vmatpush.msra.mxu0 0.0
      %426 = vmatpush.msra.mxu0 %v415
      %427 = vmatpush.msra.mxu0 %v362
      %428 = vmatpush.msra.mxu0 %v361
      %429 = vmatpush.msra.mxu0 %v360
      %430 = vmatpush.msra.mxu0 %v359
      %431 = vmatpush.msra.mxu0 %v358
      %432 = vmatpush.msra.mxu0 %v357
      %433 = vmatmul.f32.gmra.mxu0 %v366
      %v434 = vpop.f32.mrf.mxu0
      %v435 = vadd.f32 0.0, %v434
      %436 = vmatmul.f32.gmra.mxu0 %v369
      %v437 = vpop.f32.mrf.mxu0
      %v438 = vadd.f32 0.0, %v437
      %439 = vmatmul.f32.gmra.mxu0 %v372
      %v440 = vpop.f32.mrf.mxu0
      %v441 = vadd.f32 0.0, %v440
      %442 = vmatmul.f32.gmra.mxu0 %v375
      %v443 = vpop.f32.mrf.mxu0
      %v444 = vadd.f32 0.0, %v443
      %445 = vmatmul.f32.gmra.mxu0 %v378
      %v446 = vpop.f32.mrf.mxu0
      %v447 = vadd.f32 0.0, %v446
      %448 = vmatmul.f32.gmra.mxu0 %v381
      %v449 = vpop.f32.mrf.mxu0
      %v450 = vadd.f32 0.0, %v449
      %451 = vmatmul.f32.gmra.mxu0 %v384
      %v452 = vpop.f32.mrf.mxu0
      %v453 = vadd.f32 0.0, %v452
      %454 = vmatmul.f32.gmra.mxu0 %v387
      %v455 = vpop.f32.mrf.mxu0
      %v456 = vadd.f32 0.0, %v455
      %457 = vmatmul.f32.gmra.mxu0 %v390
      %v458 = vpop.f32.mrf.mxu0
      %v459 = vadd.f32 0.0, %v458
      %460 = vmatmul.f32.gmra.mxu0 %v393
      %v461 = vpop.f32.mrf.mxu0
      %v462 = vadd.f32 0.0, %v461
      %463 = vmatmul.f32.gmra.mxu0 %v396
      %v464 = vpop.f32.mrf.mxu0
      %v465 = vadd.f32 0.0, %v464
      %466 = vmatmul.f32.gmra.mxu0 %v399
      %v467 = vpop.f32.mrf.mxu0
      %v468 = vadd.f32 0.0, %v467
      %469 = vmatmul.f32.gmra.mxu0 %v402
      %v470 = vpop.f32.mrf.mxu0
      %v471 = vadd.f32 0.0, %v470
      %472 = vmatmul.f32.gmra.mxu0 %v405
      %v473 = vpop.f32.mrf.mxu0
      %v474 = vadd.f32 0.0, %v473
      %475 = vmatmul.f32.gmra.mxu0 %v408
      %v476 = vpop.f32.mrf.mxu0
      %v477 = vadd.f32 0.0, %v476
      %478 = vmatmul.f32.gmra.mxu0 %v411
      %v479 = vpop.f32.mrf.mxu0
      %v480 = vadd.f32 0.0, %v479
      %481 = vdwg.mxu0
      %v482 = vmax.f32 %v435, 0.0
      %v483 = vmax.f32 %v438, 0.0
      %v484 = vmax.f32 %v441, 0.0
      %v485 = vmax.f32 %v444, 0.0
      %v486 = vmax.f32 %v447, 0.0
      %v487 = vmax.f32 %v450, 0.0
      %v488 = vmax.f32 %v453, 0.0
      %v489 = vmax.f32 %v456, 0.0
      %v490 = vmax.f32 %v459, 0.0
      %v491 = vmax.f32 %v462, 0.0
      %v492 = vmax.f32 %v465, 0.0
      %v493 = vmax.f32 %v468, 0.0
      %v494 = vmax.f32 %v471, 0.0
      %v495 = vmax.f32 %v474, 0.0
      %v496 = vmax.f32 %v477, 0.0
      %v497 = vmax.f32 %v480, 0.0
      %v498 = vrsqrt.pop %v482
      %v499 = vmul.f32 %v498, %v482
      %v500 = vmul.f32 %v499, %v498
      %v501 = vmul.f32 0.5, %v500
      %v502 = vsub.f32 1.5, %v501
      %v503 = vmul.f32 %v498, %v502
      %v504 = vmul.f32 %v482, %v503
      %vm505 = vcmp.eq.f32.partialorder %v482, inf
      %v506 = vsel %vm505, %v482, %v504
      %vm507 = vcmp.eq.f32.partialorder %v482, 0.0
      %v508 = vand.u32 %v482, 2147483648
      %v509 = vsel %vm507, %v508, %v506
      %v510 = vrsqrt.pop %v483
      %v511 = vmul.f32 %v510, %v483
      %v512 = vmul.f32 %v511, %v510
      %v513 = vmul.f32 0.5, %v512
      %v514 = vsub.f32 1.5, %v513
      %v515 = vmul.f32 %v510, %v514
      %v516 = vmul.f32 %v483, %v515
      %vm517 = vcmp.eq.f32.partialorder %v483, inf
      %v518 = vsel %vm517, %v483, %v516
      %vm519 = vcmp.eq.f32.partialorder %v483, 0.0
      %v520 = vand.u32 %v483, 2147483648
      %v521 = vsel %vm519, %v520, %v518
      %v522 = vrsqrt.pop %v484
      %v523 = vmul.f32 %v522, %v484
      %v524 = vmul.f32 %v523, %v522
      %v525 = vmul.f32 0.5, %v524
      %v526 = vsub.f32 1.5, %v525
      %v527 = vmul.f32 %v522, %v526
      %v528 = vmul.f32 %v484, %v527
      %vm529 = vcmp.eq.f32.partialorder %v484, inf
      %v530 = vsel %vm529, %v484, %v528
      %vm531 = vcmp.eq.f32.partialorder %v484, 0.0
      %v532 = vand.u32 %v484, 2147483648
      %v533 = vsel %vm531, %v532, %v530
      %v534 = vrsqrt.pop %v485
      %v535 = vmul.f32 %v534, %v485
      %v536 = vmul.f32 %v535, %v534
      %v537 = vmul.f32 0.5, %v536
      %v538 = vsub.f32 1.5, %v537
      %v539 = vmul.f32 %v534, %v538
      %v540 = vmul.f32 %v485, %v539
      %vm541 = vcmp.eq.f32.partialorder %v485, inf
      %v542 = vsel %vm541, %v485, %v540
      %vm543 = vcmp.eq.f32.partialorder %v485, 0.0
      %v544 = vand.u32 %v485, 2147483648
      %v545 = vsel %vm543, %v544, %v542
      %v546 = vrsqrt.pop %v486
      %v547 = vmul.f32 %v546, %v486
      %v548 = vmul.f32 %v547, %v546
      %v549 = vmul.f32 0.5, %v548
      %v550 = vsub.f32 1.5, %v549
      %v551 = vmul.f32 %v546, %v550
      %v552 = vmul.f32 %v486, %v551
      %vm553 = vcmp.eq.f32.partialorder %v486, inf
      %v554 = vsel %vm553, %v486, %v552
      %vm555 = vcmp.eq.f32.partialorder %v486, 0.0
      %v556 = vand.u32 %v486, 2147483648
      %v557 = vsel %vm555, %v556, %v554
      %v558 = vrsqrt.pop %v487
      %v559 = vmul.f32 %v558, %v487
      %v560 = vmul.f32 %v559, %v558
      %v561 = vmul.f32 0.5, %v560
      %v562 = vsub.f32 1.5, %v561
      %v563 = vmul.f32 %v558, %v562
      %v564 = vmul.f32 %v487, %v563
      %vm565 = vcmp.eq.f32.partialorder %v487, inf
      %v566 = vsel %vm565, %v487, %v564
      %vm567 = vcmp.eq.f32.partialorder %v487, 0.0
      %v568 = vand.u32 %v487, 2147483648
      %v569 = vsel %vm567, %v568, %v566
      %v570 = vrsqrt.pop %v488
      %v571 = vmul.f32 %v570, %v488
      %v572 = vmul.f32 %v571, %v570
      %v573 = vmul.f32 0.5, %v572
      %v574 = vsub.f32 1.5, %v573
      %v575 = vmul.f32 %v570, %v574
      %v576 = vmul.f32 %v488, %v575
      %vm577 = vcmp.eq.f32.partialorder %v488, inf
      %v578 = vsel %vm577, %v488, %v576
      %vm579 = vcmp.eq.f32.partialorder %v488, 0.0
      %v580 = vand.u32 %v488, 2147483648
      %v581 = vsel %vm579, %v580, %v578
      %v582 = vrsqrt.pop %v489
      %v583 = vmul.f32 %v582, %v489
      %v584 = vmul.f32 %v583, %v582
      %v585 = vmul.f32 0.5, %v584
      %v586 = vsub.f32 1.5, %v585
      %v587 = vmul.f32 %v582, %v586
      %v588 = vmul.f32 %v489, %v587
      %vm589 = vcmp.eq.f32.partialorder %v489, inf
      %v590 = vsel %vm589, %v489, %v588
      %vm591 = vcmp.eq.f32.partialorder %v489, 0.0
      %v592 = vand.u32 %v489, 2147483648
      %v593 = vsel %vm591, %v592, %v590
      %v594 = vrsqrt.pop %v490
      %v595 = vmul.f32 %v594, %v490
      %v596 = vmul.f32 %v595, %v594
      %v597 = vmul.f32 0.5, %v596
      %v598 = vsub.f32 1.5, %v597
      %v599 = vmul.f32 %v594, %v598
      %v600 = vmul.f32 %v490, %v599
      %vm601 = vcmp.eq.f32.partialorder %v490, inf
      %v602 = vsel %vm601, %v490, %v600
      %vm603 = vcmp.eq.f32.partialorder %v490, 0.0
      %v604 = vand.u32 %v490, 2147483648
      %v605 = vsel %vm603, %v604, %v602
      %v606 = vrsqrt.pop %v491
      %v607 = vmul.f32 %v606, %v491
      %v608 = vmul.f32 %v607, %v606
      %v609 = vmul.f32 0.5, %v608
      %v610 = vsub.f32 1.5, %v609
      %v611 = vmul.f32 %v606, %v610
      %v612 = vmul.f32 %v491, %v611
      %vm613 = vcmp.eq.f32.partialorder %v491, inf
      %v614 = vsel %vm613, %v491, %v612
      %vm615 = vcmp.eq.f32.partialorder %v491, 0.0
      %v616 = vand.u32 %v491, 2147483648
      %v617 = vsel %vm615, %v616, %v614
      %v618 = vrsqrt.pop %v492
      %v619 = vmul.f32 %v618, %v492
      %v620 = vmul.f32 %v619, %v618
      %v621 = vmul.f32 0.5, %v620
      %v622 = vsub.f32 1.5, %v621
      %v623 = vmul.f32 %v618, %v622
      %v624 = vmul.f32 %v492, %v623
      %vm625 = vcmp.eq.f32.partialorder %v492, inf
      %v626 = vsel %vm625, %v492, %v624
      %vm627 = vcmp.eq.f32.partialorder %v492, 0.0
      %v628 = vand.u32 %v492, 2147483648
      %v629 = vsel %vm627, %v628, %v626
      %v630 = vrsqrt.pop %v493
      %v631 = vmul.f32 %v630, %v493
      %v632 = vmul.f32 %v631, %v630
      %v633 = vmul.f32 0.5, %v632
      %v634 = vsub.f32 1.5, %v633
      %v635 = vmul.f32 %v630, %v634
      %v636 = vmul.f32 %v493, %v635
      %vm637 = vcmp.eq.f32.partialorder %v493, inf
      %v638 = vsel %vm637, %v493, %v636
      %vm639 = vcmp.eq.f32.partialorder %v493, 0.0
      %v640 = vand.u32 %v493, 2147483648
      %v641 = vsel %vm639, %v640, %v638
      %v642 = vrsqrt.pop %v494
      %v643 = vmul.f32 %v642, %v494
      %v644 = vmul.f32 %v643, %v642
      %v645 = vmul.f32 0.5, %v644
      %v646 = vsub.f32 1.5, %v645
      %v647 = vmul.f32 %v642, %v646
      %v648 = vmul.f32 %v494, %v647
      %vm649 = vcmp.eq.f32.partialorder %v494, inf
      %v650 = vsel %vm649, %v494, %v648
      %vm651 = vcmp.eq.f32.partialorder %v494, 0.0
      %v652 = vand.u32 %v494, 2147483648
      %v653 = vsel %vm651, %v652, %v650
      %v654 = vrsqrt.pop %v495
      %v655 = vmul.f32 %v654, %v495
      %v656 = vmul.f32 %v655, %v654
      %v657 = vmul.f32 0.5, %v656
      %v658 = vsub.f32 1.5, %v657
      %v659 = vmul.f32 %v654, %v658
      %v660 = vmul.f32 %v495, %v659
      %vm661 = vcmp.eq.f32.partialorder %v495, inf
      %v662 = vsel %vm661, %v495, %v660
      %vm663 = vcmp.eq.f32.partialorder %v495, 0.0
      %v664 = vand.u32 %v495, 2147483648
      %v665 = vsel %vm663, %v664, %v662
      %v666 = vrsqrt.pop %v496
      %v667 = vmul.f32 %v666, %v496
      %v668 = vmul.f32 %v667, %v666
      %v669 = vmul.f32 0.5, %v668
      %v670 = vsub.f32 1.5, %v669
      %v671 = vmul.f32 %v666, %v670
      %v672 = vmul.f32 %v496, %v671
      %vm673 = vcmp.eq.f32.partialorder %v496, inf
      %v674 = vsel %vm673, %v496, %v672
      %vm675 = vcmp.eq.f32.partialorder %v496, 0.0
      %v676 = vand.u32 %v496, 2147483648
      %v677 = vsel %vm675, %v676, %v674
      %v678 = vrsqrt.pop %v497
      %v679 = vmul.f32 %v678, %v497
      %v680 = vmul.f32 %v679, %v678
      %v681 = vmul.f32 0.5, %v680
      %v682 = vsub.f32 1.5, %v681
      %v683 = vmul.f32 %v678, %v682
      %v684 = vmul.f32 %v497, %v683
      %vm685 = vcmp.eq.f32.partialorder %v497, inf
      %v686 = vsel %vm685, %v497, %v684
      %vm687 = vcmp.eq.f32.partialorder %v497, 0.0
      %v688 = vand.u32 %v497, 2147483648
      %v689 = vsel %vm687, %v688, %v686
      %v690 = vsub.f32 1.0, %v509
      %v691 = vsub.f32 1.0, %v521
      %v692 = vsub.f32 1.0, %v533
      %v693 = vsub.f32 1.0, %v545
      %v694 = vsub.f32 1.0, %v557
      %v695 = vsub.f32 1.0, %v569
      %v696 = vsub.f32 1.0, %v581
      %v697 = vsub.f32 1.0, %v593
      %v698 = vsub.f32 1.0, %v605
      %v699 = vsub.f32 1.0, %v617
      %v700 = vsub.f32 1.0, %v629
      %v701 = vsub.f32 1.0, %v641
      %v702 = vsub.f32 1.0, %v653
      %v703 = vsub.f32 1.0, %v665
      %v704 = vsub.f32 1.0, %v677
      %v705 = vsub.f32 1.0, %v689
      %v706 = vmax.f32 %v690, 0.0
      %v707 = vmax.f32 %v691, 0.0
      %v708 = vmax.f32 %v692, 0.0
      %v709 = vmax.f32 %v693, 0.0
      %v710 = vmax.f32 %v694, 0.0
      %v711 = vmax.f32 %v695, 0.0
      %v712 = vmax.f32 %v696, 0.0
      %v713 = vmax.f32 %v697, 0.0
      %v714 = vmax.f32 %v698, 0.0
      %v715 = vmax.f32 %v699, 0.0
      %v716 = vmax.f32 %v700, 0.0
      %v717 = vmax.f32 %v701, 0.0
      %v718 = vmax.f32 %v702, 0.0
      %v719 = vmax.f32 %v703, 0.0
      %v720 = vmax.f32 %v704, 0.0
      %v721 = vmax.f32 %v705, 0.0
      %v722 = vld [vmem:[%s329] sm:$0xff]
      %v723 = vld [vmem:[%s329 + $0x8] sm:$0xff]
      %v724 = vld [vmem:[%s329 + $0x10] sm:$0xff]
      %v725 = vld [vmem:[%s329 + $0x18] sm:$0xff]
      %v726 = vld [vmem:[%s329 + $0x20] sm:$0xff]
      %v727 = vld [vmem:[%s329 + $0x28] sm:$0xff]
      %v728 = vld [vmem:[%s329 + $0x30] sm:$0xff]
      %v729 = vld [vmem:[%s329 + $0x38] sm:$0xff]
      %v730 = vld [vmem:[%s329 + $0x40] sm:$0xff]
      %v731 = vld [vmem:[%s329 + $0x48] sm:$0xff]
      %v732 = vld [vmem:[%s329 + $0x50] sm:$0xff]
      %v733 = vld [vmem:[%s329 + $0x58] sm:$0xff]
      %v734 = vld [vmem:[%s329 + $0x60] sm:$0xff]
      %v735 = vld [vmem:[%s329 + $0x68] sm:$0xff]
      %v736 = vld [vmem:[%s329 + $0x70] sm:$0xff]
      %v737 = vld [vmem:[%s329 + $0x78] sm:$0xff]
      %v738 = vld [vmem:[%s3] sm:$0x1]
      %v740 = vperm.slane %v738, 0
      %v742 = vmul.f32 %v722, %v740
      %v743 = vmul.f32 %v723, %v740
      %v744 = vmul.f32 %v724, %v740
      %v745 = vmul.f32 %v725, %v740
      %v746 = vmul.f32 %v726, %v740
      %v747 = vmul.f32 %v727, %v740
      %v748 = vmul.f32 %v728, %v740
      %v749 = vmul.f32 %v729, %v740
      %v750 = vmul.f32 %v730, %v740
      %v751 = vmul.f32 %v731, %v740
      %v752 = vmul.f32 %v732, %v740
      %v753 = vmul.f32 %v733, %v740
      %v754 = vmul.f32 %v734, %v740
      %v755 = vmul.f32 %v735, %v740
      %v756 = vmul.f32 %v736, %v740
      %v757 = vmul.f32 %v737, %v740
      %v758 = vld [vmem:[%s4] sm:$0x1]
      %v760 = vperm.slane %v758, 0
      %v762 = vadd.f32 %v742, %v760
      %v763 = vadd.f32 %v743, %v760
      %v764 = vadd.f32 %v744, %v760
      %v765 = vadd.f32 %v745, %v760
      %v766 = vadd.f32 %v746, %v760
      %v767 = vadd.f32 %v747, %v760
      %v768 = vadd.f32 %v748, %v760
      %v769 = vadd.f32 %v749, %v760
      %v770 = vadd.f32 %v750, %v760
      %v771 = vadd.f32 %v751, %v760
      %v772 = vadd.f32 %v752, %v760
      %v773 = vadd.f32 %v753, %v760
      %v774 = vadd.f32 %v754, %v760
      %v775 = vadd.f32 %v755, %v760
      %v776 = vadd.f32 %v756, %v760
      %v777 = vadd.f32 %v757, %v760
      %vm778 = vcmp.ge.f32.partialorder %v762, 0.0
      %vm779 = vcmp.ge.f32.partialorder %v763, 0.0
      %vm780 = vcmp.ge.f32.partialorder %v764, 0.0
      %vm781 = vcmp.ge.f32.partialorder %v765, 0.0
      %vm782 = vcmp.ge.f32.partialorder %v766, 0.0
      %vm783 = vcmp.ge.f32.partialorder %v767, 0.0
      %vm784 = vcmp.ge.f32.partialorder %v768, 0.0
      %vm785 = vcmp.ge.f32.partialorder %v769, 0.0
      %vm786 = vcmp.ge.f32.partialorder %v770, 0.0
      %vm787 = vcmp.ge.f32.partialorder %v771, 0.0
      %vm788 = vcmp.ge.f32.partialorder %v772, 0.0
      %vm789 = vcmp.ge.f32.partialorder %v773, 0.0
      %vm790 = vcmp.ge.f32.partialorder %v774, 0.0
      %vm791 = vcmp.ge.f32.partialorder %v775, 0.0
      %vm792 = vcmp.ge.f32.partialorder %v776, 0.0
      %vm793 = vcmp.ge.f32.partialorder %v777, 0.0
      %v794 = vmul.f32 %v762, 0.2
      %v795 = vmul.f32 %v763, 0.2
      %v796 = vmul.f32 %v764, 0.2
      %v797 = vmul.f32 %v765, 0.2
      %v798 = vmul.f32 %v766, 0.2
      %v799 = vmul.f32 %v767, 0.2
      %v800 = vmul.f32 %v768, 0.2
      %v801 = vmul.f32 %v769, 0.2
      %v802 = vmul.f32 %v770, 0.2
      %v803 = vmul.f32 %v771, 0.2
      %v804 = vmul.f32 %v772, 0.2
      %v805 = vmul.f32 %v773, 0.2
      %v806 = vmul.f32 %v774, 0.2
      %v807 = vmul.f32 %v775, 0.2
      %v808 = vmul.f32 %v776, 0.2
      %v809 = vmul.f32 %v777, 0.2
      %v810 = vsel %vm778, %v762, %v794
      %v811 = vsel %vm779, %v763, %v795
      %v812 = vsel %vm780, %v764, %v796
      %v813 = vsel %vm781, %v765, %v797
      %v814 = vsel %vm782, %v766, %v798
      %v815 = vsel %vm783, %v767, %v799
      %v816 = vsel %vm784, %v768, %v800
      %v817 = vsel %vm785, %v769, %v801
      %v818 = vsel %vm786, %v770, %v802
      %v819 = vsel %vm787, %v771, %v803
      %v820 = vsel %vm788, %v772, %v804
      %v821 = vsel %vm789, %v773, %v805
      %v822 = vsel %vm790, %v774, %v806
      %v823 = vsel %vm791, %v775, %v807
      %v824 = vsel %vm792, %v776, %v808
      %v825 = vsel %vm793, %v777, %v809
      %v826 = vpack.c.bf16 %v707, %v706
      %v827 = vpack.c.bf16 %v709, %v708
      %v828 = vpack.c.bf16 %v711, %v710
      %v829 = vpack.c.bf16 %v713, %v712
      %v830 = vpack.c.bf16 %v715, %v714
      %v831 = vpack.c.bf16 %v717, %v716
      %v832 = vpack.c.bf16 %v719, %v718
      %v833 = vpack.c.bf16 %v721, %v720
      %v834 = vld [vmem:[%s5] sm:$0xff]
      %v835 = vld [vmem:[%s5 + $0x8] sm:$0xff]
      %v836 = vld [vmem:[%s5 + $0x20] sm:$0xff]
      %v837 = vld [vmem:[%s5 + $0x28] sm:$0xff]
      %v838 = vld [vmem:[%s5 + $0x40] sm:$0xff]
      %v839 = vld [vmem:[%s5 + $0x48] sm:$0xff]
      %v840 = vld [vmem:[%s5 + $0x60] sm:$0xff]
      %v841 = vld [vmem:[%s5 + $0x68] sm:$0xff]
      %v842 = vld [vmem:[%s5 + $0x80] sm:$0xff]
      %v843 = vld [vmem:[%s5 + $0x88] sm:$0xff]
      %v844 = vld [vmem:[%s5 + $0xa0] sm:$0xff]
      %v845 = vld [vmem:[%s5 + $0xa8] sm:$0xff]
      %v846 = vld [vmem:[%s5 + $0xc0] sm:$0xff]
      %v847 = vld [vmem:[%s5 + $0xc8] sm:$0xff]
      %v848 = vld [vmem:[%s5 + $0xe0] sm:$0xff]
      %v849 = vld [vmem:[%s5 + $0xe8] sm:$0xff]
      %v850 = vld [vmem:[%s5 + $0x100] sm:$0xff]
      %v851 = vld [vmem:[%s5 + $0x108] sm:$0xff]
      %v852 = vld [vmem:[%s5 + $0x120] sm:$0xff]
      %v853 = vld [vmem:[%s5 + $0x128] sm:$0xff]
      %v854 = vld [vmem:[%s5 + $0x140] sm:$0xff]
      %v855 = vld [vmem:[%s5 + $0x148] sm:$0xff]
      %v856 = vld [vmem:[%s5 + $0x160] sm:$0xff]
      %v857 = vld [vmem:[%s5 + $0x168] sm:$0xff]
      %v858 = vld [vmem:[%s5 + $0x180] sm:$0xff]
      %v859 = vld [vmem:[%s5 + $0x188] sm:$0xff]
      %v860 = vld [vmem:[%s5 + $0x1a0] sm:$0xff]
      %v861 = vld [vmem:[%s5 + $0x1a8] sm:$0xff]
      %v862 = vld [vmem:[%s5 + $0x1c0] sm:$0xff]
      %v863 = vld [vmem:[%s5 + $0x1c8] sm:$0xff]
      %v894 = vunpack.c.l.b16 %v834
      %v895 = vunpack.c.h.b16 %v834
      %v896 = vunpack.c.l.b16 %v835
      %v897 = vunpack.c.h.b16 %v835
      %v898 = vunpack.c.l.b16 %v836
      %v899 = vunpack.c.h.b16 %v836
      %v900 = vunpack.c.l.b16 %v837
      %v901 = vunpack.c.h.b16 %v837
      %v902 = vunpack.c.l.b16 %v838
      %v903 = vunpack.c.h.b16 %v838
      %v904 = vunpack.c.l.b16 %v839
      %v905 = vunpack.c.h.b16 %v839
      %v906 = vunpack.c.l.b16 %v840
      %v907 = vunpack.c.h.b16 %v840
      %v908 = vunpack.c.l.b16 %v841
      %v909 = vunpack.c.h.b16 %v841
      %v910 = vunpack.c.l.b16 %v842
      %v911 = vunpack.c.h.b16 %v842
      %v912 = vunpack.c.l.b16 %v843
      %v913 = vunpack.c.h.b16 %v843
      %v914 = vunpack.c.l.b16 %v844
      %v915 = vunpack.c.h.b16 %v844
      %v916 = vunpack.c.l.b16 %v845
      %v917 = vunpack.c.h.b16 %v845
      %v918 = vunpack.c.l.b16 %v846
      %v919 = vunpack.c.h.b16 %v846
      %v920 = vunpack.c.l.b16 %v847
      %v921 = vunpack.c.h.b16 %v847
      %v922 = vunpack.c.l.b16 %v848
      %v923 = vunpack.c.h.b16 %v848
      %v924 = vunpack.c.l.b16 %v849
      %v925 = vunpack.c.h.b16 %v849
      %v926 = vunpack.c.l.b16 %v850
      %v927 = vunpack.c.h.b16 %v850
      %v928 = vunpack.c.l.b16 %v851
      %v929 = vunpack.c.h.b16 %v851
      %v930 = vunpack.c.l.b16 %v852
      %v931 = vunpack.c.h.b16 %v852
      %v932 = vunpack.c.l.b16 %v853
      %v933 = vunpack.c.h.b16 %v853
      %v934 = vunpack.c.l.b16 %v854
      %v935 = vunpack.c.h.b16 %v854
      %v936 = vunpack.c.l.b16 %v855
      %v937 = vunpack.c.h.b16 %v855
      %v938 = vunpack.c.l.b16 %v856
      %v939 = vunpack.c.h.b16 %v856
      %v940 = vunpack.c.l.b16 %v857
      %v941 = vunpack.c.h.b16 %v857
      %v942 = vunpack.c.l.b16 %v858
      %v943 = vunpack.c.h.b16 %v858
      %v944 = vunpack.c.l.b16 %v859
      %v945 = vunpack.c.h.b16 %v859
      %v946 = vunpack.c.l.b16 %v860
      %v947 = vunpack.c.h.b16 %v860
      %v948 = vunpack.c.l.b16 %v861
      %v949 = vunpack.c.h.b16 %v861
      %v950 = vunpack.c.l.b16 %v862
      %v951 = vunpack.c.h.b16 %v862
      %v952 = vunpack.c.l.b16 %v863
      %v953 = vunpack.c.h.b16 %v863
      %v954 = vpack.c.b16 %v898, %v894
      %v955 = vpack.c.b16 %v899, %v895
      %v956 = vpack.c.b16 %v900, %v896
      %v957 = vpack.c.b16 %v901, %v897
      %v958 = vpack.c.b16 %v906, %v902
      %v959 = vpack.c.b16 %v907, %v903
      %v960 = vpack.c.b16 %v908, %v904
      %v961 = vpack.c.b16 %v909, %v905
      %v962 = vpack.c.b16 %v914, %v910
      %v963 = vpack.c.b16 %v915, %v911
      %v964 = vpack.c.b16 %v916, %v912
      %v965 = vpack.c.b16 %v917, %v913
      %v966 = vpack.c.b16 %v922, %v918
      %v967 = vpack.c.b16 %v923, %v919
      %v968 = vpack.c.b16 %v924, %v920
      %v969 = vpack.c.b16 %v925, %v921
      %v970 = vpack.c.b16 %v930, %v926
      %v971 = vpack.c.b16 %v931, %v927
      %v972 = vpack.c.b16 %v932, %v928
      %v973 = vpack.c.b16 %v933, %v929
      %v974 = vpack.c.b16 %v938, %v934
      %v975 = vpack.c.b16 %v939, %v935
      %v976 = vpack.c.b16 %v940, %v936
      %v977 = vpack.c.b16 %v941, %v937
      %v978 = vpack.c.b16 %v946, %v942
      %v979 = vpack.c.b16 %v947, %v943
      %v980 = vpack.c.b16 %v948, %v944
      %v981 = vpack.c.b16 %v949, %v945
      %v982 = vpack.c.b16 %v950, %v950
      %v983 = vpack.c.b16 %v951, %v951
      %v984 = vpack.c.b16 %v952, %v952
      %v985 = vpack.c.b16 %v953, %v953
      %vm1014 = vcmask 982016
      %v1016 = vsel %vm1014, %v826, 0
      %v1019 = vsel %vm1014, %v827, 0
      %v1022 = vsel %vm1014, %v828, 0
      %v1025 = vsel %vm1014, %v829, 0
      %v1028 = vsel %vm1014, %v830, 0
      %v1031 = vsel %vm1014, %v831, 0
      %v1034 = vsel %vm1014, %v832, 0
      %v1037 = vsel %vm1014, %v833, 0
      %vm1039 = vcmask 1043456
      %v1041 = vsel %vm1039, %v982, 0
      %v1044 = vsel %vm1039, %v983, 0
      %v1047 = vsel %vm1039, %v984, 0
      %v1050 = vsel %vm1039, %v985, 0
      %1052 = vmatpush.bf16.msra.mxu0 %v1041
      %1053 = vmatpush.bf16.msra.mxu0 %v978
      %1054 = vmatpush.bf16.msra.mxu0 %v974
      %1055 = vmatpush.bf16.msra.mxu0 %v970
      %1056 = vmatpush.bf16.msra.mxu0 %v966
      %1057 = vmatpush.bf16.msra.mxu0 %v962
      %1058 = vmatpush.bf16.msra.mxu0 %v958
      %1059 = vmatpush.bf16.msra.mxu0 %v954
      %1060 = vmatmul.bf16.gmra.mxu0 %v1016
      %v1061 = vpop.f32.mrf.mxu0
      %v1062 = vadd.f32 0.0, %v1061
      %v1063 = vpop.f32.mrf.mxu0
      %v1064 = vadd.f32 0.0, %v1063
      %1065 = vmatmul.bf16.gmra.mxu0 %v1019
      %v1066 = vpop.f32.mrf.mxu0
      %v1067 = vadd.f32 0.0, %v1066
      %v1068 = vpop.f32.mrf.mxu0
      %v1069 = vadd.f32 0.0, %v1068
      %1070 = vmatmul.bf16.gmra.mxu0 %v1022
      %v1071 = vpop.f32.mrf.mxu0
      %v1072 = vadd.f32 0.0, %v1071
      %v1073 = vpop.f32.mrf.mxu0
      %v1074 = vadd.f32 0.0, %v1073
      %1075 = vmatmul.bf16.gmra.mxu0 %v1025
      %v1076 = vpop.f32.mrf.mxu0
      %v1077 = vadd.f32 0.0, %v1076
      %v1078 = vpop.f32.mrf.mxu0
      %v1079 = vadd.f32 0.0, %v1078
      %1080 = vmatmul.bf16.gmra.mxu0 %v1028
      %v1081 = vpop.f32.mrf.mxu0
      %v1082 = vadd.f32 0.0, %v1081
      %v1083 = vpop.f32.mrf.mxu0
      %v1084 = vadd.f32 0.0, %v1083
      %1085 = vmatmul.bf16.gmra.mxu0 %v1031
      %v1086 = vpop.f32.mrf.mxu0
      %v1087 = vadd.f32 0.0, %v1086
      %v1088 = vpop.f32.mrf.mxu0
      %v1089 = vadd.f32 0.0, %v1088
      %1090 = vmatmul.bf16.gmra.mxu0 %v1034
      %v1091 = vpop.f32.mrf.mxu0
      %v1092 = vadd.f32 0.0, %v1091
      %v1093 = vpop.f32.mrf.mxu0
      %v1094 = vadd.f32 0.0, %v1093
      %1095 = vmatmul.bf16.gmra.mxu0 %v1037
      %v1096 = vpop.f32.mrf.mxu0
      %v1097 = vadd.f32 0.0, %v1096
      %v1098 = vpop.f32.mrf.mxu0
      %v1099 = vadd.f32 0.0, %v1098
      %1100 = vdwg.mxu0
      %1101 = vmatpush.bf16.msra.mxu0 %v1044
      %1102 = vmatpush.bf16.msra.mxu0 %v979
      %1103 = vmatpush.bf16.msra.mxu0 %v975
      %1104 = vmatpush.bf16.msra.mxu0 %v971
      %1105 = vmatpush.bf16.msra.mxu0 %v967
      %1106 = vmatpush.bf16.msra.mxu0 %v963
      %1107 = vmatpush.bf16.msra.mxu0 %v959
      %1108 = vmatpush.bf16.msra.mxu0 %v955
      %1109 = vmatmul.bf16.gmra.mxu0 %v1016
      %v1110 = vpop.f32.mrf.mxu0
      %v1111 = vadd.f32 0.0, %v1110
      %v1112 = vpop.f32.mrf.mxu0
      %v1113 = vadd.f32 0.0, %v1112
      %1114 = vmatmul.bf16.gmra.mxu0 %v1019
      %v1115 = vpop.f32.mrf.mxu0
      %v1116 = vadd.f32 0.0, %v1115
      %v1117 = vpop.f32.mrf.mxu0
      %v1118 = vadd.f32 0.0, %v1117
      %1119 = vmatmul.bf16.gmra.mxu0 %v1022
      %v1120 = vpop.f32.mrf.mxu0
      %v1121 = vadd.f32 0.0, %v1120
      %v1122 = vpop.f32.mrf.mxu0
      %v1123 = vadd.f32 0.0, %v1122
      %1124 = vmatmul.bf16.gmra.mxu0 %v1025
      %v1125 = vpop.f32.mrf.mxu0
      %v1126 = vadd.f32 0.0, %v1125
      %v1127 = vpop.f32.mrf.mxu0
      %v1128 = vadd.f32 0.0, %v1127
      %1129 = vmatmul.bf16.gmra.mxu0 %v1028
      %v1130 = vpop.f32.mrf.mxu0
      %v1131 = vadd.f32 0.0, %v1130
      %v1132 = vpop.f32.mrf.mxu0
      %v1133 = vadd.f32 0.0, %v1132
      %1134 = vmatmul.bf16.gmra.mxu0 %v1031
      %v1135 = vpop.f32.mrf.mxu0
      %v1136 = vadd.f32 0.0, %v1135
      %v1137 = vpop.f32.mrf.mxu0
      %v1138 = vadd.f32 0.0, %v1137
      %1139 = vmatmul.bf16.gmra.mxu0 %v1034
      %v1140 = vpop.f32.mrf.mxu0
      %v1141 = vadd.f32 0.0, %v1140
      %v1142 = vpop.f32.mrf.mxu0
      %v1143 = vadd.f32 0.0, %v1142
      %1144 = vmatmul.bf16.gmra.mxu0 %v1037
      %v1145 = vpop.f32.mrf.mxu0
      %v1146 = vadd.f32 0.0, %v1145
      %v1147 = vpop.f32.mrf.mxu0
      %v1148 = vadd.f32 0.0, %v1147
      %1149 = vdwg.mxu0
      %1150 = vmatpush.bf16.msra.mxu0 %v1047
      %1151 = vmatpush.bf16.msra.mxu0 %v980
      %1152 = vmatpush.bf16.msra.mxu0 %v976
      %1153 = vmatpush.bf16.msra.mxu0 %v972
      %1154 = vmatpush.bf16.msra.mxu0 %v968
      %1155 = vmatpush.bf16.msra.mxu0 %v964
      %1156 = vmatpush.bf16.msra.mxu0 %v960
      %1157 = vmatpush.bf16.msra.mxu0 %v956
      %1158 = vmatmul.bf16.gmra.mxu0 %v1016
      %v1159 = vpop.f32.mrf.mxu0
      %v1160 = vadd.f32 0.0, %v1159
      %v1161 = vpop.f32.mrf.mxu0
      %v1162 = vadd.f32 0.0, %v1161
      %1163 = vmatmul.bf16.gmra.mxu0 %v1019
      %v1164 = vpop.f32.mrf.mxu0
      %v1165 = vadd.f32 0.0, %v1164
      %v1166 = vpop.f32.mrf.mxu0
      %v1167 = vadd.f32 0.0, %v1166
      %1168 = vmatmul.bf16.gmra.mxu0 %v1022
      %v1169 = vpop.f32.mrf.mxu0
      %v1170 = vadd.f32 0.0, %v1169
      %v1171 = vpop.f32.mrf.mxu0
      %v1172 = vadd.f32 0.0, %v1171
      %1173 = vmatmul.bf16.gmra.mxu0 %v1025
      %v1174 = vpop.f32.mrf.mxu0
      %v1175 = vadd.f32 0.0, %v1174
      %v1176 = vpop.f32.mrf.mxu0
      %v1177 = vadd.f32 0.0, %v1176
      %1178 = vmatmul.bf16.gmra.mxu0 %v1028
      %v1179 = vpop.f32.mrf.mxu0
      %v1180 = vadd.f32 0.0, %v1179
      %v1181 = vpop.f32.mrf.mxu0
      %v1182 = vadd.f32 0.0, %v1181
      %1183 = vmatmul.bf16.gmra.mxu0 %v1031
      %v1184 = vpop.f32.mrf.mxu0
      %v1185 = vadd.f32 0.0, %v1184
      %v1186 = vpop.f32.mrf.mxu0
      %v1187 = vadd.f32 0.0, %v1186
      %1188 = vmatmul.bf16.gmra.mxu0 %v1034
      %v1189 = vpop.f32.mrf.mxu0
      %v1190 = vadd.f32 0.0, %v1189
      %v1191 = vpop.f32.mrf.mxu0
      %v1192 = vadd.f32 0.0, %v1191
      %1193 = vmatmul.bf16.gmra.mxu0 %v1037
      %v1194 = vpop.f32.mrf.mxu0
      %v1195 = vadd.f32 0.0, %v1194
      %v1196 = vpop.f32.mrf.mxu0
      %v1197 = vadd.f32 0.0, %v1196
      %1198 = vdwg.mxu0
      %1199 = vmatpush.bf16.msra.mxu0 %v1050
      %1200 = vmatpush.bf16.msra.mxu0 %v981
      %1201 = vmatpush.bf16.msra.mxu0 %v977
      %1202 = vmatpush.bf16.msra.mxu0 %v973
      %1203 = vmatpush.bf16.msra.mxu0 %v969
      %1204 = vmatpush.bf16.msra.mxu0 %v965
      %1205 = vmatpush.bf16.msra.mxu0 %v961
      %1206 = vmatpush.bf16.msra.mxu0 %v957
      %1207 = vmatmul.bf16.gmra.mxu0 %v1016
      %v1208 = vpop.f32.mrf.mxu0
      %v1209 = vadd.f32 0.0, %v1208
      %v1210 = vpop.f32.mrf.mxu0
      %v1211 = vadd.f32 0.0, %v1210
      %1212 = vmatmul.bf16.gmra.mxu0 %v1019
      %v1213 = vpop.f32.mrf.mxu0
      %v1214 = vadd.f32 0.0, %v1213
      %v1215 = vpop.f32.mrf.mxu0
      %v1216 = vadd.f32 0.0, %v1215
      %1217 = vmatmul.bf16.gmra.mxu0 %v1022
      %v1218 = vpop.f32.mrf.mxu0
      %v1219 = vadd.f32 0.0, %v1218
      %v1220 = vpop.f32.mrf.mxu0
      %v1221 = vadd.f32 0.0, %v1220
      %1222 = vmatmul.bf16.gmra.mxu0 %v1025
      %v1223 = vpop.f32.mrf.mxu0
      %v1224 = vadd.f32 0.0, %v1223
      %v1225 = vpop.f32.mrf.mxu0
      %v1226 = vadd.f32 0.0, %v1225
      %1227 = vmatmul.bf16.gmra.mxu0 %v1028
      %v1228 = vpop.f32.mrf.mxu0
      %v1229 = vadd.f32 0.0, %v1228
      %v1230 = vpop.f32.mrf.mxu0
      %v1231 = vadd.f32 0.0, %v1230
      %1232 = vmatmul.bf16.gmra.mxu0 %v1031
      %v1233 = vpop.f32.mrf.mxu0
      %v1234 = vadd.f32 0.0, %v1233
      %v1235 = vpop.f32.mrf.mxu0
      %v1236 = vadd.f32 0.0, %v1235
      %1237 = vmatmul.bf16.gmra.mxu0 %v1034
      %v1238 = vpop.f32.mrf.mxu0
      %v1239 = vadd.f32 0.0, %v1238
      %v1240 = vpop.f32.mrf.mxu0
      %v1241 = vadd.f32 0.0, %v1240
      %1242 = vmatmul.bf16.gmra.mxu0 %v1037
      %v1243 = vpop.f32.mrf.mxu0
      %v1244 = vadd.f32 0.0, %v1243
      %v1245 = vpop.f32.mrf.mxu0
      %v1246 = vadd.f32 0.0, %v1245
      %1247 = vdwg.mxu0
      %1264 = vrot.lane.b32.xlu0 %v810, 64
      %v1265 = vpop.permute.xlu0 %1264
      %1266 = vrot.lane.b32.xlu0 %v811, 64
      %v1267 = vpop.permute.xlu0 %1266
      %1268 = vrot.lane.b32.xlu0 %v812, 64
      %v1269 = vpop.permute.xlu0 %1268
      %1270 = vrot.lane.b32.xlu0 %v813, 64
      %v1271 = vpop.permute.xlu0 %1270
      %1272 = vrot.lane.b32.xlu0 %v814, 64
      %v1273 = vpop.permute.xlu0 %1272
      %1274 = vrot.lane.b32.xlu0 %v815, 64
      %v1275 = vpop.permute.xlu0 %1274
      %1276 = vrot.lane.b32.xlu0 %v816, 64
      %v1277 = vpop.permute.xlu0 %1276
      %1278 = vrot.lane.b32.xlu0 %v817, 64
      %v1279 = vpop.permute.xlu0 %1278
      %1280 = vrot.lane.b32.xlu0 %v818, 64
      %v1281 = vpop.permute.xlu0 %1280
      %1282 = vrot.lane.b32.xlu0 %v819, 64
      %v1283 = vpop.permute.xlu0 %1282
      %1284 = vrot.lane.b32.xlu0 %v820, 64
      %v1285 = vpop.permute.xlu0 %1284
      %1286 = vrot.lane.b32.xlu0 %v821, 64
      %v1287 = vpop.permute.xlu0 %1286
      %1288 = vrot.lane.b32.xlu0 %v822, 64
      %v1289 = vpop.permute.xlu0 %1288
      %1290 = vrot.lane.b32.xlu0 %v823, 64
      %v1291 = vpop.permute.xlu0 %1290
      %1292 = vrot.lane.b32.xlu0 %v824, 64
      %v1293 = vpop.permute.xlu0 %1292
      %1294 = vrot.lane.b32.xlu0 %v825, 64
      %v1295 = vpop.permute.xlu0 %1294
      %vm1312 = vcmask 523264
      %v1313 = vsel %vm1312, %v810, %v1265
      %v1314 = vsel %vm1312, %v811, %v1267
      %v1315 = vsel %vm1312, %v812, %v1269
      %v1316 = vsel %vm1312, %v813, %v1271
      %v1317 = vsel %vm1312, %v814, %v1273
      %v1318 = vsel %vm1312, %v815, %v1275
      %v1319 = vsel %vm1312, %v816, %v1277
      %v1320 = vsel %vm1312, %v817, %v1279
      %v1321 = vsel %vm1312, %v818, %v1281
      %v1322 = vsel %vm1312, %v819, %v1283
      %v1323 = vsel %vm1312, %v820, %v1285
      %v1324 = vsel %vm1312, %v821, %v1287
      %v1325 = vsel %vm1312, %v822, %v1289
      %v1326 = vsel %vm1312, %v823, %v1291
      %v1327 = vsel %vm1312, %v824, %v1293
      %v1328 = vsel %vm1312, %v825, %v1295
      %v1329 = vmul.f32 %v1062, %v1313
      %v1330 = vmul.f32 %v1111, %v1313
      %v1331 = vmul.f32 %v1160, %v1313
      %v1332 = vmul.f32 %v1209, %v1313
      %v1333 = vmul.f32 %v1064, %v1314
      %v1334 = vmul.f32 %v1113, %v1314
      %v1335 = vmul.f32 %v1162, %v1314
      %v1336 = vmul.f32 %v1211, %v1314
      %v1337 = vmul.f32 %v1067, %v1315
      %v1338 = vmul.f32 %v1116, %v1315
      %v1339 = vmul.f32 %v1165, %v1315
      %v1340 = vmul.f32 %v1214, %v1315
      %v1341 = vmul.f32 %v1069, %v1316
      %v1342 = vmul.f32 %v1118, %v1316
      %v1343 = vmul.f32 %v1167, %v1316
      %v1344 = vmul.f32 %v1216, %v1316
      %v1345 = vmul.f32 %v1072, %v1317
      %v1346 = vmul.f32 %v1121, %v1317
      %v1347 = vmul.f32 %v1170, %v1317
      %v1348 = vmul.f32 %v1219, %v1317
      %v1349 = vmul.f32 %v1074, %v1318
      %v1350 = vmul.f32 %v1123, %v1318
      %v1351 = vmul.f32 %v1172, %v1318
      %v1352 = vmul.f32 %v1221, %v1318
      %v1353 = vmul.f32 %v1077, %v1319
      %v1354 = vmul.f32 %v1126, %v1319
      %v1355 = vmul.f32 %v1175, %v1319
      %v1356 = vmul.f32 %v1224, %v1319
      %v1357 = vmul.f32 %v1079, %v1320
      %v1358 = vmul.f32 %v1128, %v1320
      %v1359 = vmul.f32 %v1177, %v1320
      %v1360 = vmul.f32 %v1226, %v1320
      %v1361 = vmul.f32 %v1082, %v1321
      %v1362 = vmul.f32 %v1131, %v1321
      %v1363 = vmul.f32 %v1180, %v1321
      %v1364 = vmul.f32 %v1229, %v1321
      %v1365 = vmul.f32 %v1084, %v1322
      %v1366 = vmul.f32 %v1133, %v1322
      %v1367 = vmul.f32 %v1182, %v1322
      %v1368 = vmul.f32 %v1231, %v1322
      %v1369 = vmul.f32 %v1087, %v1323
      %v1370 = vmul.f32 %v1136, %v1323
      %v1371 = vmul.f32 %v1185, %v1323
      %v1372 = vmul.f32 %v1234, %v1323
      %v1373 = vmul.f32 %v1089, %v1324
      %v1374 = vmul.f32 %v1138, %v1324
      %v1375 = vmul.f32 %v1187, %v1324
      %v1376 = vmul.f32 %v1236, %v1324
      %v1377 = vmul.f32 %v1092, %v1325
      %v1378 = vmul.f32 %v1141, %v1325
      %v1379 = vmul.f32 %v1190, %v1325
      %v1380 = vmul.f32 %v1239, %v1325
      %v1381 = vmul.f32 %v1094, %v1326
      %v1382 = vmul.f32 %v1143, %v1326
      %v1383 = vmul.f32 %v1192, %v1326
      %v1384 = vmul.f32 %v1241, %v1326
      %v1385 = vmul.f32 %v1097, %v1327
      %v1386 = vmul.f32 %v1146, %v1327
      %v1387 = vmul.f32 %v1195, %v1327
      %v1388 = vmul.f32 %v1244, %v1327
      %v1389 = vmul.f32 %v1099, %v1328
      %v1390 = vmul.f32 %v1148, %v1328
      %v1391 = vmul.f32 %v1197, %v1328
      %v1392 = vmul.f32 %v1246, %v1328
      %v1393 = vpack.c.bf16 %v1333, %v1329
      %v1394 = vpack.c.bf16 %v1334, %v1330
      %v1395 = vpack.c.bf16 %v1335, %v1331
      %v1396 = vpack.c.bf16 %v1336, %v1332
      %v1397 = vpack.c.bf16 %v1341, %v1337
      %v1398 = vpack.c.bf16 %v1342, %v1338
      %v1399 = vpack.c.bf16 %v1343, %v1339
      %v1400 = vpack.c.bf16 %v1344, %v1340
      %v1401 = vpack.c.bf16 %v1349, %v1345
      %v1402 = vpack.c.bf16 %v1350, %v1346
      %v1403 = vpack.c.bf16 %v1351, %v1347
      %v1404 = vpack.c.bf16 %v1352, %v1348
      %v1405 = vpack.c.bf16 %v1357, %v1353
      %v1406 = vpack.c.bf16 %v1358, %v1354
      %v1407 = vpack.c.bf16 %v1359, %v1355
      %v1408 = vpack.c.bf16 %v1360, %v1356
      %v1409 = vpack.c.bf16 %v1365, %v1361
      %v1410 = vpack.c.bf16 %v1366, %v1362
      %v1411 = vpack.c.bf16 %v1367, %v1363
      %v1412 = vpack.c.bf16 %v1368, %v1364
      %v1413 = vpack.c.bf16 %v1373, %v1369
      %v1414 = vpack.c.bf16 %v1374, %v1370
      %v1415 = vpack.c.bf16 %v1375, %v1371
      %v1416 = vpack.c.bf16 %v1376, %v1372
      %v1417 = vpack.c.bf16 %v1381, %v1377
      %v1418 = vpack.c.bf16 %v1382, %v1378
      %v1419 = vpack.c.bf16 %v1383, %v1379
      %v1420 = vpack.c.bf16 %v1384, %v1380
      %v1421 = vpack.c.bf16 %v1389, %v1385
      %v1422 = vpack.c.bf16 %v1390, %v1386
      %v1423 = vpack.c.bf16 %v1391, %v1387
      %v1424 = vpack.c.bf16 %v1392, %v1388
      %v1425 = vld [vmem:[%s6] sm:$0xf]
      %v1426 = vld [vmem:[%s6 + $0x4] sm:$0xf]
      %v1427 = vld [vmem:[%s6 + $0x8] sm:$0xf]
      %v1428 = vld [vmem:[%s6 + $0xc] sm:$0xf]
      %v1429 = vld [vmem:[%s6 + $0x10] sm:$0xf]
      %v1430 = vld [vmem:[%s6 + $0x14] sm:$0xf]
      %v1431 = vld [vmem:[%s6 + $0x18] sm:$0xf]
      %v1432 = vld [vmem:[%s6 + $0x1c] sm:$0xf]
      %v1433 = vld [vmem:[%s6 + $0x20] sm:$0xf]
      %v1434 = vld [vmem:[%s6 + $0x24] sm:$0xf]
      %v1435 = vld [vmem:[%s6 + $0x28] sm:$0xf]
      %v1436 = vld [vmem:[%s6 + $0x2c] sm:$0xf]
      %v1437 = vld [vmem:[%s6 + $0x30] sm:$0xf]
      %v1438 = vld [vmem:[%s6 + $0x34] sm:$0xf]
      %v1439 = vld [vmem:[%s6 + $0x38] sm:$0xf]
      %v1440 = vld [vmem:[%s6 + $0x3c] sm:$0xf]
      %v1441 = vld [vmem:[%s6 + $0x40] sm:$0xf]
      %v1442 = vld [vmem:[%s6 + $0x44] sm:$0xf]
      %v1443 = vld [vmem:[%s6 + $0x48] sm:$0xf]
      %v1444 = vld [vmem:[%s6 + $0x4c] sm:$0xf]
      %v1445 = vld [vmem:[%s6 + $0x50] sm:$0xf]
      %v1446 = vld [vmem:[%s6 + $0x54] sm:$0xf]
      %v1447 = vld [vmem:[%s6 + $0x58] sm:$0xf]
      %v1448 = vld [vmem:[%s6 + $0x5c] sm:$0xf]
      %v1449 = vld [vmem:[%s6 + $0x60] sm:$0xf]
      %v1450 = vld [vmem:[%s6 + $0x64] sm:$0xf]
      %v1451 = vld [vmem:[%s6 + $0x68] sm:$0xf]
      %v1452 = vld [vmem:[%s6 + $0x6c] sm:$0xf]
      %v1453 = vld [vmem:[%s6 + $0x70] sm:$0xf]
      %v1454 = vld [vmem:[%s6 + $0x74] sm:$0xf]
      %v1455 = vld [vmem:[%s6 + $0x78] sm:$0xf]
      %v1456 = vld [vmem:[%s6 + $0x7c] sm:$0xf]
      %v1457 = vld [vmem:[%s6 + $0x80] sm:$0xf]
      %v1458 = vld [vmem:[%s6 + $0x84] sm:$0xf]
      %v1459 = vld [vmem:[%s6 + $0x88] sm:$0xf]
      %v1460 = vld [vmem:[%s6 + $0x8c] sm:$0xf]
      %v1461 = vld [vmem:[%s6 + $0x90] sm:$0xf]
      %v1462 = vld [vmem:[%s6 + $0x94] sm:$0xf]
      %v1463 = vld [vmem:[%s6 + $0x98] sm:$0xf]
      %v1464 = vld [vmem:[%s6 + $0x9c] sm:$0xf]
      %v1465 = vld [vmem:[%s6 + $0xa0] sm:$0xf]
      %v1466 = vld [vmem:[%s6 + $0xa4] sm:$0xf]
      %v1467 = vld [vmem:[%s6 + $0xa8] sm:$0xf]
      %v1468 = vld [vmem:[%s6 + $0xac] sm:$0xf]
      %v1469 = vld [vmem:[%s6 + $0xb0] sm:$0xf]
      %v1470 = vld [vmem:[%s6 + $0xb4] sm:$0xf]
      %v1471 = vld [vmem:[%s6 + $0xb8] sm:$0xf]
      %v1472 = vld [vmem:[%s6 + $0xbc] sm:$0xf]
      %v1473 = vld [vmem:[%s6 + $0xc0] sm:$0xf]
      %v1474 = vld [vmem:[%s6 + $0xc4] sm:$0xf]
      %v1475 = vld [vmem:[%s6 + $0xc8] sm:$0xf]
      %v1476 = vld [vmem:[%s6 + $0xcc] sm:$0xf]
      %v1477 = vld [vmem:[%s6 + $0xd0] sm:$0xf]
      %v1478 = vld [vmem:[%s6 + $0xd4] sm:$0xf]
      %v1479 = vld [vmem:[%s6 + $0xd8] sm:$0xf]
      %v1480 = vld [vmem:[%s6 + $0xdc] sm:$0xf]
      %v1481 = vld [vmem:[%s6 + $0xe0] sm:$0xf]
      %v1482 = vld [vmem:[%s6 + $0xe4] sm:$0xf]
      %v1483 = vld [vmem:[%s6 + $0xe8] sm:$0xf]
      %v1484 = vld [vmem:[%s6 + $0xec] sm:$0xf]
      %v1485 = vld [vmem:[%s6 + $0xf0] sm:$0xf]
      %v1486 = vld [vmem:[%s6 + $0xf4] sm:$0xf]
      %v1487 = vld [vmem:[%s6 + $0xf8] sm:$0xf]
      %v1488 = vld [vmem:[%s6 + $0xfc] sm:$0xf]
      %v1489 = vld [vmem:[%s5 + $0x10] sm:$0xff]
      %v1490 = vld [vmem:[%s5 + $0x18] sm:$0xff]
      %v1491 = vld [vmem:[%s5 + $0x30] sm:$0xff]
      %v1492 = vld [vmem:[%s5 + $0x38] sm:$0xff]
      %v1493 = vld [vmem:[%s5 + $0x50] sm:$0xff]
      %v1494 = vld [vmem:[%s5 + $0x58] sm:$0xff]
      %v1495 = vld [vmem:[%s5 + $0x70] sm:$0xff]
      %v1496 = vld [vmem:[%s5 + $0x78] sm:$0xff]
      %v1497 = vld [vmem:[%s5 + $0x90] sm:$0xff]
      %v1498 = vld [vmem:[%s5 + $0x98] sm:$0xff]
      %v1499 = vld [vmem:[%s5 + $0xb0] sm:$0xff]
      %v1500 = vld [vmem:[%s5 + $0xb8] sm:$0xff]
      %v1501 = vld [vmem:[%s5 + $0xd0] sm:$0xff]
      %v1502 = vld [vmem:[%s5 + $0xd8] sm:$0xff]
      %v1503 = vld [vmem:[%s5 + $0xf0] sm:$0xff]
      %v1504 = vld [vmem:[%s5 + $0xf8] sm:$0xff]
      %v1505 = vld [vmem:[%s5 + $0x110] sm:$0xff]
      %v1506 = vld [vmem:[%s5 + $0x118] sm:$0xff]
      %v1507 = vld [vmem:[%s5 + $0x130] sm:$0xff]
      %v1508 = vld [vmem:[%s5 + $0x138] sm:$0xff]
      %v1509 = vld [vmem:[%s5 + $0x150] sm:$0xff]
      %v1510 = vld [vmem:[%s5 + $0x158] sm:$0xff]
      %v1511 = vld [vmem:[%s5 + $0x170] sm:$0xff]
      %v1512 = vld [vmem:[%s5 + $0x178] sm:$0xff]
      %v1513 = vld [vmem:[%s5 + $0x190] sm:$0xff]
      %v1514 = vld [vmem:[%s5 + $0x198] sm:$0xff]
      %v1515 = vld [vmem:[%s5 + $0x1b0] sm:$0xff]
      %v1516 = vld [vmem:[%s5 + $0x1b8] sm:$0xff]
      %v1517 = vld [vmem:[%s5 + $0x1d0] sm:$0xff]
      %v1518 = vld [vmem:[%s5 + $0x1d8] sm:$0xff]
      %v1549 = vunpack.c.l.b16 %v1489
      %v1550 = vunpack.c.h.b16 %v1489
      %v1551 = vunpack.c.l.b16 %v1490
      %v1552 = vunpack.c.h.b16 %v1490
      %v1553 = vunpack.c.l.b16 %v1491
      %v1554 = vunpack.c.h.b16 %v1491
      %v1555 = vunpack.c.l.b16 %v1492
      %v1556 = vunpack.c.h.b16 %v1492
      %v1557 = vunpack.c.l.b16 %v1493
      %v1558 = vunpack.c.h.b16 %v1493
      %v1559 = vunpack.c.l.b16 %v1494
      %v1560 = vunpack.c.h.b16 %v1494
      %v1561 = vunpack.c.l.b16 %v1495
      %v1562 = vunpack.c.h.b16 %v1495
      %v1563 = vunpack.c.l.b16 %v1496
      %v1564 = vunpack.c.h.b16 %v1496
      %v1565 = vunpack.c.l.b16 %v1497
      %v1566 = vunpack.c.h.b16 %v1497
      %v1567 = vunpack.c.l.b16 %v1498
      %v1568 = vunpack.c.h.b16 %v1498
      %v1569 = vunpack.c.l.b16 %v1499
      %v1570 = vunpack.c.h.b16 %v1499
      %v1571 = vunpack.c.l.b16 %v1500
      %v1572 = vunpack.c.h.b16 %v1500
      %v1573 = vunpack.c.l.b16 %v1501
      %v1574 = vunpack.c.h.b16 %v1501
      %v1575 = vunpack.c.l.b16 %v1502
      %v1576 = vunpack.c.h.b16 %v1502
      %v1577 = vunpack.c.l.b16 %v1503
      %v1578 = vunpack.c.h.b16 %v1503
      %v1579 = vunpack.c.l.b16 %v1504
      %v1580 = vunpack.c.h.b16 %v1504
      %v1581 = vunpack.c.l.b16 %v1505
      %v1582 = vunpack.c.h.b16 %v1505
      %v1583 = vunpack.c.l.b16 %v1506
      %v1584 = vunpack.c.h.b16 %v1506
      %v1585 = vunpack.c.l.b16 %v1507
      %v1586 = vunpack.c.h.b16 %v1507
      %v1587 = vunpack.c.l.b16 %v1508
      %v1588 = vunpack.c.h.b16 %v1508
      %v1589 = vunpack.c.l.b16 %v1509
      %v1590 = vunpack.c.h.b16 %v1509
      %v1591 = vunpack.c.l.b16 %v1510
      %v1592 = vunpack.c.h.b16 %v1510
      %v1593 = vunpack.c.l.b16 %v1511
      %v1594 = vunpack.c.h.b16 %v1511
      %v1595 = vunpack.c.l.b16 %v1512
      %v1596 = vunpack.c.h.b16 %v1512
      %v1597 = vunpack.c.l.b16 %v1513
      %v1598 = vunpack.c.h.b16 %v1513
      %v1599 = vunpack.c.l.b16 %v1514
      %v1600 = vunpack.c.h.b16 %v1514
      %v1601 = vunpack.c.l.b16 %v1515
      %v1602 = vunpack.c.h.b16 %v1515
      %v1603 = vunpack.c.l.b16 %v1516
      %v1604 = vunpack.c.h.b16 %v1516
      %v1605 = vunpack.c.l.b16 %v1517
      %v1606 = vunpack.c.h.b16 %v1517
      %v1607 = vunpack.c.l.b16 %v1518
      %v1608 = vunpack.c.h.b16 %v1518
      %v1609 = vpack.c.b16 %v1553, %v1549
      %v1610 = vpack.c.b16 %v1554, %v1550
      %v1611 = vpack.c.b16 %v1555, %v1551
      %v1612 = vpack.c.b16 %v1556, %v1552
      %v1613 = vpack.c.b16 %v1561, %v1557
      %v1614 = vpack.c.b16 %v1562, %v1558
      %v1615 = vpack.c.b16 %v1563, %v1559
      %v1616 = vpack.c.b16 %v1564, %v1560
      %v1617 = vpack.c.b16 %v1569, %v1565
      %v1618 = vpack.c.b16 %v1570, %v1566
      %v1619 = vpack.c.b16 %v1571, %v1567
      %v1620 = vpack.c.b16 %v1572, %v1568
      %v1621 = vpack.c.b16 %v1577, %v1573
      %v1622 = vpack.c.b16 %v1578, %v1574
      %v1623 = vpack.c.b16 %v1579, %v1575
      %v1624 = vpack.c.b16 %v1580, %v1576
      %v1625 = vpack.c.b16 %v1585, %v1581
      %v1626 = vpack.c.b16 %v1586, %v1582
      %v1627 = vpack.c.b16 %v1587, %v1583
      %v1628 = vpack.c.b16 %v1588, %v1584
      %v1629 = vpack.c.b16 %v1593, %v1589
      %v1630 = vpack.c.b16 %v1594, %v1590
      %v1631 = vpack.c.b16 %v1595, %v1591
      %v1632 = vpack.c.b16 %v1596, %v1592
      %v1633 = vpack.c.b16 %v1601, %v1597
      %v1634 = vpack.c.b16 %v1602, %v1598
      %v1635 = vpack.c.b16 %v1603, %v1599
      %v1636 = vpack.c.b16 %v1604, %v1600
      %v1637 = vpack.c.b16 %v1605, %v1605
      %v1638 = vpack.c.b16 %v1606, %v1606
      %v1639 = vpack.c.b16 %v1607, %v1607
      %v1640 = vpack.c.b16 %v1608, %v1608
      %v1670 = vsel %vm1039, %v1637, 0
      %v1673 = vsel %vm1039, %v1638, 0
      %v1676 = vsel %vm1039, %v1639, 0
      %v1679 = vsel %vm1039, %v1640, 0
      %1681 = vmatpush.bf16.msra.mxu0 %v1670
      %1682 = vmatpush.bf16.msra.mxu0 %v1633
      %1683 = vmatpush.bf16.msra.mxu0 %v1629
      %1684 = vmatpush.bf16.msra.mxu0 %v1625
      %1685 = vmatpush.bf16.msra.mxu0 %v1621
      %1686 = vmatpush.bf16.msra.mxu0 %v1617
      %1687 = vmatpush.bf16.msra.mxu0 %v1613
      %1688 = vmatpush.bf16.msra.mxu0 %v1609
      %1689 = vmatmul.bf16.gmra.mxu0 %v1016
      %v1690 = vpop.f32.mrf.mxu0
      %v1691 = vadd.f32 0.0, %v1690
      %v1692 = vpop.f32.mrf.mxu0
      %v1693 = vadd.f32 0.0, %v1692
      %1694 = vmatmul.bf16.gmra.mxu0 %v1019
      %v1695 = vpop.f32.mrf.mxu0
      %v1696 = vadd.f32 0.0, %v1695
      %v1697 = vpop.f32.mrf.mxu0
      %v1698 = vadd.f32 0.0, %v1697
      %1699 = vmatmul.bf16.gmra.mxu0 %v1022
      %v1700 = vpop.f32.mrf.mxu0
      %v1701 = vadd.f32 0.0, %v1700
      %v1702 = vpop.f32.mrf.mxu0
      %v1703 = vadd.f32 0.0, %v1702
      %1704 = vmatmul.bf16.gmra.mxu0 %v1025
      %v1705 = vpop.f32.mrf.mxu0
      %v1706 = vadd.f32 0.0, %v1705
      %v1707 = vpop.f32.mrf.mxu0
      %v1708 = vadd.f32 0.0, %v1707
      %1709 = vmatmul.bf16.gmra.mxu0 %v1028
      %v1710 = vpop.f32.mrf.mxu0
      %v1711 = vadd.f32 0.0, %v1710
      %v1712 = vpop.f32.mrf.mxu0
      %v1713 = vadd.f32 0.0, %v1712
      %1714 = vmatmul.bf16.gmra.mxu0 %v1031
      %v1715 = vpop.f32.mrf.mxu0
      %v1716 = vadd.f32 0.0, %v1715
      %v1717 = vpop.f32.mrf.mxu0
      %v1718 = vadd.f32 0.0, %v1717
      %1719 = vmatmul.bf16.gmra.mxu0 %v1034
      %v1720 = vpop.f32.mrf.mxu0
      %v1721 = vadd.f32 0.0, %v1720
      %v1722 = vpop.f32.mrf.mxu0
      %v1723 = vadd.f32 0.0, %v1722
      %1724 = vmatmul.bf16.gmra.mxu0 %v1037
      %v1725 = vpop.f32.mrf.mxu0
      %v1726 = vadd.f32 0.0, %v1725
      %v1727 = vpop.f32.mrf.mxu0
      %v1728 = vadd.f32 0.0, %v1727
      %1729 = vdwg.mxu0
      %1730 = vmatpush.bf16.msra.mxu0 %v1673
      %1731 = vmatpush.bf16.msra.mxu0 %v1634
      %1732 = vmatpush.bf16.msra.mxu0 %v1630
      %1733 = vmatpush.bf16.msra.mxu0 %v1626
      %1734 = vmatpush.bf16.msra.mxu0 %v1622
      %1735 = vmatpush.bf16.msra.mxu0 %v1618
      %1736 = vmatpush.bf16.msra.mxu0 %v1614
      %1737 = vmatpush.bf16.msra.mxu0 %v1610
      %1738 = vmatmul.bf16.gmra.mxu0 %v1016
      %v1739 = vpop.f32.mrf.mxu0
      %v1740 = vadd.f32 0.0, %v1739
      %v1741 = vpop.f32.mrf.mxu0
      %v1742 = vadd.f32 0.0, %v1741
      %1743 = vmatmul.bf16.gmra.mxu0 %v1019
      %v1744 = vpop.f32.mrf.mxu0
      %v1745 = vadd.f32 0.0, %v1744
      %v1746 = vpop.f32.mrf.mxu0
      %v1747 = vadd.f32 0.0, %v1746
      %1748 = vmatmul.bf16.gmra.mxu0 %v1022
      %v1749 = vpop.f32.mrf.mxu0
      %v1750 = vadd.f32 0.0, %v1749
      %v1751 = vpop.f32.mrf.mxu0
      %v1752 = vadd.f32 0.0, %v1751
      %1753 = vmatmul.bf16.gmra.mxu0 %v1025
      %v1754 = vpop.f32.mrf.mxu0
      %v1755 = vadd.f32 0.0, %v1754
      %v1756 = vpop.f32.mrf.mxu0
      %v1757 = vadd.f32 0.0, %v1756
      %1758 = vmatmul.bf16.gmra.mxu0 %v1028
      %v1759 = vpop.f32.mrf.mxu0
      %v1760 = vadd.f32 0.0, %v1759
      %v1761 = vpop.f32.mrf.mxu0
      %v1762 = vadd.f32 0.0, %v1761
      %1763 = vmatmul.bf16.gmra.mxu0 %v1031
      %v1764 = vpop.f32.mrf.mxu0
      %v1765 = vadd.f32 0.0, %v1764
      %v1766 = vpop.f32.mrf.mxu0
      %v1767 = vadd.f32 0.0, %v1766
      %1768 = vmatmul.bf16.gmra.mxu0 %v1034
      %v1769 = vpop.f32.mrf.mxu0
      %v1770 = vadd.f32 0.0, %v1769
      %v1771 = vpop.f32.mrf.mxu0
      %v1772 = vadd.f32 0.0, %v1771
      %1773 = vmatmul.bf16.gmra.mxu0 %v1037
      %v1774 = vpop.f32.mrf.mxu0
      %v1775 = vadd.f32 0.0, %v1774
      %v1776 = vpop.f32.mrf.mxu0
      %v1777 = vadd.f32 0.0, %v1776
      %1778 = vdwg.mxu0
      %1779 = vmatpush.bf16.msra.mxu0 %v1676
      %1780 = vmatpush.bf16.msra.mxu0 %v1635
      %1781 = vmatpush.bf16.msra.mxu0 %v1631
      %1782 = vmatpush.bf16.msra.mxu0 %v1627
      %1783 = vmatpush.bf16.msra.mxu0 %v1623
      %1784 = vmatpush.bf16.msra.mxu0 %v1619
      %1785 = vmatpush.bf16.msra.mxu0 %v1615
      %1786 = vmatpush.bf16.msra.mxu0 %v1611
      %1787 = vmatmul.bf16.gmra.mxu0 %v1016
      %v1788 = vpop.f32.mrf.mxu0
      %v1789 = vadd.f32 0.0, %v1788
      %v1790 = vpop.f32.mrf.mxu0
      %v1791 = vadd.f32 0.0, %v1790
      %1792 = vmatmul.bf16.gmra.mxu0 %v1019
      %v1793 = vpop.f32.mrf.mxu0
      %v1794 = vadd.f32 0.0, %v1793
      %v1795 = vpop.f32.mrf.mxu0
      %v1796 = vadd.f32 0.0, %v1795
      %1797 = vmatmul.bf16.gmra.mxu0 %v1022
      %v1798 = vpop.f32.mrf.mxu0
      %v1799 = vadd.f32 0.0, %v1798
      %v1800 = vpop.f32.mrf.mxu0
      %v1801 = vadd.f32 0.0, %v1800
      %1802 = vmatmul.bf16.gmra.mxu0 %v1025
      %v1803 = vpop.f32.mrf.mxu0
      %v1804 = vadd.f32 0.0, %v1803
      %v1805 = vpop.f32.mrf.mxu0
      %v1806 = vadd.f32 0.0, %v1805
      %1807 = vmatmul.bf16.gmra.mxu0 %v1028
      %v1808 = vpop.f32.mrf.mxu0
      %v1809 = vadd.f32 0.0, %v1808
      %v1810 = vpop.f32.mrf.mxu0
      %v1811 = vadd.f32 0.0, %v1810
      %1812 = vmatmul.bf16.gmra.mxu0 %v1031
      %v1813 = vpop.f32.mrf.mxu0
      %v1814 = vadd.f32 0.0, %v1813
      %v1815 = vpop.f32.mrf.mxu0
      %v1816 = vadd.f32 0.0, %v1815
      %1817 = vmatmul.bf16.gmra.mxu0 %v1034
      %v1818 = vpop.f32.mrf.mxu0
      %v1819 = vadd.f32 0.0, %v1818
      %v1820 = vpop.f32.mrf.mxu0
      %v1821 = vadd.f32 0.0, %v1820
      %1822 = vmatmul.bf16.gmra.mxu0 %v1037
      %v1823 = vpop.f32.mrf.mxu0
      %v1824 = vadd.f32 0.0, %v1823
      %v1825 = vpop.f32.mrf.mxu0
      %v1826 = vadd.f32 0.0, %v1825
      %1827 = vdwg.mxu0
      %1828 = vmatpush.bf16.msra.mxu0 %v1679
      %1829 = vmatpush.bf16.msra.mxu0 %v1636
      %1830 = vmatpush.bf16.msra.mxu0 %v1632
      %1831 = vmatpush.bf16.msra.mxu0 %v1628
      %1832 = vmatpush.bf16.msra.mxu0 %v1624
      %1833 = vmatpush.bf16.msra.mxu0 %v1620
      %1834 = vmatpush.bf16.msra.mxu0 %v1616
      %1835 = vmatpush.bf16.msra.mxu0 %v1612
      %1836 = vmatmul.bf16.gmra.mxu0 %v1016
      %v1837 = vpop.f32.mrf.mxu0
      %v1838 = vadd.f32 0.0, %v1837
      %v1839 = vpop.f32.mrf.mxu0
      %v1840 = vadd.f32 0.0, %v1839
      %1841 = vmatmul.bf16.gmra.mxu0 %v1019
      %v1842 = vpop.f32.mrf.mxu0
      %v1843 = vadd.f32 0.0, %v1842
      %v1844 = vpop.f32.mrf.mxu0
      %v1845 = vadd.f32 0.0, %v1844
      %1846 = vmatmul.bf16.gmra.mxu0 %v1022
      %v1847 = vpop.f32.mrf.mxu0
      %v1848 = vadd.f32 0.0, %v1847
      %v1849 = vpop.f32.mrf.mxu0
      %v1850 = vadd.f32 0.0, %v1849
      %1851 = vmatmul.bf16.gmra.mxu0 %v1025
      %v1852 = vpop.f32.mrf.mxu0
      %v1853 = vadd.f32 0.0, %v1852
      %v1854 = vpop.f32.mrf.mxu0
      %v1855 = vadd.f32 0.0, %v1854
      %1856 = vmatmul.bf16.gmra.mxu0 %v1028
      %v1857 = vpop.f32.mrf.mxu0
      %v1858 = vadd.f32 0.0, %v1857
      %v1859 = vpop.f32.mrf.mxu0
      %v1860 = vadd.f32 0.0, %v1859
      %1861 = vmatmul.bf16.gmra.mxu0 %v1031
      %v1862 = vpop.f32.mrf.mxu0
      %v1863 = vadd.f32 0.0, %v1862
      %v1864 = vpop.f32.mrf.mxu0
      %v1865 = vadd.f32 0.0, %v1864
      %1866 = vmatmul.bf16.gmra.mxu0 %v1034
      %v1867 = vpop.f32.mrf.mxu0
      %v1868 = vadd.f32 0.0, %v1867
      %v1869 = vpop.f32.mrf.mxu0
      %v1870 = vadd.f32 0.0, %v1869
      %1871 = vmatmul.bf16.gmra.mxu0 %v1037
      %v1872 = vpop.f32.mrf.mxu0
      %v1873 = vadd.f32 0.0, %v1872
      %v1874 = vpop.f32.mrf.mxu0
      %v1875 = vadd.f32 0.0, %v1874
      %1876 = vdwg.mxu0
      %v1877 = vmul.f32 %v1691, %v1313
      %v1878 = vmul.f32 %v1740, %v1313
      %v1879 = vmul.f32 %v1789, %v1313
      %v1880 = vmul.f32 %v1838, %v810
      %v1881 = vmul.f32 %v1693, %v1314
      %v1882 = vmul.f32 %v1742, %v1314
      %v1883 = vmul.f32 %v1791, %v1314
      %v1884 = vmul.f32 %v1840, %v811
      %v1885 = vmul.f32 %v1696, %v1315
      %v1886 = vmul.f32 %v1745, %v1315
      %v1887 = vmul.f32 %v1794, %v1315
      %v1888 = vmul.f32 %v1843, %v812
      %v1889 = vmul.f32 %v1698, %v1316
      %v1890 = vmul.f32 %v1747, %v1316
      %v1891 = vmul.f32 %v1796, %v1316
      %v1892 = vmul.f32 %v1845, %v813
      %v1893 = vmul.f32 %v1701, %v1317
      %v1894 = vmul.f32 %v1750, %v1317
      %v1895 = vmul.f32 %v1799, %v1317
      %v1896 = vmul.f32 %v1848, %v814
      %v1897 = vmul.f32 %v1703, %v1318
      %v1898 = vmul.f32 %v1752, %v1318
      %v1899 = vmul.f32 %v1801, %v1318
      %v1900 = vmul.f32 %v1850, %v815
      %v1901 = vmul.f32 %v1706, %v1319
      %v1902 = vmul.f32 %v1755, %v1319
      %v1903 = vmul.f32 %v1804, %v1319
      %v1904 = vmul.f32 %v1853, %v816
      %v1905 = vmul.f32 %v1708, %v1320
      %v1906 = vmul.f32 %v1757, %v1320
      %v1907 = vmul.f32 %v1806, %v1320
      %v1908 = vmul.f32 %v1855, %v817
      %v1909 = vmul.f32 %v1711, %v1321
      %v1910 = vmul.f32 %v1760, %v1321
      %v1911 = vmul.f32 %v1809, %v1321
      %v1912 = vmul.f32 %v1858, %v818
      %v1913 = vmul.f32 %v1713, %v1322
      %v1914 = vmul.f32 %v1762, %v1322
      %v1915 = vmul.f32 %v1811, %v1322
      %v1916 = vmul.f32 %v1860, %v819
      %v1917 = vmul.f32 %v1716, %v1323
      %v1918 = vmul.f32 %v1765, %v1323
      %v1919 = vmul.f32 %v1814, %v1323
      %v1920 = vmul.f32 %v1863, %v820
      %v1921 = vmul.f32 %v1718, %v1324
      %v1922 = vmul.f32 %v1767, %v1324
      %v1923 = vmul.f32 %v1816, %v1324
      %v1924 = vmul.f32 %v1865, %v821
      %v1925 = vmul.f32 %v1721, %v1325
      %v1926 = vmul.f32 %v1770, %v1325
      %v1927 = vmul.f32 %v1819, %v1325
      %v1928 = vmul.f32 %v1868, %v822
      %v1929 = vmul.f32 %v1723, %v1326
      %v1930 = vmul.f32 %v1772, %v1326
      %v1931 = vmul.f32 %v1821, %v1326
      %v1932 = vmul.f32 %v1870, %v823
      %v1933 = vmul.f32 %v1726, %v1327
      %v1934 = vmul.f32 %v1775, %v1327
      %v1935 = vmul.f32 %v1824, %v1327
      %v1936 = vmul.f32 %v1873, %v824
      %v1937 = vmul.f32 %v1728, %v1328
      %v1938 = vmul.f32 %v1777, %v1328
      %v1939 = vmul.f32 %v1826, %v1328
      %v1940 = vmul.f32 %v1875, %v825
      %v1941 = vpack.c.bf16 %v1881, %v1877
      %v1942 = vpack.c.bf16 %v1882, %v1878
      %v1943 = vpack.c.bf16 %v1883, %v1879
      %v1944 = vpack.c.bf16 %v1884, %v1880
      %v1945 = vpack.c.bf16 %v1889, %v1885
      %v1946 = vpack.c.bf16 %v1890, %v1886
      %v1947 = vpack.c.bf16 %v1891, %v1887
      %v1948 = vpack.c.bf16 %v1892, %v1888
      %v1949 = vpack.c.bf16 %v1897, %v1893
      %v1950 = vpack.c.bf16 %v1898, %v1894
      %v1951 = vpack.c.bf16 %v1899, %v1895
      %v1952 = vpack.c.bf16 %v1900, %v1896
      %v1953 = vpack.c.bf16 %v1905, %v1901
      %v1954 = vpack.c.bf16 %v1906, %v1902
      %v1955 = vpack.c.bf16 %v1907, %v1903
      %v1956 = vpack.c.bf16 %v1908, %v1904
      %v1957 = vpack.c.bf16 %v1913, %v1909
      %v1958 = vpack.c.bf16 %v1914, %v1910
      %v1959 = vpack.c.bf16 %v1915, %v1911
      %v1960 = vpack.c.bf16 %v1916, %v1912
      %v1961 = vpack.c.bf16 %v1921, %v1917
      %v1962 = vpack.c.bf16 %v1922, %v1918
      %v1963 = vpack.c.bf16 %v1923, %v1919
      %v1964 = vpack.c.bf16 %v1924, %v1920
      %v1965 = vpack.c.bf16 %v1929, %v1925
      %v1966 = vpack.c.bf16 %v1930, %v1926
      %v1967 = vpack.c.bf16 %v1931, %v1927
      %v1968 = vpack.c.bf16 %v1932, %v1928
      %v1969 = vpack.c.bf16 %v1937, %v1933
      %v1970 = vpack.c.bf16 %v1938, %v1934
      %v1971 = vpack.c.bf16 %v1939, %v1935
      %v1972 = vpack.c.bf16 %v1940, %v1936
      %v1973 = vld [vmem:[%s6 + $0x100] sm:$0xf]
      %v1974 = vld [vmem:[%s6 + $0x104] sm:$0xf]
      %v1975 = vld [vmem:[%s6 + $0x108] sm:$0xf]
      %v1976 = vld [vmem:[%s6 + $0x10c] sm:$0xf]
      %v1977 = vld [vmem:[%s6 + $0x110] sm:$0xf]
      %v1978 = vld [vmem:[%s6 + $0x114] sm:$0xf]
      %v1979 = vld [vmem:[%s6 + $0x118] sm:$0xf]
      %v1980 = vld [vmem:[%s6 + $0x11c] sm:$0xf]
      %v1981 = vld [vmem:[%s6 + $0x120] sm:$0xf]
      %v1982 = vld [vmem:[%s6 + $0x124] sm:$0xf]
      %v1983 = vld [vmem:[%s6 + $0x128] sm:$0xf]
      %v1984 = vld [vmem:[%s6 + $0x12c] sm:$0xf]
      %v1985 = vld [vmem:[%s6 + $0x130] sm:$0xf]
      %v1986 = vld [vmem:[%s6 + $0x134] sm:$0xf]
      %v1987 = vld [vmem:[%s6 + $0x138] sm:$0xf]
      %v1988 = vld [vmem:[%s6 + $0x13c] sm:$0xf]
      %v1989 = vld [vmem:[%s6 + $0x140] sm:$0xf]
      %v1990 = vld [vmem:[%s6 + $0x144] sm:$0xf]
      %v1991 = vld [vmem:[%s6 + $0x148] sm:$0xf]
      %v1992 = vld [vmem:[%s6 + $0x14c] sm:$0xf]
      %v1993 = vld [vmem:[%s6 + $0x150] sm:$0xf]
      %v1994 = vld [vmem:[%s6 + $0x154] sm:$0xf]
      %v1995 = vld [vmem:[%s6 + $0x158] sm:$0xf]
      %v1996 = vld [vmem:[%s6 + $0x15c] sm:$0xf]
      %v1997 = vld [vmem:[%s6 + $0x160] sm:$0xf]
      %v1998 = vld [vmem:[%s6 + $0x164] sm:$0xf]
      %v1999 = vld [vmem:[%s6 + $0x168] sm:$0xf]
      %v2000 = vld [vmem:[%s6 + $0x16c] sm:$0xf]
      %v2001 = vld [vmem:[%s6 + $0x170] sm:$0xf]
      %v2002 = vld [vmem:[%s6 + $0x174] sm:$0xf]
      %v2003 = vld [vmem:[%s6 + $0x178] sm:$0xf]
      %v2004 = vld [vmem:[%s6 + $0x17c] sm:$0xf]
      %v2005 = vld [vmem:[%s6 + $0x180] sm:$0xf]
      %v2006 = vld [vmem:[%s6 + $0x184] sm:$0xf]
      %v2007 = vld [vmem:[%s6 + $0x188] sm:$0xf]
      %v2008 = vld [vmem:[%s6 + $0x18c] sm:$0xf]
      %v2009 = vld [vmem:[%s6 + $0x190] sm:$0xf]
      %v2010 = vld [vmem:[%s6 + $0x194] sm:$0xf]
      %v2011 = vld [vmem:[%s6 + $0x198] sm:$0xf]
      %v2012 = vld [vmem:[%s6 + $0x19c] sm:$0xf]
      %v2013 = vld [vmem:[%s6 + $0x1a0] sm:$0xf]
      %v2014 = vld [vmem:[%s6 + $0x1a4] sm:$0xf]
      %v2015 = vld [vmem:[%s6 + $0x1a8] sm:$0xf]
      %v2016 = vld [vmem:[%s6 + $0x1ac] sm:$0xf]
      %v2017 = vld [vmem:[%s6 + $0x1b0] sm:$0xf]
      %v2018 = vld [vmem:[%s6 + $0x1b4] sm:$0xf]
      %v2019 = vld [vmem:[%s6 + $0x1b8] sm:$0xf]
      %v2020 = vld [vmem:[%s6 + $0x1bc] sm:$0xf]
      %v2021 = vld [vmem:[%s6 + $0x1c0] sm:$0xf]
      %v2022 = vld [vmem:[%s6 + $0x1c4] sm:$0xf]
      %v2023 = vld [vmem:[%s6 + $0x1c8] sm:$0xf]
      %v2024 = vld [vmem:[%s6 + $0x1cc] sm:$0xf]
      %v2025 = vld [vmem:[%s6 + $0x1d0] sm:$0xf]
      %v2026 = vld [vmem:[%s6 + $0x1d4] sm:$0xf]
      %v2027 = vld [vmem:[%s6 + $0x1d8] sm:$0xf]
      %v2028 = vld [vmem:[%s6 + $0x1dc] sm:$0xf]
      %v2085 = vunpack.c.l.b16 %v1973
      %v2086 = vunpack.c.l.b16 %v1974
      %v2087 = vunpack.c.l.b16 %v1975
      %v2088 = vunpack.c.l.b16 %v1976
      %v2089 = vunpack.c.l.b16 %v1977
      %v2090 = vunpack.c.l.b16 %v1978
      %v2091 = vunpack.c.l.b16 %v1979
      %v2092 = vunpack.c.l.b16 %v1980
      %v2093 = vunpack.c.l.b16 %v1981
      %v2094 = vunpack.c.l.b16 %v1982
      %v2095 = vunpack.c.l.b16 %v1983
      %v2096 = vunpack.c.l.b16 %v1984
      %v2097 = vunpack.c.l.b16 %v1985
      %v2098 = vunpack.c.l.b16 %v1986
      %v2099 = vunpack.c.l.b16 %v1987
      %v2100 = vunpack.c.l.b16 %v1988
      %v2101 = vunpack.c.l.b16 %v1989
      %v2102 = vunpack.c.l.b16 %v1990
      %v2103 = vunpack.c.l.b16 %v1991
      %v2104 = vunpack.c.l.b16 %v1992
      %v2105 = vunpack.c.l.b16 %v1993
      %v2106 = vunpack.c.l.b16 %v1994
      %v2107 = vunpack.c.l.b16 %v1995
      %v2108 = vunpack.c.l.b16 %v1996
      %v2109 = vunpack.c.l.b16 %v1997
      %v2110 = vunpack.c.l.b16 %v1998
      %v2111 = vunpack.c.l.b16 %v1999
      %v2112 = vunpack.c.l.b16 %v2000
      %v2113 = vunpack.c.l.b16 %v2001
      %v2114 = vunpack.c.l.b16 %v2002
      %v2115 = vunpack.c.l.b16 %v2003
      %v2116 = vunpack.c.l.b16 %v2004
      %v2117 = vunpack.c.l.b16 %v2005
      %v2118 = vunpack.c.l.b16 %v2006
      %v2119 = vunpack.c.l.b16 %v2007
      %v2120 = vunpack.c.l.b16 %v2008
      %v2121 = vunpack.c.l.b16 %v2009
      %v2122 = vunpack.c.l.b16 %v2010
      %v2123 = vunpack.c.l.b16 %v2011
      %v2124 = vunpack.c.l.b16 %v2012
      %v2125 = vunpack.c.l.b16 %v2013
      %v2126 = vunpack.c.l.b16 %v2014
      %v2127 = vunpack.c.l.b16 %v2015
      %v2128 = vunpack.c.l.b16 %v2016
      %v2129 = vunpack.c.l.b16 %v2017
      %v2130 = vunpack.c.l.b16 %v2018
      %v2131 = vunpack.c.l.b16 %v2019
      %v2132 = vunpack.c.l.b16 %v2020
      %v2133 = vunpack.c.l.b16 %v2021
      %v2134 = vunpack.c.l.b16 %v2022
      %v2135 = vunpack.c.l.b16 %v2023
      %v2136 = vunpack.c.l.b16 %v2024
      %v2137 = vunpack.c.l.b16 %v2025
      %v2138 = vunpack.c.l.b16 %v2026
      %v2139 = vunpack.c.l.b16 %v2027
      %v2140 = vunpack.c.l.b16 %v2028
      %v2141 = vpack.c.b16 %v2086, %v2085
      %v2142 = vpack.c.b16 %v2088, %v2087
      %v2143 = vpack.c.b16 %v2090, %v2089
      %v2144 = vpack.c.b16 %v2092, %v2091
      %v2145 = vpack.c.b16 %v2094, %v2093
      %v2146 = vpack.c.b16 %v2096, %v2095
      %v2147 = vpack.c.b16 %v2098, %v2097
      %v2148 = vpack.c.b16 %v2100, %v2099
      %v2149 = vpack.c.b16 %v2102, %v2101
      %v2150 = vpack.c.b16 %v2104, %v2103
      %v2151 = vpack.c.b16 %v2106, %v2105
      %v2152 = vpack.c.b16 %v2108, %v2107
      %v2153 = vpack.c.b16 %v2110, %v2109
      %v2154 = vpack.c.b16 %v2112, %v2111
      %v2155 = vpack.c.b16 %v2114, %v2113
      %v2156 = vpack.c.b16 %v2116, %v2115
      %v2157 = vpack.c.b16 %v2118, %v2117
      %v2158 = vpack.c.b16 %v2120, %v2119
      %v2159 = vpack.c.b16 %v2122, %v2121
      %v2160 = vpack.c.b16 %v2124, %v2123
      %v2161 = vpack.c.b16 %v2126, %v2125
      %v2162 = vpack.c.b16 %v2128, %v2127
      %v2163 = vpack.c.b16 %v2130, %v2129
      %v2164 = vpack.c.b16 %v2132, %v2131
      %v2165 = vpack.c.b16 %v2134, %v2133
      %v2166 = vpack.c.b16 %v2136, %v2135
      %v2167 = vpack.c.b16 %v2138, %v2137
      %v2168 = vpack.c.b16 %v2140, %v2139
      %v2198 = vsel %vm1312, %v1944, 0
      %v2201 = vsel %vm1312, %v1948, 0
      %v2204 = vsel %vm1312, %v1952, 0
      %v2207 = vsel %vm1312, %v1956, 0
      %v2210 = vsel %vm1312, %v1960, 0
      %v2213 = vsel %vm1312, %v1964, 0
      %v2216 = vsel %vm1312, %v1968, 0
      %v2219 = vsel %vm1312, %v1972, 0
      %2221 = vmatpush.bf16.msra.mxu0 %v2148
      %2222 = vmatpush.bf16.msra.mxu0 %v2147
      %2223 = vmatpush.bf16.msra.mxu0 %v2146
      %2224 = vmatpush.bf16.msra.mxu0 %v2145
      %2225 = vmatpush.bf16.msra.mxu0 %v2144
      %2226 = vmatpush.bf16.msra.mxu0 %v2143
      %2227 = vmatpush.bf16.msra.mxu0 %v2142
      %2228 = vmatpush.bf16.msra.mxu0 %v2141
      %2229 = vmatmul.bf16.gmra.mxu0 %v1941
      %v2230 = vpop.f32.mrf.mxu0
      %v2231 = vadd.f32 0.0, %v2230
      %v2232 = vpop.f32.mrf.mxu0
      %v2233 = vadd.f32 0.0, %v2232
      %2234 = vmatmul.bf16.gmra.mxu0 %v1945
      %v2235 = vpop.f32.mrf.mxu0
      %v2236 = vadd.f32 0.0, %v2235
      %v2237 = vpop.f32.mrf.mxu0
      %v2238 = vadd.f32 0.0, %v2237
      %2239 = vmatmul.bf16.gmra.mxu0 %v1949
      %v2240 = vpop.f32.mrf.mxu0
      %v2241 = vadd.f32 0.0, %v2240
      %v2242 = vpop.f32.mrf.mxu0
      %v2243 = vadd.f32 0.0, %v2242
      %2244 = vmatmul.bf16.gmra.mxu0 %v1953
      %v2245 = vpop.f32.mrf.mxu0
      %v2246 = vadd.f32 0.0, %v2245
      %v2247 = vpop.f32.mrf.mxu0
      %v2248 = vadd.f32 0.0, %v2247
      %2249 = vmatmul.bf16.gmra.mxu0 %v1957
      %v2250 = vpop.f32.mrf.mxu0
      %v2251 = vadd.f32 0.0, %v2250
      %v2252 = vpop.f32.mrf.mxu0
      %v2253 = vadd.f32 0.0, %v2252
      %2254 = vmatmul.bf16.gmra.mxu0 %v1961
      %v2255 = vpop.f32.mrf.mxu0
      %v2256 = vadd.f32 0.0, %v2255
      %v2257 = vpop.f32.mrf.mxu0
      %v2258 = vadd.f32 0.0, %v2257
      %2259 = vmatmul.bf16.gmra.mxu0 %v1965
      %v2260 = vpop.f32.mrf.mxu0
      %v2261 = vadd.f32 0.0, %v2260
      %v2262 = vpop.f32.mrf.mxu0
      %v2263 = vadd.f32 0.0, %v2262
      %2264 = vmatmul.bf16.gmra.mxu0 %v1969
      %v2265 = vpop.f32.mrf.mxu0
      %v2266 = vadd.f32 0.0, %v2265
      %v2267 = vpop.f32.mrf.mxu0
      %v2268 = vadd.f32 0.0, %v2267
      %2269 = vdwg.mxu0
      %2270 = vmatpush.bf16.msra.mxu0 %v2156
      %2271 = vmatpush.bf16.msra.mxu0 %v2155
      %2272 = vmatpush.bf16.msra.mxu0 %v2154
      %2273 = vmatpush.bf16.msra.mxu0 %v2153
      %2274 = vmatpush.bf16.msra.mxu0 %v2152
      %2275 = vmatpush.bf16.msra.mxu0 %v2151
      %2276 = vmatpush.bf16.msra.mxu0 %v2150
      %2277 = vmatpush.bf16.msra.mxu0 %v2149
      %2278 = vmatmul.bf16.gmra.mxu0 %v1942
      %v2279 = vpop.f32.mrf.mxu0
      %v2280 = vadd.f32 %v2231, %v2279
      %v2281 = vpop.f32.mrf.mxu0
      %v2282 = vadd.f32 %v2233, %v2281
      %2283 = vmatmul.bf16.gmra.mxu0 %v1946
      %v2284 = vpop.f32.mrf.mxu0
      %v2285 = vadd.f32 %v2236, %v2284
      %v2286 = vpop.f32.mrf.mxu0
      %v2287 = vadd.f32 %v2238, %v2286
      %2288 = vmatmul.bf16.gmra.mxu0 %v1950
      %v2289 = vpop.f32.mrf.mxu0
      %v2290 = vadd.f32 %v2241, %v2289
      %v2291 = vpop.f32.mrf.mxu0
      %v2292 = vadd.f32 %v2243, %v2291
      %2293 = vmatmul.bf16.gmra.mxu0 %v1954
      %v2294 = vpop.f32.mrf.mxu0
      %v2295 = vadd.f32 %v2246, %v2294
      %v2296 = vpop.f32.mrf.mxu0
      %v2297 = vadd.f32 %v2248, %v2296
      %2298 = vmatmul.bf16.gmra.mxu0 %v1958
      %v2299 = vpop.f32.mrf.mxu0
      %v2300 = vadd.f32 %v2251, %v2299
      %v2301 = vpop.f32.mrf.mxu0
      %v2302 = vadd.f32 %v2253, %v2301
      %2303 = vmatmul.bf16.gmra.mxu0 %v1962
      %v2304 = vpop.f32.mrf.mxu0
      %v2305 = vadd.f32 %v2256, %v2304
      %v2306 = vpop.f32.mrf.mxu0
      %v2307 = vadd.f32 %v2258, %v2306
      %2308 = vmatmul.bf16.gmra.mxu0 %v1966
      %v2309 = vpop.f32.mrf.mxu0
      %v2310 = vadd.f32 %v2261, %v2309
      %v2311 = vpop.f32.mrf.mxu0
      %v2312 = vadd.f32 %v2263, %v2311
      %2313 = vmatmul.bf16.gmra.mxu0 %v1970
      %v2314 = vpop.f32.mrf.mxu0
      %v2315 = vadd.f32 %v2266, %v2314
      %v2316 = vpop.f32.mrf.mxu0
      %v2317 = vadd.f32 %v2268, %v2316
      %2318 = vdwg.mxu0
      %2319 = vmatpush.bf16.msra.mxu0 %v2164
      %2320 = vmatpush.bf16.msra.mxu0 %v2163
      %2321 = vmatpush.bf16.msra.mxu0 %v2162
      %2322 = vmatpush.bf16.msra.mxu0 %v2161
      %2323 = vmatpush.bf16.msra.mxu0 %v2160
      %2324 = vmatpush.bf16.msra.mxu0 %v2159
      %2325 = vmatpush.bf16.msra.mxu0 %v2158
      %2326 = vmatpush.bf16.msra.mxu0 %v2157
      %2327 = vmatmul.bf16.gmra.mxu0 %v1943
      %v2328 = vpop.f32.mrf.mxu0
      %v2329 = vadd.f32 %v2280, %v2328
      %v2330 = vpop.f32.mrf.mxu0
      %v2331 = vadd.f32 %v2282, %v2330
      %2332 = vmatmul.bf16.gmra.mxu0 %v1947
      %v2333 = vpop.f32.mrf.mxu0
      %v2334 = vadd.f32 %v2285, %v2333
      %v2335 = vpop.f32.mrf.mxu0
      %v2336 = vadd.f32 %v2287, %v2335
      %2337 = vmatmul.bf16.gmra.mxu0 %v1951
      %v2338 = vpop.f32.mrf.mxu0
      %v2339 = vadd.f32 %v2290, %v2338
      %v2340 = vpop.f32.mrf.mxu0
      %v2341 = vadd.f32 %v2292, %v2340
      %2342 = vmatmul.bf16.gmra.mxu0 %v1955
      %v2343 = vpop.f32.mrf.mxu0
      %v2344 = vadd.f32 %v2295, %v2343
      %v2345 = vpop.f32.mrf.mxu0
      %v2346 = vadd.f32 %v2297, %v2345
      %2347 = vmatmul.bf16.gmra.mxu0 %v1959
      %v2348 = vpop.f32.mrf.mxu0
      %v2349 = vadd.f32 %v2300, %v2348
      %v2350 = vpop.f32.mrf.mxu0
      %v2351 = vadd.f32 %v2302, %v2350
      %2352 = vmatmul.bf16.gmra.mxu0 %v1963
      %v2353 = vpop.f32.mrf.mxu0
      %v2354 = vadd.f32 %v2305, %v2353
      %v2355 = vpop.f32.mrf.mxu0
      %v2356 = vadd.f32 %v2307, %v2355
      %2357 = vmatmul.bf16.gmra.mxu0 %v1967
      %v2358 = vpop.f32.mrf.mxu0
      %v2359 = vadd.f32 %v2310, %v2358
      %v2360 = vpop.f32.mrf.mxu0
      %v2361 = vadd.f32 %v2312, %v2360
      %2362 = vmatmul.bf16.gmra.mxu0 %v1971
      %v2363 = vpop.f32.mrf.mxu0
      %v2364 = vadd.f32 %v2315, %v2363
      %v2365 = vpop.f32.mrf.mxu0
      %v2366 = vadd.f32 %v2317, %v2365
      %2367 = vdwg.mxu0
      %2368 = vmatpush.bf16.msra.mxu0 0
      %2369 = vmatpush.bf16.msra.mxu0 0
      %2370 = vmatpush.bf16.msra.mxu0 0
      %2371 = vmatpush.bf16.msra.mxu0 0
      %2372 = vmatpush.bf16.msra.mxu0 %v2168
      %2373 = vmatpush.bf16.msra.mxu0 %v2167
      %2374 = vmatpush.bf16.msra.mxu0 %v2166
      %2375 = vmatpush.bf16.msra.mxu0 %v2165
      %2376 = vmatmul.bf16.gmra.mxu0 %v2198
      %v2377 = vpop.f32.mrf.mxu0
      %v2378 = vadd.f32 %v2329, %v2377
      %v2379 = vpop.f32.mrf.mxu0
      %v2380 = vadd.f32 %v2331, %v2379
      %2381 = vmatmul.bf16.gmra.mxu0 %v2201
      %v2382 = vpop.f32.mrf.mxu0
      %v2383 = vadd.f32 %v2334, %v2382
      %v2384 = vpop.f32.mrf.mxu0
      %v2385 = vadd.f32 %v2336, %v2384
      %2386 = vmatmul.bf16.gmra.mxu0 %v2204
      %v2387 = vpop.f32.mrf.mxu0
      %v2388 = vadd.f32 %v2339, %v2387
      %v2389 = vpop.f32.mrf.mxu0
      %v2390 = vadd.f32 %v2341, %v2389
      %2391 = vmatmul.bf16.gmra.mxu0 %v2207
      %v2392 = vpop.f32.mrf.mxu0
      %v2393 = vadd.f32 %v2344, %v2392
      %v2394 = vpop.f32.mrf.mxu0
      %v2395 = vadd.f32 %v2346, %v2394
      %2396 = vmatmul.bf16.gmra.mxu0 %v2210
      %v2397 = vpop.f32.mrf.mxu0
      %v2398 = vadd.f32 %v2349, %v2397
      %v2399 = vpop.f32.mrf.mxu0
      %v2400 = vadd.f32 %v2351, %v2399
      %2401 = vmatmul.bf16.gmra.mxu0 %v2213
      %v2402 = vpop.f32.mrf.mxu0
      %v2403 = vadd.f32 %v2354, %v2402
      %v2404 = vpop.f32.mrf.mxu0
      %v2405 = vadd.f32 %v2356, %v2404
      %2406 = vmatmul.bf16.gmra.mxu0 %v2216
      %v2407 = vpop.f32.mrf.mxu0
      %v2408 = vadd.f32 %v2359, %v2407
      %v2409 = vpop.f32.mrf.mxu0
      %v2410 = vadd.f32 %v2361, %v2409
      %2411 = vmatmul.bf16.gmra.mxu0 %v2219
      %v2412 = vpop.f32.mrf.mxu0
      %v2413 = vadd.f32 %v2364, %v2412
      %v2414 = vpop.f32.mrf.mxu0
      %v2415 = vadd.f32 %v2366, %v2414
      %2416 = vdwg.mxu0
      %v2481 = vunpack.c.l.b16 %v1425
      %v2482 = vunpack.c.l.b16 %v1426
      %v2483 = vunpack.c.l.b16 %v1427
      %v2484 = vunpack.c.l.b16 %v1428
      %v2485 = vunpack.c.l.b16 %v1429
      %v2486 = vunpack.c.l.b16 %v1430
      %v2487 = vunpack.c.l.b16 %v1431
      %v2488 = vunpack.c.l.b16 %v1432
      %v2489 = vunpack.c.l.b16 %v1433
      %v2490 = vunpack.c.l.b16 %v1434
      %v2491 = vunpack.c.l.b16 %v1435
      %v2492 = vunpack.c.l.b16 %v1436
      %v2493 = vunpack.c.l.b16 %v1437
      %v2494 = vunpack.c.l.b16 %v1438
      %v2495 = vunpack.c.l.b16 %v1439
      %v2496 = vunpack.c.l.b16 %v1440
      %v2497 = vunpack.c.l.b16 %v1441
      %v2498 = vunpack.c.l.b16 %v1442
      %v2499 = vunpack.c.l.b16 %v1443
      %v2500 = vunpack.c.l.b16 %v1444
      %v2501 = vunpack.c.l.b16 %v1445
      %v2502 = vunpack.c.l.b16 %v1446
      %v2503 = vunpack.c.l.b16 %v1447
      %v2504 = vunpack.c.l.b16 %v1448
      %v2505 = vunpack.c.l.b16 %v1449
      %v2506 = vunpack.c.l.b16 %v1450
      %v2507 = vunpack.c.l.b16 %v1451
      %v2508 = vunpack.c.l.b16 %v1452
      %v2509 = vunpack.c.l.b16 %v1453
      %v2510 = vunpack.c.l.b16 %v1454
      %v2511 = vunpack.c.l.b16 %v1455
      %v2512 = vunpack.c.l.b16 %v1456
      %v2513 = vunpack.c.l.b16 %v1457
      %v2514 = vunpack.c.l.b16 %v1458
      %v2515 = vunpack.c.l.b16 %v1459
      %v2516 = vunpack.c.l.b16 %v1460
      %v2517 = vunpack.c.l.b16 %v1461
      %v2518 = vunpack.c.l.b16 %v1462
      %v2519 = vunpack.c.l.b16 %v1463
      %v2520 = vunpack.c.l.b16 %v1464
      %v2521 = vunpack.c.l.b16 %v1465
      %v2522 = vunpack.c.l.b16 %v1466
      %v2523 = vunpack.c.l.b16 %v1467
      %v2524 = vunpack.c.l.b16 %v1468
      %v2525 = vunpack.c.l.b16 %v1469
      %v2526 = vunpack.c.l.b16 %v1470
      %v2527 = vunpack.c.l.b16 %v1471
      %v2528 = vunpack.c.l.b16 %v1472
      %v2529 = vunpack.c.l.b16 %v1473
      %v2530 = vunpack.c.l.b16 %v1474
      %v2531 = vunpack.c.l.b16 %v1475
      %v2532 = vunpack.c.l.b16 %v1476
      %v2533 = vunpack.c.l.b16 %v1477
      %v2534 = vunpack.c.l.b16 %v1478
      %v2535 = vunpack.c.l.b16 %v1479
      %v2536 = vunpack.c.l.b16 %v1480
      %v2537 = vunpack.c.l.b16 %v1481
      %v2538 = vunpack.c.l.b16 %v1482
      %v2539 = vunpack.c.l.b16 %v1483
      %v2540 = vunpack.c.l.b16 %v1484
      %v2541 = vunpack.c.l.b16 %v1485
      %v2542 = vunpack.c.l.b16 %v1486
      %v2543 = vunpack.c.l.b16 %v1487
      %v2544 = vunpack.c.l.b16 %v1488
      %v2545 = vpack.c.b16 %v2482, %v2481
      %v2546 = vpack.c.b16 %v2484, %v2483
      %v2547 = vpack.c.b16 %v2486, %v2485
      %v2548 = vpack.c.b16 %v2488, %v2487
      %v2549 = vpack.c.b16 %v2490, %v2489
      %v2550 = vpack.c.b16 %v2492, %v2491
      %v2551 = vpack.c.b16 %v2494, %v2493
      %v2552 = vpack.c.b16 %v2496, %v2495
      %v2553 = vpack.c.b16 %v2498, %v2497
      %v2554 = vpack.c.b16 %v2500, %v2499
      %v2555 = vpack.c.b16 %v2502, %v2501
      %v2556 = vpack.c.b16 %v2504, %v2503
      %v2557 = vpack.c.b16 %v2506, %v2505
      %v2558 = vpack.c.b16 %v2508, %v2507
      %v2559 = vpack.c.b16 %v2510, %v2509
      %v2560 = vpack.c.b16 %v2512, %v2511
      %v2561 = vpack.c.b16 %v2514, %v2513
      %v2562 = vpack.c.b16 %v2516, %v2515
      %v2563 = vpack.c.b16 %v2518, %v2517
      %v2564 = vpack.c.b16 %v2520, %v2519
      %v2565 = vpack.c.b16 %v2522, %v2521
      %v2566 = vpack.c.b16 %v2524, %v2523
      %v2567 = vpack.c.b16 %v2526, %v2525
      %v2568 = vpack.c.b16 %v2528, %v2527
      %v2569 = vpack.c.b16 %v2530, %v2529
      %v2570 = vpack.c.b16 %v2532, %v2531
      %v2571 = vpack.c.b16 %v2534, %v2533
      %v2572 = vpack.c.b16 %v2536, %v2535
      %v2573 = vpack.c.b16 %v2538, %v2537
      %v2574 = vpack.c.b16 %v2540, %v2539
      %v2575 = vpack.c.b16 %v2542, %v2541
      %v2576 = vpack.c.b16 %v2544, %v2543
      %2609 = vmatpush.bf16.msra.mxu0 %v2552
      %2610 = vmatpush.bf16.msra.mxu0 %v2551
      %2611 = vmatpush.bf16.msra.mxu0 %v2550
      %2612 = vmatpush.bf16.msra.mxu0 %v2549
      %2613 = vmatpush.bf16.msra.mxu0 %v2548
      %2614 = vmatpush.bf16.msra.mxu0 %v2547
      %2615 = vmatpush.bf16.msra.mxu0 %v2546
      %2616 = vmatpush.bf16.msra.mxu0 %v2545
      %2617 = vmatmul.bf16.gmra.mxu0 %v1393
      %v2618 = vpop.f32.mrf.mxu0
      %v2619 = vadd.f32 %v2378, %v2618
      %v2620 = vpop.f32.mrf.mxu0
      %v2621 = vadd.f32 %v2380, %v2620
      %2622 = vmatmul.bf16.gmra.mxu0 %v1397
      %v2623 = vpop.f32.mrf.mxu0
      %v2624 = vadd.f32 %v2383, %v2623
      %v2625 = vpop.f32.mrf.mxu0
      %v2626 = vadd.f32 %v2385, %v2625
      %2627 = vmatmul.bf16.gmra.mxu0 %v1401
      %v2628 = vpop.f32.mrf.mxu0
      %v2629 = vadd.f32 %v2388, %v2628
      %v2630 = vpop.f32.mrf.mxu0
      %v2631 = vadd.f32 %v2390, %v2630
      %2632 = vmatmul.bf16.gmra.mxu0 %v1405
      %v2633 = vpop.f32.mrf.mxu0
      %v2634 = vadd.f32 %v2393, %v2633
      %v2635 = vpop.f32.mrf.mxu0
      %v2636 = vadd.f32 %v2395, %v2635
      %2637 = vmatmul.bf16.gmra.mxu0 %v1409
      %v2638 = vpop.f32.mrf.mxu0
      %v2639 = vadd.f32 %v2398, %v2638
      %v2640 = vpop.f32.mrf.mxu0
      %v2641 = vadd.f32 %v2400, %v2640
      %2642 = vmatmul.bf16.gmra.mxu0 %v1413
      %v2643 = vpop.f32.mrf.mxu0
      %v2644 = vadd.f32 %v2403, %v2643
      %v2645 = vpop.f32.mrf.mxu0
      %v2646 = vadd.f32 %v2405, %v2645
      %2647 = vmatmul.bf16.gmra.mxu0 %v1417
      %v2648 = vpop.f32.mrf.mxu0
      %v2649 = vadd.f32 %v2408, %v2648
      %v2650 = vpop.f32.mrf.mxu0
      %v2651 = vadd.f32 %v2410, %v2650
      %2652 = vmatmul.bf16.gmra.mxu0 %v1421
      %v2653 = vpop.f32.mrf.mxu0
      %v2654 = vadd.f32 %v2413, %v2653
      %v2655 = vpop.f32.mrf.mxu0
      %v2656 = vadd.f32 %v2415, %v2655
      %2657 = vdwg.mxu0
      %2658 = vmatpush.bf16.msra.mxu0 %v2560
      %2659 = vmatpush.bf16.msra.mxu0 %v2559
      %2660 = vmatpush.bf16.msra.mxu0 %v2558
      %2661 = vmatpush.bf16.msra.mxu0 %v2557
      %2662 = vmatpush.bf16.msra.mxu0 %v2556
      %2663 = vmatpush.bf16.msra.mxu0 %v2555
      %2664 = vmatpush.bf16.msra.mxu0 %v2554
      %2665 = vmatpush.bf16.msra.mxu0 %v2553
      %2666 = vmatmul.bf16.gmra.mxu0 %v1394
      %v2667 = vpop.f32.mrf.mxu0
      %v2668 = vadd.f32 %v2619, %v2667
      %v2669 = vpop.f32.mrf.mxu0
      %v2670 = vadd.f32 %v2621, %v2669
      %2671 = vmatmul.bf16.gmra.mxu0 %v1398
      %v2672 = vpop.f32.mrf.mxu0
      %v2673 = vadd.f32 %v2624, %v2672
      %v2674 = vpop.f32.mrf.mxu0
      %v2675 = vadd.f32 %v2626, %v2674
      %2676 = vmatmul.bf16.gmra.mxu0 %v1402
      %v2677 = vpop.f32.mrf.mxu0
      %v2678 = vadd.f32 %v2629, %v2677
      %v2679 = vpop.f32.mrf.mxu0
      %v2680 = vadd.f32 %v2631, %v2679
      %2681 = vmatmul.bf16.gmra.mxu0 %v1406
      %v2682 = vpop.f32.mrf.mxu0
      %v2683 = vadd.f32 %v2634, %v2682
      %v2684 = vpop.f32.mrf.mxu0
      %v2685 = vadd.f32 %v2636, %v2684
      %2686 = vmatmul.bf16.gmra.mxu0 %v1410
      %v2687 = vpop.f32.mrf.mxu0
      %v2688 = vadd.f32 %v2639, %v2687
      %v2689 = vpop.f32.mrf.mxu0
      %v2690 = vadd.f32 %v2641, %v2689
      %2691 = vmatmul.bf16.gmra.mxu0 %v1414
      %v2692 = vpop.f32.mrf.mxu0
      %v2693 = vadd.f32 %v2644, %v2692
      %v2694 = vpop.f32.mrf.mxu0
      %v2695 = vadd.f32 %v2646, %v2694
      %2696 = vmatmul.bf16.gmra.mxu0 %v1418
      %v2697 = vpop.f32.mrf.mxu0
      %v2698 = vadd.f32 %v2649, %v2697
      %v2699 = vpop.f32.mrf.mxu0
      %v2700 = vadd.f32 %v2651, %v2699
      %2701 = vmatmul.bf16.gmra.mxu0 %v1422
      %v2702 = vpop.f32.mrf.mxu0
      %v2703 = vadd.f32 %v2654, %v2702
      %v2704 = vpop.f32.mrf.mxu0
      %v2705 = vadd.f32 %v2656, %v2704
      %2706 = vdwg.mxu0
      %2707 = vmatpush.bf16.msra.mxu0 %v2568
      %2708 = vmatpush.bf16.msra.mxu0 %v2567
      %2709 = vmatpush.bf16.msra.mxu0 %v2566
      %2710 = vmatpush.bf16.msra.mxu0 %v2565
      %2711 = vmatpush.bf16.msra.mxu0 %v2564
      %2712 = vmatpush.bf16.msra.mxu0 %v2563
      %2713 = vmatpush.bf16.msra.mxu0 %v2562
      %2714 = vmatpush.bf16.msra.mxu0 %v2561
      %2715 = vmatmul.bf16.gmra.mxu0 %v1395
      %v2716 = vpop.f32.mrf.mxu0
      %v2717 = vadd.f32 %v2668, %v2716
      %v2718 = vpop.f32.mrf.mxu0
      %v2719 = vadd.f32 %v2670, %v2718
      %2720 = vmatmul.bf16.gmra.mxu0 %v1399
      %v2721 = vpop.f32.mrf.mxu0
      %v2722 = vadd.f32 %v2673, %v2721
      %v2723 = vpop.f32.mrf.mxu0
      %v2724 = vadd.f32 %v2675, %v2723
      %2725 = vmatmul.bf16.gmra.mxu0 %v1403
      %v2726 = vpop.f32.mrf.mxu0
      %v2727 = vadd.f32 %v2678, %v2726
      %v2728 = vpop.f32.mrf.mxu0
      %v2729 = vadd.f32 %v2680, %v2728
      %2730 = vmatmul.bf16.gmra.mxu0 %v1407
      %v2731 = vpop.f32.mrf.mxu0
      %v2732 = vadd.f32 %v2683, %v2731
      %v2733 = vpop.f32.mrf.mxu0
      %v2734 = vadd.f32 %v2685, %v2733
      %2735 = vmatmul.bf16.gmra.mxu0 %v1411
      %v2736 = vpop.f32.mrf.mxu0
      %v2737 = vadd.f32 %v2688, %v2736
      %v2738 = vpop.f32.mrf.mxu0
      %v2739 = vadd.f32 %v2690, %v2738
      %2740 = vmatmul.bf16.gmra.mxu0 %v1415
      %v2741 = vpop.f32.mrf.mxu0
      %v2742 = vadd.f32 %v2693, %v2741
      %v2743 = vpop.f32.mrf.mxu0
      %v2744 = vadd.f32 %v2695, %v2743
      %2745 = vmatmul.bf16.gmra.mxu0 %v1419
      %v2746 = vpop.f32.mrf.mxu0
      %v2747 = vadd.f32 %v2698, %v2746
      %v2748 = vpop.f32.mrf.mxu0
      %v2749 = vadd.f32 %v2700, %v2748
      %2750 = vmatmul.bf16.gmra.mxu0 %v1423
      %v2751 = vpop.f32.mrf.mxu0
      %v2752 = vadd.f32 %v2703, %v2751
      %v2753 = vpop.f32.mrf.mxu0
      %v2754 = vadd.f32 %v2705, %v2753
      %2755 = vdwg.mxu0
      %2756 = vmatpush.bf16.msra.mxu0 %v2576
      %2757 = vmatpush.bf16.msra.mxu0 %v2575
      %2758 = vmatpush.bf16.msra.mxu0 %v2574
      %2759 = vmatpush.bf16.msra.mxu0 %v2573
      %2760 = vmatpush.bf16.msra.mxu0 %v2572
      %2761 = vmatpush.bf16.msra.mxu0 %v2571
      %2762 = vmatpush.bf16.msra.mxu0 %v2570
      %2763 = vmatpush.bf16.msra.mxu0 %v2569
      %2764 = vmatmul.bf16.gmra.mxu0 %v1396
      %v2765 = vpop.f32.mrf.mxu0
      %v2766 = vadd.f32 %v2717, %v2765
      %v2767 = vpop.f32.mrf.mxu0
      %v2768 = vadd.f32 %v2719, %v2767
      %2769 = vmatmul.bf16.gmra.mxu0 %v1400
      %v2770 = vpop.f32.mrf.mxu0
      %v2771 = vadd.f32 %v2722, %v2770
      %v2772 = vpop.f32.mrf.mxu0
      %v2773 = vadd.f32 %v2724, %v2772
      %2774 = vmatmul.bf16.gmra.mxu0 %v1404
      %v2775 = vpop.f32.mrf.mxu0
      %v2776 = vadd.f32 %v2727, %v2775
      %v2777 = vpop.f32.mrf.mxu0
      %v2778 = vadd.f32 %v2729, %v2777
      %2779 = vmatmul.bf16.gmra.mxu0 %v1408
      %v2780 = vpop.f32.mrf.mxu0
      %v2781 = vadd.f32 %v2732, %v2780
      %v2782 = vpop.f32.mrf.mxu0
      %v2783 = vadd.f32 %v2734, %v2782
      %2784 = vmatmul.bf16.gmra.mxu0 %v1412
      %v2785 = vpop.f32.mrf.mxu0
      %v2786 = vadd.f32 %v2737, %v2785
      %v2787 = vpop.f32.mrf.mxu0
      %v2788 = vadd.f32 %v2739, %v2787
      %2789 = vmatmul.bf16.gmra.mxu0 %v1416
      %v2790 = vpop.f32.mrf.mxu0
      %v2791 = vadd.f32 %v2742, %v2790
      %v2792 = vpop.f32.mrf.mxu0
      %v2793 = vadd.f32 %v2744, %v2792
      %2794 = vmatmul.bf16.gmra.mxu0 %v1420
      %v2795 = vpop.f32.mrf.mxu0
      %v2796 = vadd.f32 %v2747, %v2795
      %v2797 = vpop.f32.mrf.mxu0
      %v2798 = vadd.f32 %v2749, %v2797
      %2799 = vmatmul.bf16.gmra.mxu0 %v1424
      %v2800 = vpop.f32.mrf.mxu0
      %v2801 = vadd.f32 %v2752, %v2800
      %v2802 = vpop.f32.mrf.mxu0
      %v2803 = vadd.f32 %v2754, %v2802
      %2804 = vdwg.mxu0
      %vm2805 = vcmask 261120
      %2806 = vst.msk [vmem:[%s335] sm:$0xff] %vm2805, %v2766
      %2807 = vst.msk [vmem:[%s335 + $0x8] sm:$0xff] %vm2805, %v2768
      %2808 = vst.msk [vmem:[%s335 + $0x10] sm:$0xff] %vm2805, %v2771
      %2809 = vst.msk [vmem:[%s335 + $0x18] sm:$0xff] %vm2805, %v2773
      %2810 = vst.msk [vmem:[%s335 + $0x20] sm:$0xff] %vm2805, %v2776
      %2811 = vst.msk [vmem:[%s335 + $0x28] sm:$0xff] %vm2805, %v2778
      %2812 = vst.msk [vmem:[%s335 + $0x30] sm:$0xff] %vm2805, %v2781
      %2813 = vst.msk [vmem:[%s335 + $0x38] sm:$0xff] %vm2805, %v2783
      %2814 = vst.msk [vmem:[%s335 + $0x40] sm:$0xff] %vm2805, %v2786
      %2815 = vst.msk [vmem:[%s335 + $0x48] sm:$0xff] %vm2805, %v2788
      %2816 = vst.msk [vmem:[%s335 + $0x50] sm:$0xff] %vm2805, %v2791
      %2817 = vst.msk [vmem:[%s335 + $0x58] sm:$0xff] %vm2805, %v2793
      %2818 = vst.msk [vmem:[%s335 + $0x60] sm:$0xff] %vm2805, %v2796
      %2819 = vst.msk [vmem:[%s335 + $0x68] sm:$0xff] %vm2805, %v2798
      %2820 = vst.msk [vmem:[%s335 + $0x70] sm:$0xff] %vm2805, %v2801
      %2821 = vst.msk [vmem:[%s335 + $0x78] sm:$0xff] %vm2805, %v2803
      %v2822 = vsel %vm2805, %v2766, 0.0
      %v2823 = vsel %vm2805, %v2768, 0.0
      %v2824 = vadd.f32 %v2822, %v2823
      %v2825 = vsel %vm2805, %v2771, 0.0
      %v2826 = vadd.f32 %v2824, %v2825
      %v2827 = vsel %vm2805, %v2773, 0.0
      %v2828 = vadd.f32 %v2826, %v2827
      %v2829 = vsel %vm2805, %v2776, 0.0
      %v2830 = vadd.f32 %v2828, %v2829
      %v2831 = vsel %vm2805, %v2778, 0.0
      %v2832 = vadd.f32 %v2830, %v2831
      %v2833 = vsel %vm2805, %v2781, 0.0
      %v2834 = vadd.f32 %v2832, %v2833
      %v2835 = vsel %vm2805, %v2783, 0.0
      %v2836 = vadd.f32 %v2834, %v2835
      %v2837 = vsel %vm2805, %v2786, 0.0
      %v2838 = vadd.f32 %v2836, %v2837
      %v2839 = vsel %vm2805, %v2788, 0.0
      %v2840 = vadd.f32 %v2838, %v2839
      %v2841 = vsel %vm2805, %v2791, 0.0
      %v2842 = vadd.f32 %v2840, %v2841
      %v2843 = vsel %vm2805, %v2793, 0.0
      %v2844 = vadd.f32 %v2842, %v2843
      %v2845 = vsel %vm2805, %v2796, 0.0
      %v2846 = vadd.f32 %v2844, %v2845
      %v2847 = vsel %vm2805, %v2798, 0.0
      %v2848 = vadd.f32 %v2846, %v2847
      %v2849 = vsel %vm2805, %v2801, 0.0
      %v2850 = vadd.f32 %v2848, %v2849
      %v2851 = vsel %vm2805, %v2803, 0.0
      %v2852 = vadd.f32 %v2850, %v2851
      %v2853 = vrot.slane %v2852, 4
      %v2854 = vadd.f32 %v2852, %v2853
      %v2855 = vrot.slane %v2854, 2
      %v2856 = vadd.f32 %v2854, %v2855
      %v2857 = vrot.slane %v2856, 1
      %v2858 = vadd.f32 %v2856, %v2857
      %v2859 = vmul.f32 %v2766, %v2766
      %v2860 = vmul.f32 %v2768, %v2768
      %v2861 = vmul.f32 %v2771, %v2771
      %v2862 = vmul.f32 %v2773, %v2773
      %v2863 = vmul.f32 %v2776, %v2776
      %v2864 = vmul.f32 %v2778, %v2778
      %v2865 = vmul.f32 %v2781, %v2781
      %v2866 = vmul.f32 %v2783, %v2783
      %v2867 = vmul.f32 %v2786, %v2786
      %v2868 = vmul.f32 %v2788, %v2788
      %v2869 = vmul.f32 %v2791, %v2791
      %v2870 = vmul.f32 %v2793, %v2793
      %v2871 = vmul.f32 %v2796, %v2796
      %v2872 = vmul.f32 %v2798, %v2798
      %v2873 = vmul.f32 %v2801, %v2801
      %v2874 = vmul.f32 %v2803, %v2803
      %v2875 = vsel %vm2805, %v2859, 0.0
      %v2876 = vsel %vm2805, %v2860, 0.0
      %v2877 = vadd.f32 %v2875, %v2876
      %v2878 = vsel %vm2805, %v2861, 0.0
      %v2879 = vadd.f32 %v2877, %v2878
      %v2880 = vsel %vm2805, %v2862, 0.0
      %v2881 = vadd.f32 %v2879, %v2880
      %v2882 = vsel %vm2805, %v2863, 0.0
      %v2883 = vadd.f32 %v2881, %v2882
      %v2884 = vsel %vm2805, %v2864, 0.0
      %v2885 = vadd.f32 %v2883, %v2884
      %v2886 = vsel %vm2805, %v2865, 0.0
      %v2887 = vadd.f32 %v2885, %v2886
      %v2888 = vsel %vm2805, %v2866, 0.0
      %v2889 = vadd.f32 %v2887, %v2888
      %v2890 = vsel %vm2805, %v2867, 0.0
      %v2891 = vadd.f32 %v2889, %v2890
      %v2892 = vsel %vm2805, %v2868, 0.0
      %v2893 = vadd.f32 %v2891, %v2892
      %v2894 = vsel %vm2805, %v2869, 0.0
      %v2895 = vadd.f32 %v2893, %v2894
      %v2896 = vsel %vm2805, %v2870, 0.0
      %v2897 = vadd.f32 %v2895, %v2896
      %v2898 = vsel %vm2805, %v2871, 0.0
      %v2899 = vadd.f32 %v2897, %v2898
      %v2900 = vsel %vm2805, %v2872, 0.0
      %v2901 = vadd.f32 %v2899, %v2900
      %v2902 = vsel %vm2805, %v2873, 0.0
      %v2903 = vadd.f32 %v2901, %v2902
      %v2904 = vsel %vm2805, %v2874, 0.0
      %v2905 = vadd.f32 %v2903, %v2904
      %v2906 = vrot.slane %v2905, 4
      %v2907 = vadd.f32 %v2905, %v2906
      %v2908 = vrot.slane %v2907, 2
      %v2909 = vadd.f32 %v2907, %v2908
      %v2910 = vrot.slane %v2909, 1
      %v2911 = vadd.f32 %v2909, %v2910
      %2913 = vrot.lane.b32.xlu0 %v2911, 32
      %v2914 = vpop.permute.xlu0 %2913
      %v2916 = vsel %vm2805, %v2858, %v2914
      %vm2917 = vcmask 516096
      %2918 = vst.msk [vmem:[%s339] sm:$0x1] %vm2917, %v2916
      %s2919 = smul.u32 16, %s20
      %p2920 = scmp.lt.s32.totalorder %s2919, 31
      %s2921 = scalar_select %p2920, %s2919, 31
      %s2922 = smul.addr %s2921, 8
      %s2923 = scalar_lea.vmem %s7, %s2922
      %p2924 = scmp.lt.s32.totalorder %s20, 1
      %s2925 = scalar_select %p2924, %s20, 1
      %s2926 = scalar_lea.vmem %s8, %s2925
      // Predicated region
      $region49: #{kpconv_res_block.4} parent=47 // pred_check
        %p2927 = pneg %p195
      $region50: #{kpconv_res_block.4} parent=47 // pred_check_branch
        %2929 = sbr.rel (%p2927) target = $region52
      $region51: #{kpconv_res_block.4} parent=47 // pred_region
        %s2930 = smul.u32 16, %s20
      $region52: #{kpconv_res_block.4} parent=47 // pred_fallthru
        _
      // Predicated region
      $region53: #{kpconv_res_block.4} parent=47 // pred_check
        %p2931 = pneg %p221
      $region54: #{kpconv_res_block.4} parent=47 // pred_check_branch
        %2933 = sbr.rel (%p2931) target = $region56
      $region55: #{kpconv_res_block.4} parent=47 // pred_region
        _
      $region56: #{kpconv_res_block.4} parent=47 // pred_fallthru
        _
    $region48: #{kpconv_res_block.4} parent=5 // pred_fallthru
      _
    %p2934 = scmp.le.s32.totalorder 2, %s15
    // Predicated region
    $region57: #{kpconv_res_block.4} parent=5 // pred_check
      %p2935 = pneg %p2934
    $region58: #{kpconv_res_block.4} parent=5 // pred_check_branch
      %2937 = sbr.rel (%p2935) target = $region60
    $region59: #{kpconv_res_block.4} parent=5 // pred_region
      %s2938 = ssub.s32 %s15, 2
      // Predicated region
      $region61: #{kpconv_res_block.4} parent=59 // pred_check
        %p2939 = pneg %p201
      $region62: #{kpconv_res_block.4} parent=59 // pred_check_branch
        %2941 = sbr.rel (%p2939) target = $region64
      $region63: #{kpconv_res_block.4} parent=59 // pred_region
        %s2942 = smul.u32 16, %s21
        %p2943 = scmp.lt.s32.totalorder %s2942, 31
        %s2944 = scalar_select %p2943, %s2942, 31
        %s2945 = smul.addr %s2944, 8
        %s2946 = scalar_lea.vmem %s7, %s2945
      $region64: #{kpconv_res_block.4} parent=59 // pred_fallthru
        _
      // Predicated region
      $region65: #{kpconv_res_block.4} parent=59 // pred_check
        %p2947 = pneg %p227
      $region66: #{kpconv_res_block.4} parent=59 // pred_check_branch
        %2949 = sbr.rel (%p2947) target = $region68
      $region67: #{kpconv_res_block.4} parent=59 // pred_region
        %p2950 = scmp.lt.s32.totalorder %s21, 1
        %s2951 = scalar_select %p2950, %s21, 1
        %s2952 = scalar_lea.vmem %s8, %s2951
      $region68: #{kpconv_res_block.4} parent=59 // pred_fallthru
        _
    $region60: #{kpconv_res_block.4} parent=5 // pred_fallthru
      _
  $region6: #{kpconv_res_block.4} parent=0 // loop_footer
    %s19 = sadd.s32 1, %s15
  $region7: #{kpconv_res_block.4} parent=0 // loop_footer_branch
    %14 = sbr.rel target = $region3
  $region8: #{kpconv_res_block.4} parent=0 // loop_exit
    _

</llo_original>
